<compile_context>
chip_gen: v7x
topology: tpu7x:2x2x1
jax: 0.10.0
libtpu: 0.0.40
codegen_flags: <defaults>
</compile_context>

<pallas_src>
import functools
import math

import jax
import jax.numpy as jnp
import numpy as np
from jax.experimental import pallas as pl
from jax.experimental.pallas import tpu as pltpu

LN_EPS = 1e-5


def _attn_ln_kernel(x_ref, wqkv_ref, bqkv_ref, gb_ref, out_ref, *,
                    batch, seq, heads):
    """Fused self-attention + residual + LayerNorm, single invocation.

    x_ref    : (B*S, D)  rows = flattened (batch, seq); lane-dense feature dim
    wqkv_ref : (D, 3*D)  block-diagonal fused [Wq^T | Wk^T | Wv^T]
    bqkv_ref : (1, 3*D)  fused biases (tiled across heads)
    gb_ref   : (2, D)    row 0 = LayerNorm gamma, row 1 = beta
    out_ref  : (B*S, D)
    """
    B, S, H = batch, seq, heads
    D = x_ref.shape[-1]
    c = D // H

    x = x_ref[...]                                             # (B*S, D) f32

    # --- fused, lane-dense QKV projection: one MXU matmul ---
    qkv = (jnp.dot(x, wqkv_ref[...], preferred_element_type=jnp.float32)
           + bqkv_ref[...])                                    # (B*S, 3D)

    def split_heads(z):
        # (B*S, D) with cols ordered (h c)  ->  (B*H, S, c)
        return z.reshape(B, S, H, c).transpose(0, 2, 1, 3).reshape(B * H, S, c)

    qh = split_heads(qkv[:, 0 * D:1 * D])
    kh = split_heads(qkv[:, 1 * D:2 * D])
    vh = split_heads(qkv[:, 2 * D:3 * D])

    # --- scaled dot-product attention per (batch, head) ---
    a = jnp.einsum('gqc,gkc->gqk', qh, kh,
                   preferred_element_type=jnp.float32)
    a = a * (1.0 / math.sqrt(c))

    a_max = jnp.max(a, axis=-1, keepdims=True)
    e = jnp.exp(a - a_max)
    inv = pl.reciprocal(jnp.sum(e, axis=-1, keepdims=True), approx=False)
    p = e * inv

    ctx = jnp.einsum('gqk,gkc->gqc', p, vh,
                     preferred_element_type=jnp.float32)       # (B*H, S, c)

    # 'b h q c -> b q (h c)'
    attn = ctx.reshape(B, H, S, c).transpose(0, 2, 1, 3).reshape(B * S, D)

    # --- residual + LayerNorm over the feature dim ---
    gb = gb_ref[...]
    y = x + attn
    mu = jnp.mean(y, axis=-1, keepdims=True)
    var = jnp.mean((y - mu) ** 2, axis=-1, keepdims=True)
    y_hat = (y - mu) * jax.lax.rsqrt(var + LN_EPS)
    out_ref[...] = y_hat * gb[0:1, :] + gb[1:2, :]


def transformer_attention(x, params, heads):
    """x: (B, S, D) float32 -> (B, S, D) float32."""
    B, S, D = x.shape
    H = heads
    c = D // H
    assert D % H == 0

    eye_h = jnp.eye(H, dtype=jnp.float32)

    def block_diag_t(w):
        # per-head shared nn.Linear weight (c, c) -> kron(I_H, W^T): (D, D)
        return jnp.kron(eye_h, w.T)

    # Fused QKV weight (D, 3D) and bias (1, 3D); built once per call in XLA.
    wqkv = jnp.concatenate(
        [block_diag_t(params["wq"]),
         block_diag_t(params["wk"]),
         block_diag_t(params["wv"])], axis=1)
    bqkv = jnp.concatenate(
        [jnp.tile(params["bq"], (1, H)),
         jnp.tile(params["bk"], (1, H)),
         jnp.tile(params["bv"], (1, H))], axis=1)
    gb = jnp.concatenate([params["gamma"], params["beta"]], axis=0)  # (2, D)

    x2d = x.reshape(B * S, D)   # fold batch into rows (free reshape)

    kernel = functools.partial(_attn_ln_kernel, batch=B, seq=S, heads=H)

    out2d = pl.pallas_call(
        kernel,
        out_shape=jax.ShapeDtypeStruct((B * S, D), jnp.float32),
        grid_spec=pltpu.PrefetchScalarGridSpec(
            num_scalar_prefetch=0,
            grid=(1,),   # whole problem in one invocation at demo scale
            in_specs=[
                pl.BlockSpec((B * S, D), lambda i: (0, 0)),   # activations
                pl.BlockSpec((D, 3 * D), lambda i: (0, 0)),   # fused QKV weight
                pl.BlockSpec((1, 3 * D), lambda i: (0, 0)),   # fused QKV bias
                pl.BlockSpec((2, D), lambda i: (0, 0)),        # gamma/beta
            ],
            out_specs=pl.BlockSpec((B * S, D), lambda i: (0, 0)),
        ),
        compiler_params=pltpu.CompilerParams(
            dimension_semantics=("arbitrary",)),
    )(x2d, wqkv, bqkv, gb)

    return out2d.reshape(B, S, D)


def transformer_attention_ref(x, params, heads):
    """Pure-JAX reference implementation (mirrors the PyTorch module)."""
    B, S, D = x.shape
    H = heads
    c = D // H
    xh = x.reshape(B, S, H, c).transpose(0, 2, 1, 3)  # (B, H, S, c)

    def lin(z, w, b):
        return jnp.einsum('bhsc,dc->bhsd', z, w) + b.reshape(1, 1, 1, -1)

    qp = lin(xh, params["wq"], params["bq"])
    kp = lin(xh, params["wk"], params["bk"])
    vp = lin(xh, params["wv"], params["bv"])

    a = jnp.einsum('bhqc,bhkc->bhqk', qp, kp) / math.sqrt(c)
    p = jax.nn.softmax(a, axis=-1)
    q_new = jnp.einsum('bhqk,bhkc->bhqc', p, vp)
    q_new = q_new.transpose(0, 2, 1, 3).reshape(B, S, D)

    y = x + q_new
    mu = jnp.mean(y, axis=-1, keepdims=True)
    var = jnp.mean((y - mu) ** 2, axis=-1, keepdims=True)
    y_hat = (y - mu) / jnp.sqrt(var + LN_EPS)
    return y_hat * params["gamma"].reshape(1, 1, D) + params["beta"].reshape(1, 1, D)


def init_params(key, q_dim, heads):
    c = q_dim // heads
    ks = jax.random.split(key, 6)
    bound = 1.0 / math.sqrt(c)

    def u(k, shape):
        return jax.random.uniform(k, shape, jnp.float32, -bound, bound)

    return {
        "wq": u(ks[0], (c, c)), "bq": u(ks[1], (1, c)),
        "wk": u(ks[2], (c, c)), "bk": u(ks[3], (1, c)),
        "wv": u(ks[4], (c, c)), "bv": u(ks[5], (1, c)),
        # nn.LayerNorm defaults: weight=1, bias=0
        "gamma": jnp.ones((1, q_dim), jnp.float32),
        "beta": jnp.zeros((1, q_dim), jnp.float32),
    }


if __name__ == "__main__":
    B, S, q_dim, heads = 2, 8, 32, 8   # heads=8, q_dim=32 -> head dim c=4

    key = jax.random.PRNGKey(0)
    kx, kp = jax.random.split(key)
    x = jax.random.normal(kx, (B, S, q_dim), jnp.float32)
    params = init_params(kp, q_dim, heads)

    out = transformer_attention(x, params, heads)
    out = jax.block_until_ready(out)

    ref = transformer_attention_ref(x, params, heads)
    np.testing.assert_allclose(np.asarray(out), np.asarray(ref),
                               rtol=1e-5, atol=1e-5)

    print("KERNEL_OK")
</pallas_src>

<mosaic_0001>
module attributes {stable_mosaic.version = 11 : i64} {
  func.func @_attn_ln_kernel(%arg0: i32, %arg1: memref<16x32xf32, #tpu.memory_space<vmem>>, %arg2: memref<32x96xf32, #tpu.memory_space<vmem>>, %arg3: memref<1x96xf32, #tpu.memory_space<vmem>>, %arg4: memref<2x32xf32, #tpu.memory_space<vmem>>, %arg5: memref<16x32xf32, #tpu.memory_space<vmem>>) attributes {dimension_semantics = [#tpu.dimension_semantics<arbitrary>], iteration_bounds = array<i64: 1>, scalar_prefetch = 0 : i64, scratch_operands = 0 : i64, tpu.core_type = #tpu.core_type<tc>, window_params = [{pipeline_mode = #tpu.pipeline_mode<synchronous>, transform_indices = @transform_0, window_bounds = array<i64: 16, 32>}, {pipeline_mode = #tpu.pipeline_mode<synchronous>, transform_indices = @transform_1, window_bounds = array<i64: 32, 96>}, {pipeline_mode = #tpu.pipeline_mode<synchronous>, transform_indices = @transform_2, window_bounds = array<i64: 1, 96>}, {pipeline_mode = #tpu.pipeline_mode<synchronous>, transform_indices = @transform_3, window_bounds = array<i64: 2, 32>}, {pipeline_mode = #tpu.pipeline_mode<synchronous>, transform_indices = @transform_4, window_bounds = array<i64: 16, 32>}]} {
    %c0 = arith.constant 0 : index
    %c0_0 = arith.constant 0 : index
    %0 = vector.load %arg1[%c0, %c0_0] : memref<16x32xf32, #tpu.memory_space<vmem>>, vector<16x32xf32>
    %c0_1 = arith.constant 0 : index
    %c0_2 = arith.constant 0 : index
    %1 = vector.load %arg2[%c0_1, %c0_2] : memref<32x96xf32, #tpu.memory_space<vmem>>, vector<32x96xf32>
    %cst = arith.constant dense<0.000000e+00> : vector<16x96xf32>
    %2 = tpu.matmul %0, %1, %cst {dimension_numbers = #tpu.dot_dimension_numbers<[1], [0], [0], [1], [0, 0, 1, 1], [], []>} : vector<16x32xf32>, vector<32x96xf32>, vector<16x96xf32> -> vector<16x96xf32>
    %c0_3 = arith.constant 0 : index
    %c0_4 = arith.constant 0 : index
    %3 = vector.load %arg3[%c0_3, %c0_4] : memref<1x96xf32, #tpu.memory_space<vmem>>, vector<1x96xf32>
    %4 = vector.broadcast %3 : vector<1x96xf32> to vector<16x96xf32>
    %5 = arith.addf %2, %4 : vector<16x96xf32>
    %6 = vector.extract_strided_slice %5 {offsets = [0, 0], sizes = [16, 32], strides = [1, 1]} : vector<16x96xf32> to vector<16x32xf32>
    %7 = vector.shape_cast %6 : vector<16x32xf32> to vector<2x8x8x4xf32>
    %8 = tpu.transpose %7, [0, 2, 1, 3] : vector<2x8x8x4xf32> -> vector<2x8x8x4xf32>
    %9 = vector.shape_cast %8 : vector<2x8x8x4xf32> to vector<16x8x4xf32>
    %10 = vector.extract_strided_slice %5 {offsets = [0, 32], sizes = [16, 32], strides = [1, 1]} : vector<16x96xf32> to vector<16x32xf32>
    %11 = vector.shape_cast %10 : vector<16x32xf32> to vector<2x8x8x4xf32>
    %12 = tpu.transpose %11, [0, 2, 1, 3] : vector<2x8x8x4xf32> -> vector<2x8x8x4xf32>
    %13 = vector.shape_cast %12 : vector<2x8x8x4xf32> to vector<16x8x4xf32>
    %14 = vector.extract_strided_slice %5 {offsets = [0, 64], sizes = [16, 32], strides = [1, 1]} : vector<16x96xf32> to vector<16x32xf32>
    %15 = vector.shape_cast %14 : vector<16x32xf32> to vector<2x8x8x4xf32>
    %16 = tpu.transpose %15, [0, 2, 1, 3] : vector<2x8x8x4xf32> -> vector<2x8x8x4xf32>
    %17 = vector.shape_cast %16 : vector<2x8x8x4xf32> to vector<16x8x4xf32>
    "tpu.trace_start"() <{level = 10 : i32, message = "gqc,gkc->gqk"}> : () -> ()
    %cst_5 = arith.constant dense<0.000000e+00> : vector<16x8x8xf32>
    %18 = tpu.matmul %9, %13, %cst_5 {dimension_numbers = #tpu.dot_dimension_numbers<[2], [2], [1], [1], [0, 0, 0, 1, 1, 1], [0], [0]>} : vector<16x8x4xf32>, vector<16x8x4xf32>, vector<16x8x8xf32> -> vector<16x8x8xf32>
    "tpu.trace_stop"() : () -> ()
    %cst_6 = arith.constant 5.000000e-01 : f32
    %19 = vector.broadcast %cst_6 : f32 to vector<16x8x8xf32>
    %20 = arith.mulf %18, %19 : vector<16x8x8xf32>
    %cst_7 = arith.constant dense<0xFF800000> : vector<16x8xf32>
    %21 = vector.multi_reduction <maximumf>, %20, %cst_7 [2] : vector<16x8x8xf32> to vector<16x8xf32>
    %22 = vector.shape_cast %21 : vector<16x8xf32> to vector<16x8x1xf32>
    %23 = vector.broadcast %22 : vector<16x8x1xf32> to vector<16x8x8xf32>
    %24 = arith.subf %20, %23 : vector<16x8x8xf32>
    %25 = math.exp %24 : vector<16x8x8xf32>
    %cst_8 = arith.constant dense<0.000000e+00> : vector<16x8xf32>
    %26 = vector.multi_reduction <add>, %25, %cst_8 [2] : vector<16x8x8xf32> to vector<16x8xf32>
    %27 = vector.shape_cast %26 : vector<16x8xf32> to vector<16x8x1xf32>
    %28 = tpu.reciprocal %27 : vector<16x8x1xf32> -> vector<16x8x1xf32>
    %29 = vector.broadcast %28 : vector<16x8x1xf32> to vector<16x8x8xf32>
    %30 = arith.mulf %25, %29 : vector<16x8x8xf32>
    "tpu.trace_start"() <{level = 10 : i32, message = "gqk,gkc->gqc"}> : () -> ()
    %cst_9 = arith.constant dense<0.000000e+00> : vector<16x8x4xf32>
    %31 = tpu.matmul %30, %17, %cst_9 {dimension_numbers = #tpu.dot_dimension_numbers<[2], [1], [1], [2], [0, 0, 0, 1, 1, 2], [0], [0]>} : vector<16x8x8xf32>, vector<16x8x4xf32>, vector<16x8x4xf32> -> vector<16x8x4xf32>
    "tpu.trace_stop"() : () -> ()
    %32 = vector.shape_cast %31 : vector<16x8x4xf32> to vector<2x8x8x4xf32>
    %33 = tpu.transpose %32, [0, 2, 1, 3] : vector<2x8x8x4xf32> -> vector<2x8x8x4xf32>
    %34 = vector.shape_cast %33 : vector<2x8x8x4xf32> to vector<16x32xf32>
    %c0_10 = arith.constant 0 : index
    %c0_11 = arith.constant 0 : index
    %35 = vector.load %arg4[%c0_10, %c0_11] : memref<2x32xf32, #tpu.memory_space<vmem>>, vector<2x32xf32>
    %36 = arith.addf %0, %34 : vector<16x32xf32>
    %cst_12 = arith.constant dense<0.000000e+00> : vector<16xf32>
    %37 = vector.multi_reduction <add>, %36, %cst_12 [1] : vector<16x32xf32> to vector<16xf32>
    %38 = vector.shape_cast %37 : vector<16xf32> to vector<16x1xf32>
    %cst_13 = arith.constant 3.200000e+01 : f32
    %39 = vector.broadcast %cst_13 : f32 to vector<16x1xf32>
    %40 = arith.divf %38, %39 : vector<16x1xf32>
    %41 = vector.broadcast %40 : vector<16x1xf32> to vector<16x32xf32>
    %42 = arith.subf %36, %41 : vector<16x32xf32>
    %43 = arith.mulf %42, %42 : vector<16x32xf32>
    %cst_14 = arith.constant dense<0.000000e+00> : vector<16xf32>
    %44 = vector.multi_reduction <add>, %43, %cst_14 [1] : vector<16x32xf32> to vector<16xf32>
    %45 = vector.shape_cast %44 : vector<16xf32> to vector<16x1xf32>
    %cst_15 = arith.constant 3.200000e+01 : f32
    %46 = vector.broadcast %cst_15 : f32 to vector<16x1xf32>
    %47 = arith.divf %45, %46 : vector<16x1xf32>
    %48 = vector.broadcast %40 : vector<16x1xf32> to vector<16x32xf32>
    %49 = arith.subf %36, %48 : vector<16x32xf32>
    %cst_16 = arith.constant 9.99999974E-6 : f32
    %50 = vector.broadcast %cst_16 : f32 to vector<16x1xf32>
    %51 = arith.addf %47, %50 : vector<16x1xf32>
    %52 = math.rsqrt %51 : vector<16x1xf32>
    %53 = vector.broadcast %52 : vector<16x1xf32> to vector<16x32xf32>
    %54 = arith.mulf %49, %53 : vector<16x32xf32>
    %55 = vector.extract_strided_slice %35 {offsets = [0, 0], sizes = [1, 32], strides = [1, 1]} : vector<2x32xf32> to vector<1x32xf32>
    %56 = vector.broadcast %55 : vector<1x32xf32> to vector<16x32xf32>
    %57 = arith.mulf %54, %56 : vector<16x32xf32>
    %58 = vector.extract_strided_slice %35 {offsets = [1, 0], sizes = [1, 32], strides = [1, 1]} : vector<2x32xf32> to vector<1x32xf32>
    %59 = vector.broadcast %58 : vector<1x32xf32> to vector<16x32xf32>
    %60 = arith.addf %57, %59 : vector<16x32xf32>
    %c0_17 = arith.constant 0 : index
    %c0_18 = arith.constant 0 : index
    %61 = vector.load %arg5[%c0_17, %c0_18] : memref<16x32xf32, #tpu.memory_space<vmem>>, vector<16x32xf32>
    tpu.vector_store %arg5[%c0_17, %c0_18], %60 {strides = array<i32>} : memref<16x32xf32, #tpu.memory_space<vmem>>, vector<16x32xf32>,
    return
  }
  func.func @transform_0(%arg0: i32) -> (i32, i32) {
    %c0_i32 = arith.constant 0 : i32
    %c0_i32_0 = arith.constant 0 : i32
    %c0_i32_1 = arith.constant 0 : i32
    return %c0_i32, %c0_i32_0 : i32, i32
  }
  func.func @transform_1(%arg0: i32) -> (i32, i32) {
    %c0_i32 = arith.constant 0 : i32
    %c0_i32_0 = arith.constant 0 : i32
    %c0_i32_1 = arith.constant 0 : i32
    return %c0_i32, %c0_i32_0 : i32, i32
  }
  func.func @transform_2(%arg0: i32) -> (i32, i32) {
    %c0_i32 = arith.constant 0 : i32
    %c0_i32_0 = arith.constant 0 : i32
    %c0_i32_1 = arith.constant 0 : i32
    return %c0_i32, %c0_i32_0 : i32, i32
  }
  func.func @transform_3(%arg0: i32) -> (i32, i32) {
    %c0_i32 = arith.constant 0 : i32
    %c0_i32_0 = arith.constant 0 : i32
    %c0_i32_1 = arith.constant 0 : i32
    return %c0_i32, %c0_i32_0 : i32, i32
  }
  func.func @transform_4(%arg0: i32) -> (i32, i32) {
    %c0_i32 = arith.constant 0 : i32
    %c0_i32_0 = arith.constant 0 : i32
    %c0_i32_1 = arith.constant 0 : i32
    return %c0_i32, %c0_i32_0 : i32, i32
  }
}

</mosaic_0001>

<llo_original>
// kernel: tpu_custom_call.1
$region0: #{tpu_custom_call.1}
  #allocation0 [shape = 'u32[]', space=smem, size = 0x4, offset = 0x4, fixed_abs, tag = 'smem constant byte address 0x4 - core index']
  #allocation1 [shape = 'u32[144,128]{1,0:T(1,128)}', space=vmem, size = 0x12000, scoped, tag = 'internal scratch']
  %s0 = inlined_call_operand.hbm [shape: f32[16,32], index: 0, kind: input, shape index: {}]
  %s1 = inlined_call_operand.hbm [shape: f32[32,96], index: 1, kind: input, shape index: {}]
  %s2 = inlined_call_operand.vmem [shape: f32[1,96], index: 2, kind: input, shape index: {}]
  %s3 = inlined_call_operand.vmem [shape: f32[2,32], index: 3, kind: input, shape index: {}]
  %s4 = inlined_call_operand.hbm [shape: f32[16,32], index: 4, kind: output, shape index: {}]
  %s5 = sld [smem:[#allocation0]]
  $region34: #{tpu_custom_call.1} parent=0
    _
  %s7 = ssub.s32 1, %s5
  %s8 = scalar_select 0, %s7, %s5
  $region1: #{tpu_custom_call.1} parent=0
    #allocation2 [shape = 'u8[8192]{0}', space=vmem, size = 0x2000, scoped, tag = 'input window, operand 0, single buffered']
    #allocation3 [shape = 's32[1]{0}', space=sflag, size = 0x4, scoped, tag = 'scoped memory for tpu_custom_call.1']
    #allocation4 [shape = 's32[1]{0}', space=sflag, size = 0x4, scoped, tag = 'scoped memory for tpu_custom_call.1']
    #allocation5 [shape = 'u8[16384]{0}', space=vmem, size = 0x4000, scoped, tag = 'input window, operand 1, single buffered']
    #allocation6 [shape = 's32[1]{0}', space=sflag, size = 0x4, scoped, tag = 'scoped memory for tpu_custom_call.1']
    #allocation7 [shape = 'u8[8192]{0}', space=vmem, size = 0x2000, scoped, tag = 'output window, operand 0, single buffered']
    %9 = vsyncpa [#allocation3], 0
    %10 = vsyncpa [#allocation6], 0
    %11 = vsyncpa [#allocation4], 0
    // Predicated region
    $region2: #{tpu_custom_call.1} parent=1 // pred_check
      _
    $region3: #{tpu_custom_call.1} parent=1 // pred_check_branch
      %13 = sbr.rel (0) target = $region5
    $region4: #{tpu_custom_call.1} parent=1 // pred_region
      %s15 = ssub.s32 256, 256
      %16 = vsyncadd [#allocation3], %s15
      %s17 = sshll.u32 [#allocation2], 4
      %s18 = int_to_ptr.vmem [resolvable:$true] %s17
      %23 = dma.hbm_to_vmem [thread:$0]  %s0, 256, %s18, [#allocation3], 128, 128, 8
    $region5: #{tpu_custom_call.1} parent=1 // pred_fallthru
      _
    // Predicated region
    $region6: #{tpu_custom_call.1} parent=1 // pred_check
      _
    $region7: #{tpu_custom_call.1} parent=1 // pred_check_branch
      %25 = sbr.rel (0) target = $region9
    $region8: #{tpu_custom_call.1} parent=1 // pred_region
      %s27 = ssub.s32 512, 512
      %28 = vsyncadd [#allocation6], %s27
      %s29 = sshll.u32 [#allocation5], 4
      %s30 = int_to_ptr.vmem [resolvable:$true] %s29
      %35 = dma.hbm_to_vmem [thread:$0]  %s1, 512, %s30, [#allocation6], 128, 128, 8
    $region9: #{tpu_custom_call.1} parent=1 // pred_fallthru
      _
    // Predicated region
    $region10: #{tpu_custom_call.1} parent=1 // pred_check
      _
    $region11: #{tpu_custom_call.1} parent=1 // pred_check_branch
      %37 = sbr.rel (0) target = $region13
    $region12: #{tpu_custom_call.1} parent=1 // pred_region
      _
    $region13: #{tpu_custom_call.1} parent=1 // pred_fallthru
      _
    // Predicated region
    $region14: #{tpu_custom_call.1} parent=1 // pred_check
      _
    $region15: #{tpu_custom_call.1} parent=1 // pred_check_branch
      %39 = sbr.rel (0) target = $region17
    $region16: #{tpu_custom_call.1} parent=1 // pred_region
      _
    $region17: #{tpu_custom_call.1} parent=1 // pred_fallthru
      _
    // Predicated region
    $region18: #{tpu_custom_call.1} parent=1 // pred_check
      _
    $region19: #{tpu_custom_call.1} parent=1 // pred_check_branch
      %41 = sbr.rel (0) target = $region21
    $region20: #{tpu_custom_call.1} parent=1 // pred_region
      %42 = dma.done [#allocation3], 256
    $region21: #{tpu_custom_call.1} parent=1 // pred_fallthru
      _
    // Predicated region
    $region22: #{tpu_custom_call.1} parent=1 // pred_check
      _
    $region23: #{tpu_custom_call.1} parent=1 // pred_check_branch
      %44 = sbr.rel (0) target = $region25
    $region24: #{tpu_custom_call.1} parent=1 // pred_region
      %45 = dma.done [#allocation6], 512
    $region25: #{tpu_custom_call.1} parent=1 // pred_fallthru
      _
    %v46 = vld [vmem:[#allocation2] sm:$0xff]
    %v47 = vld [vmem:[#allocation2 + $0x8] sm:$0xff]
    %v48 = vld [vmem:[#allocation5] sm:$0xff]
    %v49 = vld [vmem:[#allocation5 + $0x8] sm:$0xff]
    %v50 = vld [vmem:[#allocation5 + $0x10] sm:$0xff]
    %v51 = vld [vmem:[#allocation5 + $0x18] sm:$0xff]
    %v52 = vld [vmem:[%s2] sm:$0x1]
    %v54 = vlaneseq
    %v55 = vshrl.u32 %v54, 7
    %v56 = vsub.s32 0, %v55
    %v57 = vrot.slane %v52, %v56
    %vm59 = vcmask 261120
    %v61 = vsel %vm59, %v46, 0
    %v64 = vsel %vm59, %v47, 0
    %66 = vmatprep.subr.mxu0 0.0
    %67 = vmatpush1.msra.mxu0 %v48
    %68 = vmatprep.subr.mxu0 0.0
    %69 = vmatpush1.msra.mxu0 %v49
    %70 = vmatprep.subr.mxu0 0.0
    %71 = vmatpush1.msra.mxu0 %v50
    %72 = vmatprep.subr.mxu0 0.0
    %73 = vmatpush1.msra.mxu0 %v51
    %74 = vmatprep.subr.mxu0 0.0
    %75 = vmatpush1.msra.mxu0 0.0
    %76 = vmatprep.subr.mxu0 0.0
    %77 = vmatpush1.msra.mxu0 0.0
    %78 = vmatprep.subr.mxu0 0.0
    %79 = vmatpush1.msra.mxu0 0.0
    %80 = vmatprep.subr.mxu0 0.0
    %81 = vmatpush1.msra.mxu0 0.0
    %82 = vmatprep.subr.mxu0 0.0
    %83 = vmatpush1.msra.mxu0 0.0
    %84 = vmatprep.subr.mxu0 0.0
    %85 = vmatpush1.msra.mxu0 0.0
    %86 = vmatprep.subr.mxu0 0.0
    %87 = vmatpush1.msra.mxu0 0.0
    %88 = vmatprep.subr.mxu0 0.0
    %89 = vmatpush1.msra.mxu0 0.0
    %90 = vmatprep.subr.mxu0 0.0
    %91 = vmatpush1.msra.mxu0 0.0
    %92 = vmatprep.subr.mxu0 0.0
    %93 = vmatpush1.msra.mxu0 0.0
    %94 = vmatprep.subr.mxu0 0.0
    %95 = vmatpush1.msra.mxu0 0.0
    %96 = vmatprep.subr.mxu0 0.0
    %97 = vmatpush1.msra.mxu0 0.0
    %98 = vmatprep.subr.mxu0 0.0
    %99 = vmatpush1.msra.mxu0 0.0
    %100 = vmatprep.subr.mxu0 0.0
    %101 = vmatpush1.msra.mxu0 0.0
    %102 = vmatprep.subr.mxu0 0.0
    %103 = vmatpush1.msra.mxu0 0.0
    %104 = vmatprep.subr.mxu0 0.0
    %105 = vmatpush1.msra.mxu0 0.0
    %106 = vmatprep.subr.mxu0 0.0
    %107 = vmatpush1.msra.mxu0 0.0
    %108 = vmatprep.subr.mxu0 0.0
    %109 = vmatpush1.msra.mxu0 0.0
    %110 = vmatprep.subr.mxu0 0.0
    %111 = vmatpush1.msra.mxu0 0.0
    %112 = vmatprep.subr.mxu0 0.0
    %113 = vmatpush1.msra.mxu0 0.0
    %114 = vmatprep.subr.mxu0 0.0
    %115 = vmatpush1.msra.mxu0 0.0
    %116 = vmatprep.subr.mxu0 0.0
    %117 = vmatpush1.msra.mxu0 0.0
    %118 = vmatprep.subr.mxu0 0.0
    %119 = vmatpush1.msra.mxu0 0.0
    %120 = vmatprep.subr.mxu0 0.0
    %121 = vmatpush1.msra.mxu0 0.0
    %122 = vmatprep.subr.mxu0 0.0
    %123 = vmatpush1.msra.mxu0 0.0
    %124 = vmatprep.subr.mxu0 0.0
    %125 = vmatpush1.msra.mxu0 0.0
    %126 = vmatprep.subr.mxu0 0.0
    %127 = vmatpush1.msra.mxu0 0.0
    %128 = vmatprep.subr.mxu0 0.0
    %129 = vmatpush1.msra.mxu0 0.0
    %130 = vmatprep.mubr.f32.mxu0 0.0
    %131 = vmatmul.mubr.f32.gmra.mrb[0].mxu0 %v61
    %v132 = vpop.f32.mrb[0].mxu0
    %v133 = vadd.f32 %v57, %v132
    %v134 = vpop.f32.mrb[0].mxu0
    %135 = vmatprep.mubr.f32.mxu0 0.0
    %136 = vmatmul.mubr.f32.gmra.mrb[0].mxu0 %v64
    %v137 = vpop.f32.mrb[0].mxu0
    %v138 = vadd.f32 %v57, %v137
    %v139 = vpop.f32.mrb[0].mxu0
    %140 = vdwg.mxu0
    %143 = vrot.lane.b32.xlu0 %v133, 124
    %v144 = vpop.permute.xlu0 %143
    %145 = vrot.lane.b32.xlu0 %v138, 124
    %v146 = vpop.permute.xlu0 %145
    %149 = vrot.lane.b32.xlu0 %v133, 120
    %v150 = vpop.permute.xlu0 %149
    %151 = vrot.lane.b32.xlu0 %v138, 120
    %v152 = vpop.permute.xlu0 %151
    %155 = vrot.lane.b32.xlu0 %v133, 116
    %v156 = vpop.permute.xlu0 %155
    %157 = vrot.lane.b32.xlu0 %v138, 116
    %v158 = vpop.permute.xlu0 %157
    %161 = vrot.lane.b32.xlu0 %v133, 112
    %v162 = vpop.permute.xlu0 %161
    %163 = vrot.lane.b32.xlu0 %v138, 112
    %v164 = vpop.permute.xlu0 %163
    %167 = vrot.lane.b32.xlu0 %v133, 108
    %v168 = vpop.permute.xlu0 %167
    %169 = vrot.lane.b32.xlu0 %v138, 108
    %v170 = vpop.permute.xlu0 %169
    %173 = vrot.lane.b32.xlu0 %v133, 104
    %v174 = vpop.permute.xlu0 %173
    %175 = vrot.lane.b32.xlu0 %v138, 104
    %v176 = vpop.permute.xlu0 %175
    %179 = vrot.lane.b32.xlu0 %v133, 100
    %v180 = vpop.permute.xlu0 %179
    %181 = vrot.lane.b32.xlu0 %v138, 100
    %v182 = vpop.permute.xlu0 %181
    %v185 = vcombine.low %v133, %v150
    %v186 = vcombine.high %v133, %v150
    %v188 = vunpack.c.l.s4 1983009808
    %v189 = vunpack.c.0.s8 %v188
    %v190 = vlaneseq
    %v191 = vshrl.u32 %v190, 7
    %v192 = vsub.s32 %v189, %v191
    %v193 = vrot.slane %v185, %v192
    %v195 = vunpack.c.l.s4 1983009808
    %v196 = vunpack.c.0.s8 %v195
    %v197 = vlaneseq
    %v198 = vshrl.u32 %v197, 7
    %v199 = vsub.s32 %v196, %v198
    %v200 = vrot.slane %v186, %v199
    %v201 = vcombine.low %v144, %v156
    %v202 = vcombine.high %v144, %v156
    %v204 = vunpack.c.l.s4 1983009808
    %v205 = vunpack.c.0.s8 %v204
    %v206 = vlaneseq
    %v207 = vshrl.u32 %v206, 7
    %v208 = vsub.s32 %v205, %v207
    %v209 = vrot.slane %v201, %v208
    %v211 = vunpack.c.l.s4 1983009808
    %v212 = vunpack.c.0.s8 %v211
    %v213 = vlaneseq
    %v214 = vshrl.u32 %v213, 7
    %v215 = vsub.s32 %v212, %v214
    %v216 = vrot.slane %v202, %v215
    %v217 = vcombine.low %v162, %v174
    %v218 = vcombine.high %v162, %v174
    %v220 = vunpack.c.l.s4 1983009808
    %v221 = vunpack.c.0.s8 %v220
    %v222 = vlaneseq
    %v223 = vshrl.u32 %v222, 7
    %v224 = vsub.s32 %v221, %v223
    %v225 = vrot.slane %v217, %v224
    %v227 = vunpack.c.l.s4 1983009808
    %v228 = vunpack.c.0.s8 %v227
    %v229 = vlaneseq
    %v230 = vshrl.u32 %v229, 7
    %v231 = vsub.s32 %v228, %v230
    %v232 = vrot.slane %v218, %v231
    %v233 = vcombine.low %v168, %v180
    %v234 = vcombine.high %v168, %v180
    %v236 = vunpack.c.l.s4 1983009808
    %v237 = vunpack.c.0.s8 %v236
    %v238 = vlaneseq
    %v239 = vshrl.u32 %v238, 7
    %v240 = vsub.s32 %v237, %v239
    %v241 = vrot.slane %v233, %v240
    %v243 = vunpack.c.l.s4 1983009808
    %v244 = vunpack.c.0.s8 %v243
    %v245 = vlaneseq
    %v246 = vshrl.u32 %v245, 7
    %v247 = vsub.s32 %v244, %v246
    %v248 = vrot.slane %v234, %v247
    %v249 = vcombine.low %v193, %v209
    %v250 = vcombine.high %v193, %v209
    %v252 = vunpack.c.l.s4 1934713408
    %v253 = vunpack.c.0.s8 %v252
    %v254 = vlaneseq
    %v255 = vshrl.u32 %v254, 7
    %v256 = vsub.s32 %v253, %v255
    %v257 = vrot.slane %v249, %v256
    %v259 = vunpack.c.l.s4 1934713408
    %v260 = vunpack.c.0.s8 %v259
    %v261 = vlaneseq
    %v262 = vshrl.u32 %v261, 7
    %v263 = vsub.s32 %v260, %v262
    %v264 = vrot.slane %v250, %v263
    %v265 = vcombine.low %v200, %v216
    %v266 = vcombine.high %v200, %v216
    %v268 = vunpack.c.l.s4 1934713408
    %v269 = vunpack.c.0.s8 %v268
    %v270 = vlaneseq
    %v271 = vshrl.u32 %v270, 7
    %v272 = vsub.s32 %v269, %v271
    %v273 = vrot.slane %v265, %v272
    %v275 = vunpack.c.l.s4 1934713408
    %v276 = vunpack.c.0.s8 %v275
    %v277 = vlaneseq
    %v278 = vshrl.u32 %v277, 7
    %v279 = vsub.s32 %v276, %v278
    %v280 = vrot.slane %v266, %v279
    %v281 = vcombine.low %v225, %v241
    %v282 = vcombine.high %v225, %v241
    %v284 = vunpack.c.l.s4 1934713408
    %v285 = vunpack.c.0.s8 %v284
    %v286 = vlaneseq
    %v287 = vshrl.u32 %v286, 7
    %v288 = vsub.s32 %v285, %v287
    %v289 = vrot.slane %v281, %v288
    %v291 = vunpack.c.l.s4 1934713408
    %v292 = vunpack.c.0.s8 %v291
    %v293 = vlaneseq
    %v294 = vshrl.u32 %v293, 7
    %v295 = vsub.s32 %v292, %v294
    %v296 = vrot.slane %v282, %v295
    %v297 = vcombine.low %v232, %v248
    %v298 = vcombine.high %v232, %v248
    %v300 = vunpack.c.l.s4 1934713408
    %v301 = vunpack.c.0.s8 %v300
    %v302 = vlaneseq
    %v303 = vshrl.u32 %v302, 7
    %v304 = vsub.s32 %v301, %v303
    %v305 = vrot.slane %v297, %v304
    %v307 = vunpack.c.l.s4 1934713408
    %v308 = vunpack.c.0.s8 %v307
    %v309 = vlaneseq
    %v310 = vshrl.u32 %v309, 7
    %v311 = vsub.s32 %v308, %v310
    %v312 = vrot.slane %v298, %v311
    %v313 = vcombine.low %v257, %v289
    %v314 = vcombine.high %v257, %v289
    %v315 = vcombine.low %v264, %v296
    %v316 = vcombine.high %v264, %v296
    %v317 = vcombine.low %v273, %v305
    %v318 = vcombine.high %v273, %v305
    %v319 = vcombine.low %v280, %v312
    %v320 = vcombine.high %v280, %v312
    %v321 = vcombine.low %v138, %v152
    %v322 = vcombine.high %v138, %v152
    %v324 = vunpack.c.l.s4 1983009808
    %v325 = vunpack.c.0.s8 %v324
    %v326 = vlaneseq
    %v327 = vshrl.u32 %v326, 7
    %v328 = vsub.s32 %v325, %v327
    %v329 = vrot.slane %v321, %v328
    %v331 = vunpack.c.l.s4 1983009808
    %v332 = vunpack.c.0.s8 %v331
    %v333 = vlaneseq
    %v334 = vshrl.u32 %v333, 7
    %v335 = vsub.s32 %v332, %v334
    %v336 = vrot.slane %v322, %v335
    %v337 = vcombine.low %v146, %v158
    %v338 = vcombine.high %v146, %v158
    %v340 = vunpack.c.l.s4 1983009808
    %v341 = vunpack.c.0.s8 %v340
    %v342 = vlaneseq
    %v343 = vshrl.u32 %v342, 7
    %v344 = vsub.s32 %v341, %v343
    %v345 = vrot.slane %v337, %v344
    %v347 = vunpack.c.l.s4 1983009808
    %v348 = vunpack.c.0.s8 %v347
    %v349 = vlaneseq
    %v350 = vshrl.u32 %v349, 7
    %v351 = vsub.s32 %v348, %v350
    %v352 = vrot.slane %v338, %v351
    %v353 = vcombine.low %v164, %v176
    %v354 = vcombine.high %v164, %v176
    %v356 = vunpack.c.l.s4 1983009808
    %v357 = vunpack.c.0.s8 %v356
    %v358 = vlaneseq
    %v359 = vshrl.u32 %v358, 7
    %v360 = vsub.s32 %v357, %v359
    %v361 = vrot.slane %v353, %v360
    %v363 = vunpack.c.l.s4 1983009808
    %v364 = vunpack.c.0.s8 %v363
    %v365 = vlaneseq
    %v366 = vshrl.u32 %v365, 7
    %v367 = vsub.s32 %v364, %v366
    %v368 = vrot.slane %v354, %v367
    %v369 = vcombine.low %v170, %v182
    %v370 = vcombine.high %v170, %v182
    %v372 = vunpack.c.l.s4 1983009808
    %v373 = vunpack.c.0.s8 %v372
    %v374 = vlaneseq
    %v375 = vshrl.u32 %v374, 7
    %v376 = vsub.s32 %v373, %v375
    %v377 = vrot.slane %v369, %v376
    %v379 = vunpack.c.l.s4 1983009808
    %v380 = vunpack.c.0.s8 %v379
    %v381 = vlaneseq
    %v382 = vshrl.u32 %v381, 7
    %v383 = vsub.s32 %v380, %v382
    %v384 = vrot.slane %v370, %v383
    %v385 = vcombine.low %v329, %v345
    %v386 = vcombine.high %v329, %v345
    %v388 = vunpack.c.l.s4 1934713408
    %v389 = vunpack.c.0.s8 %v388
    %v390 = vlaneseq
    %v391 = vshrl.u32 %v390, 7
    %v392 = vsub.s32 %v389, %v391
    %v393 = vrot.slane %v385, %v392
    %v395 = vunpack.c.l.s4 1934713408
    %v396 = vunpack.c.0.s8 %v395
    %v397 = vlaneseq
    %v398 = vshrl.u32 %v397, 7
    %v399 = vsub.s32 %v396, %v398
    %v400 = vrot.slane %v386, %v399
    %v401 = vcombine.low %v336, %v352
    %v402 = vcombine.high %v336, %v352
    %v404 = vunpack.c.l.s4 1934713408
    %v405 = vunpack.c.0.s8 %v404
    %v406 = vlaneseq
    %v407 = vshrl.u32 %v406, 7
    %v408 = vsub.s32 %v405, %v407
    %v409 = vrot.slane %v401, %v408
    %v411 = vunpack.c.l.s4 1934713408
    %v412 = vunpack.c.0.s8 %v411
    %v413 = vlaneseq
    %v414 = vshrl.u32 %v413, 7
    %v415 = vsub.s32 %v412, %v414
    %v416 = vrot.slane %v402, %v415
    %v417 = vcombine.low %v361, %v377
    %v418 = vcombine.high %v361, %v377
    %v420 = vunpack.c.l.s4 1934713408
    %v421 = vunpack.c.0.s8 %v420
    %v422 = vlaneseq
    %v423 = vshrl.u32 %v422, 7
    %v424 = vsub.s32 %v421, %v423
    %v425 = vrot.slane %v417, %v424
    %v427 = vunpack.c.l.s4 1934713408
    %v428 = vunpack.c.0.s8 %v427
    %v429 = vlaneseq
    %v430 = vshrl.u32 %v429, 7
    %v431 = vsub.s32 %v428, %v430
    %v432 = vrot.slane %v418, %v431
    %v433 = vcombine.low %v368, %v384
    %v434 = vcombine.high %v368, %v384
    %v436 = vunpack.c.l.s4 1934713408
    %v437 = vunpack.c.0.s8 %v436
    %v438 = vlaneseq
    %v439 = vshrl.u32 %v438, 7
    %v440 = vsub.s32 %v437, %v439
    %v441 = vrot.slane %v433, %v440
    %v443 = vunpack.c.l.s4 1934713408
    %v444 = vunpack.c.0.s8 %v443
    %v445 = vlaneseq
    %v446 = vshrl.u32 %v445, 7
    %v447 = vsub.s32 %v444, %v446
    %v448 = vrot.slane %v434, %v447
    %v449 = vcombine.low %v393, %v425
    %v450 = vcombine.high %v393, %v425
    %v451 = vcombine.low %v400, %v432
    %v452 = vcombine.high %v400, %v432
    %v453 = vcombine.low %v409, %v441
    %v454 = vcombine.high %v409, %v441
    %v455 = vcombine.low %v416, %v448
    %v456 = vcombine.high %v416, %v448
    %v457 = vcombine.low %v313, %v315
    %v458 = vcombine.high %v313, %v315
    %v460 = vunpack.c.l.s4 1983009808
    %v461 = vunpack.c.0.s8 %v460
    %v462 = vlaneseq
    %v463 = vshrl.u32 %v462, 7
    %v464 = vsub.s32 %v461, %v463
    %v465 = vrot.slane %v457, %v464
    %v467 = vunpack.c.l.s4 1983009808
    %v468 = vunpack.c.0.s8 %v467
    %v469 = vlaneseq
    %v470 = vshrl.u32 %v469, 7
    %v471 = vsub.s32 %v468, %v470
    %v472 = vrot.slane %v458, %v471
    %v473 = vcombine.low %v314, %v316
    %v474 = vcombine.high %v314, %v316
    %v476 = vunpack.c.l.s4 1983009808
    %v477 = vunpack.c.0.s8 %v476
    %v478 = vlaneseq
    %v479 = vshrl.u32 %v478, 7
    %v480 = vsub.s32 %v477, %v479
    %v481 = vrot.slane %v473, %v480
    %v483 = vunpack.c.l.s4 1983009808
    %v484 = vunpack.c.0.s8 %v483
    %v485 = vlaneseq
    %v486 = vshrl.u32 %v485, 7
    %v487 = vsub.s32 %v484, %v486
    %v488 = vrot.slane %v474, %v487
    %v489 = vcombine.low %v317, %v319
    %v490 = vcombine.high %v317, %v319
    %v492 = vunpack.c.l.s4 1983009808
    %v493 = vunpack.c.0.s8 %v492
    %v494 = vlaneseq
    %v495 = vshrl.u32 %v494, 7
    %v496 = vsub.s32 %v493, %v495
    %v497 = vrot.slane %v489, %v496
    %v499 = vunpack.c.l.s4 1983009808
    %v500 = vunpack.c.0.s8 %v499
    %v501 = vlaneseq
    %v502 = vshrl.u32 %v501, 7
    %v503 = vsub.s32 %v500, %v502
    %v504 = vrot.slane %v490, %v503
    %v505 = vcombine.low %v318, %v320
    %v506 = vcombine.high %v318, %v320
    %v508 = vunpack.c.l.s4 1983009808
    %v509 = vunpack.c.0.s8 %v508
    %v510 = vlaneseq
    %v511 = vshrl.u32 %v510, 7
    %v512 = vsub.s32 %v509, %v511
    %v513 = vrot.slane %v505, %v512
    %v515 = vunpack.c.l.s4 1983009808
    %v516 = vunpack.c.0.s8 %v515
    %v517 = vlaneseq
    %v518 = vshrl.u32 %v517, 7
    %v519 = vsub.s32 %v516, %v518
    %v520 = vrot.slane %v506, %v519
    %v521 = vcombine.low %v465, %v481
    %v522 = vcombine.high %v465, %v481
    %v524 = vunpack.c.l.s4 1934713408
    %v525 = vunpack.c.0.s8 %v524
    %v526 = vlaneseq
    %v527 = vshrl.u32 %v526, 7
    %v528 = vsub.s32 %v525, %v527
    %v529 = vrot.slane %v521, %v528
    %v531 = vunpack.c.l.s4 1934713408
    %v532 = vunpack.c.0.s8 %v531
    %v533 = vlaneseq
    %v534 = vshrl.u32 %v533, 7
    %v535 = vsub.s32 %v532, %v534
    %v536 = vrot.slane %v522, %v535
    %v537 = vcombine.low %v472, %v488
    %v538 = vcombine.high %v472, %v488
    %v540 = vunpack.c.l.s4 1934713408
    %v541 = vunpack.c.0.s8 %v540
    %v542 = vlaneseq
    %v543 = vshrl.u32 %v542, 7
    %v544 = vsub.s32 %v541, %v543
    %v545 = vrot.slane %v537, %v544
    %v547 = vunpack.c.l.s4 1934713408
    %v548 = vunpack.c.0.s8 %v547
    %v549 = vlaneseq
    %v550 = vshrl.u32 %v549, 7
    %v551 = vsub.s32 %v548, %v550
    %v552 = vrot.slane %v538, %v551
    %v553 = vcombine.low %v497, %v513
    %v554 = vcombine.high %v497, %v513
    %v556 = vunpack.c.l.s4 1934713408
    %v557 = vunpack.c.0.s8 %v556
    %v558 = vlaneseq
    %v559 = vshrl.u32 %v558, 7
    %v560 = vsub.s32 %v557, %v559
    %v561 = vrot.slane %v553, %v560
    %v563 = vunpack.c.l.s4 1934713408
    %v564 = vunpack.c.0.s8 %v563
    %v565 = vlaneseq
    %v566 = vshrl.u32 %v565, 7
    %v567 = vsub.s32 %v564, %v566
    %v568 = vrot.slane %v554, %v567
    %v569 = vcombine.low %v504, %v520
    %v570 = vcombine.high %v504, %v520
    %v572 = vunpack.c.l.s4 1934713408
    %v573 = vunpack.c.0.s8 %v572
    %v574 = vlaneseq
    %v575 = vshrl.u32 %v574, 7
    %v576 = vsub.s32 %v573, %v575
    %v577 = vrot.slane %v569, %v576
    %v579 = vunpack.c.l.s4 1934713408
    %v580 = vunpack.c.0.s8 %v579
    %v581 = vlaneseq
    %v582 = vshrl.u32 %v581, 7
    %v583 = vsub.s32 %v580, %v582
    %v584 = vrot.slane %v570, %v583
    %v585 = vcombine.low %v529, %v561
    %v586 = vcombine.high %v529, %v561
    %v587 = vcombine.low %v536, %v568
    %v588 = vcombine.high %v536, %v568
    %v589 = vcombine.low %v545, %v577
    %v590 = vcombine.high %v545, %v577
    %v591 = vcombine.low %v552, %v584
    %v592 = vcombine.high %v552, %v584
    %v593 = vcombine.low %v449, %v451
    %v594 = vcombine.high %v449, %v451
    %v596 = vunpack.c.l.s4 1983009808
    %v597 = vunpack.c.0.s8 %v596
    %v598 = vlaneseq
    %v599 = vshrl.u32 %v598, 7
    %v600 = vsub.s32 %v597, %v599
    %v601 = vrot.slane %v593, %v600
    %v603 = vunpack.c.l.s4 1983009808
    %v604 = vunpack.c.0.s8 %v603
    %v605 = vlaneseq
    %v606 = vshrl.u32 %v605, 7
    %v607 = vsub.s32 %v604, %v606
    %v608 = vrot.slane %v594, %v607
    %v609 = vcombine.low %v450, %v452
    %v610 = vcombine.high %v450, %v452
    %v612 = vunpack.c.l.s4 1983009808
    %v613 = vunpack.c.0.s8 %v612
    %v614 = vlaneseq
    %v615 = vshrl.u32 %v614, 7
    %v616 = vsub.s32 %v613, %v615
    %v617 = vrot.slane %v609, %v616
    %v619 = vunpack.c.l.s4 1983009808
    %v620 = vunpack.c.0.s8 %v619
    %v621 = vlaneseq
    %v622 = vshrl.u32 %v621, 7
    %v623 = vsub.s32 %v620, %v622
    %v624 = vrot.slane %v610, %v623
    %v625 = vcombine.low %v453, %v455
    %v626 = vcombine.high %v453, %v455
    %v628 = vunpack.c.l.s4 1983009808
    %v629 = vunpack.c.0.s8 %v628
    %v630 = vlaneseq
    %v631 = vshrl.u32 %v630, 7
    %v632 = vsub.s32 %v629, %v631
    %v633 = vrot.slane %v625, %v632
    %v635 = vunpack.c.l.s4 1983009808
    %v636 = vunpack.c.0.s8 %v635
    %v637 = vlaneseq
    %v638 = vshrl.u32 %v637, 7
    %v639 = vsub.s32 %v636, %v638
    %v640 = vrot.slane %v626, %v639
    %v641 = vcombine.low %v454, %v456
    %v642 = vcombine.high %v454, %v456
    %v644 = vunpack.c.l.s4 1983009808
    %v645 = vunpack.c.0.s8 %v644
    %v646 = vlaneseq
    %v647 = vshrl.u32 %v646, 7
    %v648 = vsub.s32 %v645, %v647
    %v649 = vrot.slane %v641, %v648
    %v651 = vunpack.c.l.s4 1983009808
    %v652 = vunpack.c.0.s8 %v651
    %v653 = vlaneseq
    %v654 = vshrl.u32 %v653, 7
    %v655 = vsub.s32 %v652, %v654
    %v656 = vrot.slane %v642, %v655
    %v657 = vcombine.low %v601, %v617
    %v658 = vcombine.high %v601, %v617
    %v660 = vunpack.c.l.s4 1934713408
    %v661 = vunpack.c.0.s8 %v660
    %v662 = vlaneseq
    %v663 = vshrl.u32 %v662, 7
    %v664 = vsub.s32 %v661, %v663
    %v665 = vrot.slane %v657, %v664
    %v667 = vunpack.c.l.s4 1934713408
    %v668 = vunpack.c.0.s8 %v667
    %v669 = vlaneseq
    %v670 = vshrl.u32 %v669, 7
    %v671 = vsub.s32 %v668, %v670
    %v672 = vrot.slane %v658, %v671
    %v673 = vcombine.low %v608, %v624
    %v674 = vcombine.high %v608, %v624
    %v676 = vunpack.c.l.s4 1934713408
    %v677 = vunpack.c.0.s8 %v676
    %v678 = vlaneseq
    %v679 = vshrl.u32 %v678, 7
    %v680 = vsub.s32 %v677, %v679
    %v681 = vrot.slane %v673, %v680
    %v683 = vunpack.c.l.s4 1934713408
    %v684 = vunpack.c.0.s8 %v683
    %v685 = vlaneseq
    %v686 = vshrl.u32 %v685, 7
    %v687 = vsub.s32 %v684, %v686
    %v688 = vrot.slane %v674, %v687
    %v689 = vcombine.low %v633, %v649
    %v690 = vcombine.high %v633, %v649
    %v692 = vunpack.c.l.s4 1934713408
    %v693 = vunpack.c.0.s8 %v692
    %v694 = vlaneseq
    %v695 = vshrl.u32 %v694, 7
    %v696 = vsub.s32 %v693, %v695
    %v697 = vrot.slane %v689, %v696
    %v699 = vunpack.c.l.s4 1934713408
    %v700 = vunpack.c.0.s8 %v699
    %v701 = vlaneseq
    %v702 = vshrl.u32 %v701, 7
    %v703 = vsub.s32 %v700, %v702
    %v704 = vrot.slane %v690, %v703
    %v705 = vcombine.low %v640, %v656
    %v706 = vcombine.high %v640, %v656
    %v708 = vunpack.c.l.s4 1934713408
    %v709 = vunpack.c.0.s8 %v708
    %v710 = vlaneseq
    %v711 = vshrl.u32 %v710, 7
    %v712 = vsub.s32 %v709, %v711
    %v713 = vrot.slane %v705, %v712
    %v715 = vunpack.c.l.s4 1934713408
    %v716 = vunpack.c.0.s8 %v715
    %v717 = vlaneseq
    %v718 = vshrl.u32 %v717, 7
    %v719 = vsub.s32 %v716, %v718
    %v720 = vrot.slane %v706, %v719
    %v721 = vcombine.low %v665, %v697
    %v722 = vcombine.high %v665, %v697
    %v723 = vcombine.low %v672, %v704
    %v724 = vcombine.high %v672, %v704
    %v725 = vcombine.low %v681, %v713
    %v726 = vcombine.high %v681, %v713
    %v727 = vcombine.low %v688, %v720
    %v728 = vcombine.high %v688, %v720
    %729 = vrot.lane.b32.xlu0 %v133, 96
    %v730 = vpop.permute.xlu0 %729
    %731 = vrot.lane.b32.xlu0 %v138, 96
    %v732 = vpop.permute.xlu0 %731
    %733 = vrot.lane.b32.xlu0 %v144, 96
    %v734 = vpop.permute.xlu0 %733
    %735 = vrot.lane.b32.xlu0 %v146, 96
    %v736 = vpop.permute.xlu0 %735
    %737 = vrot.lane.b32.xlu0 %v150, 96
    %v738 = vpop.permute.xlu0 %737
    %739 = vrot.lane.b32.xlu0 %v152, 96
    %v740 = vpop.permute.xlu0 %739
    %741 = vrot.lane.b32.xlu0 %v156, 96
    %v742 = vpop.permute.xlu0 %741
    %743 = vrot.lane.b32.xlu0 %v158, 96
    %v744 = vpop.permute.xlu0 %743
    %745 = vrot.lane.b32.xlu0 %v162, 96
    %v746 = vpop.permute.xlu0 %745
    %747 = vrot.lane.b32.xlu0 %v164, 96
    %v748 = vpop.permute.xlu0 %747
    %749 = vrot.lane.b32.xlu0 %v168, 96
    %v750 = vpop.permute.xlu0 %749
    %751 = vrot.lane.b32.xlu0 %v170, 96
    %v752 = vpop.permute.xlu0 %751
    %753 = vrot.lane.b32.xlu0 %v174, 96
    %v754 = vpop.permute.xlu0 %753
    %755 = vrot.lane.b32.xlu0 %v176, 96
    %v756 = vpop.permute.xlu0 %755
    %757 = vrot.lane.b32.xlu0 %v180, 96
    %v758 = vpop.permute.xlu0 %757
    %759 = vrot.lane.b32.xlu0 %v182, 96
    %v760 = vpop.permute.xlu0 %759
    %v777 = vcombine.low %v730, %v738
    %v778 = vcombine.high %v730, %v738
    %v780 = vunpack.c.l.s4 1983009808
    %v781 = vunpack.c.0.s8 %v780
    %v782 = vlaneseq
    %v783 = vshrl.u32 %v782, 7
    %v784 = vsub.s32 %v781, %v783
    %v785 = vrot.slane %v777, %v784
    %v787 = vunpack.c.l.s4 1983009808
    %v788 = vunpack.c.0.s8 %v787
    %v789 = vlaneseq
    %v790 = vshrl.u32 %v789, 7
    %v791 = vsub.s32 %v788, %v790
    %v792 = vrot.slane %v778, %v791
    %v793 = vcombine.low %v734, %v742
    %v794 = vcombine.high %v734, %v742
    %v796 = vunpack.c.l.s4 1983009808
    %v797 = vunpack.c.0.s8 %v796
    %v798 = vlaneseq
    %v799 = vshrl.u32 %v798, 7
    %v800 = vsub.s32 %v797, %v799
    %v801 = vrot.slane %v793, %v800
    %v803 = vunpack.c.l.s4 1983009808
    %v804 = vunpack.c.0.s8 %v803
    %v805 = vlaneseq
    %v806 = vshrl.u32 %v805, 7
    %v807 = vsub.s32 %v804, %v806
    %v808 = vrot.slane %v794, %v807
    %v809 = vcombine.low %v746, %v754
    %v810 = vcombine.high %v746, %v754
    %v812 = vunpack.c.l.s4 1983009808
    %v813 = vunpack.c.0.s8 %v812
    %v814 = vlaneseq
    %v815 = vshrl.u32 %v814, 7
    %v816 = vsub.s32 %v813, %v815
    %v817 = vrot.slane %v809, %v816
    %v819 = vunpack.c.l.s4 1983009808
    %v820 = vunpack.c.0.s8 %v819
    %v821 = vlaneseq
    %v822 = vshrl.u32 %v821, 7
    %v823 = vsub.s32 %v820, %v822
    %v824 = vrot.slane %v810, %v823
    %v825 = vcombine.low %v750, %v758
    %v826 = vcombine.high %v750, %v758
    %v828 = vunpack.c.l.s4 1983009808
    %v829 = vunpack.c.0.s8 %v828
    %v830 = vlaneseq
    %v831 = vshrl.u32 %v830, 7
    %v832 = vsub.s32 %v829, %v831
    %v833 = vrot.slane %v825, %v832
    %v835 = vunpack.c.l.s4 1983009808
    %v836 = vunpack.c.0.s8 %v835
    %v837 = vlaneseq
    %v838 = vshrl.u32 %v837, 7
    %v839 = vsub.s32 %v836, %v838
    %v840 = vrot.slane %v826, %v839
    %v841 = vcombine.low %v785, %v801
    %v842 = vcombine.high %v785, %v801
    %v844 = vunpack.c.l.s4 1934713408
    %v845 = vunpack.c.0.s8 %v844
    %v846 = vlaneseq
    %v847 = vshrl.u32 %v846, 7
    %v848 = vsub.s32 %v845, %v847
    %v849 = vrot.slane %v841, %v848
    %v851 = vunpack.c.l.s4 1934713408
    %v852 = vunpack.c.0.s8 %v851
    %v853 = vlaneseq
    %v854 = vshrl.u32 %v853, 7
    %v855 = vsub.s32 %v852, %v854
    %v856 = vrot.slane %v842, %v855
    %v857 = vcombine.low %v792, %v808
    %v858 = vcombine.high %v792, %v808
    %v860 = vunpack.c.l.s4 1934713408
    %v861 = vunpack.c.0.s8 %v860
    %v862 = vlaneseq
    %v863 = vshrl.u32 %v862, 7
    %v864 = vsub.s32 %v861, %v863
    %v865 = vrot.slane %v857, %v864
    %v867 = vunpack.c.l.s4 1934713408
    %v868 = vunpack.c.0.s8 %v867
    %v869 = vlaneseq
    %v870 = vshrl.u32 %v869, 7
    %v871 = vsub.s32 %v868, %v870
    %v872 = vrot.slane %v858, %v871
    %v873 = vcombine.low %v817, %v833
    %v874 = vcombine.high %v817, %v833
    %v876 = vunpack.c.l.s4 1934713408
    %v877 = vunpack.c.0.s8 %v876
    %v878 = vlaneseq
    %v879 = vshrl.u32 %v878, 7
    %v880 = vsub.s32 %v877, %v879
    %v881 = vrot.slane %v873, %v880
    %v883 = vunpack.c.l.s4 1934713408
    %v884 = vunpack.c.0.s8 %v883
    %v885 = vlaneseq
    %v886 = vshrl.u32 %v885, 7
    %v887 = vsub.s32 %v884, %v886
    %v888 = vrot.slane %v874, %v887
    %v889 = vcombine.low %v824, %v840
    %v890 = vcombine.high %v824, %v840
    %v892 = vunpack.c.l.s4 1934713408
    %v893 = vunpack.c.0.s8 %v892
    %v894 = vlaneseq
    %v895 = vshrl.u32 %v894, 7
    %v896 = vsub.s32 %v893, %v895
    %v897 = vrot.slane %v889, %v896
    %v899 = vunpack.c.l.s4 1934713408
    %v900 = vunpack.c.0.s8 %v899
    %v901 = vlaneseq
    %v902 = vshrl.u32 %v901, 7
    %v903 = vsub.s32 %v900, %v902
    %v904 = vrot.slane %v890, %v903
    %v905 = vcombine.low %v849, %v881
    %v906 = vcombine.high %v849, %v881
    %v907 = vcombine.low %v856, %v888
    %v908 = vcombine.high %v856, %v888
    %v909 = vcombine.low %v865, %v897
    %v910 = vcombine.high %v865, %v897
    %v911 = vcombine.low %v872, %v904
    %v912 = vcombine.high %v872, %v904
    %v913 = vcombine.low %v732, %v740
    %v914 = vcombine.high %v732, %v740
    %v916 = vunpack.c.l.s4 1983009808
    %v917 = vunpack.c.0.s8 %v916
    %v918 = vlaneseq
    %v919 = vshrl.u32 %v918, 7
    %v920 = vsub.s32 %v917, %v919
    %v921 = vrot.slane %v913, %v920
    %v923 = vunpack.c.l.s4 1983009808
    %v924 = vunpack.c.0.s8 %v923
    %v925 = vlaneseq
    %v926 = vshrl.u32 %v925, 7
    %v927 = vsub.s32 %v924, %v926
    %v928 = vrot.slane %v914, %v927
    %v929 = vcombine.low %v736, %v744
    %v930 = vcombine.high %v736, %v744
    %v932 = vunpack.c.l.s4 1983009808
    %v933 = vunpack.c.0.s8 %v932
    %v934 = vlaneseq
    %v935 = vshrl.u32 %v934, 7
    %v936 = vsub.s32 %v933, %v935
    %v937 = vrot.slane %v929, %v936
    %v939 = vunpack.c.l.s4 1983009808
    %v940 = vunpack.c.0.s8 %v939
    %v941 = vlaneseq
    %v942 = vshrl.u32 %v941, 7
    %v943 = vsub.s32 %v940, %v942
    %v944 = vrot.slane %v930, %v943
    %v945 = vcombine.low %v748, %v756
    %v946 = vcombine.high %v748, %v756
    %v948 = vunpack.c.l.s4 1983009808
    %v949 = vunpack.c.0.s8 %v948
    %v950 = vlaneseq
    %v951 = vshrl.u32 %v950, 7
    %v952 = vsub.s32 %v949, %v951
    %v953 = vrot.slane %v945, %v952
    %v955 = vunpack.c.l.s4 1983009808
    %v956 = vunpack.c.0.s8 %v955
    %v957 = vlaneseq
    %v958 = vshrl.u32 %v957, 7
    %v959 = vsub.s32 %v956, %v958
    %v960 = vrot.slane %v946, %v959
    %v961 = vcombine.low %v752, %v760
    %v962 = vcombine.high %v752, %v760
    %v964 = vunpack.c.l.s4 1983009808
    %v965 = vunpack.c.0.s8 %v964
    %v966 = vlaneseq
    %v967 = vshrl.u32 %v966, 7
    %v968 = vsub.s32 %v965, %v967
    %v969 = vrot.slane %v961, %v968
    %v971 = vunpack.c.l.s4 1983009808
    %v972 = vunpack.c.0.s8 %v971
    %v973 = vlaneseq
    %v974 = vshrl.u32 %v973, 7
    %v975 = vsub.s32 %v972, %v974
    %v976 = vrot.slane %v962, %v975
    %v977 = vcombine.low %v921, %v937
    %v978 = vcombine.high %v921, %v937
    %v980 = vunpack.c.l.s4 1934713408
    %v981 = vunpack.c.0.s8 %v980
    %v982 = vlaneseq
    %v983 = vshrl.u32 %v982, 7
    %v984 = vsub.s32 %v981, %v983
    %v985 = vrot.slane %v977, %v984
    %v987 = vunpack.c.l.s4 1934713408
    %v988 = vunpack.c.0.s8 %v987
    %v989 = vlaneseq
    %v990 = vshrl.u32 %v989, 7
    %v991 = vsub.s32 %v988, %v990
    %v992 = vrot.slane %v978, %v991
    %v993 = vcombine.low %v928, %v944
    %v994 = vcombine.high %v928, %v944
    %v996 = vunpack.c.l.s4 1934713408
    %v997 = vunpack.c.0.s8 %v996
    %v998 = vlaneseq
    %v999 = vshrl.u32 %v998, 7
    %v1000 = vsub.s32 %v997, %v999
    %v1001 = vrot.slane %v993, %v1000
    %v1003 = vunpack.c.l.s4 1934713408
    %v1004 = vunpack.c.0.s8 %v1003
    %v1005 = vlaneseq
    %v1006 = vshrl.u32 %v1005, 7
    %v1007 = vsub.s32 %v1004, %v1006
    %v1008 = vrot.slane %v994, %v1007
    %v1009 = vcombine.low %v953, %v969
    %v1010 = vcombine.high %v953, %v969
    %v1012 = vunpack.c.l.s4 1934713408
    %v1013 = vunpack.c.0.s8 %v1012
    %v1014 = vlaneseq
    %v1015 = vshrl.u32 %v1014, 7
    %v1016 = vsub.s32 %v1013, %v1015
    %v1017 = vrot.slane %v1009, %v1016
    %v1019 = vunpack.c.l.s4 1934713408
    %v1020 = vunpack.c.0.s8 %v1019
    %v1021 = vlaneseq
    %v1022 = vshrl.u32 %v1021, 7
    %v1023 = vsub.s32 %v1020, %v1022
    %v1024 = vrot.slane %v1010, %v1023
    %v1025 = vcombine.low %v960, %v976
    %v1026 = vcombine.high %v960, %v976
    %v1028 = vunpack.c.l.s4 1934713408
    %v1029 = vunpack.c.0.s8 %v1028
    %v1030 = vlaneseq
    %v1031 = vshrl.u32 %v1030, 7
    %v1032 = vsub.s32 %v1029, %v1031
    %v1033 = vrot.slane %v1025, %v1032
    %v1035 = vunpack.c.l.s4 1934713408
    %v1036 = vunpack.c.0.s8 %v1035
    %v1037 = vlaneseq
    %v1038 = vshrl.u32 %v1037, 7
    %v1039 = vsub.s32 %v1036, %v1038
    %v1040 = vrot.slane %v1026, %v1039
    %v1041 = vcombine.low %v985, %v1017
    %v1042 = vcombine.high %v985, %v1017
    %v1043 = vcombine.low %v992, %v1024
    %v1044 = vcombine.high %v992, %v1024
    %v1045 = vcombine.low %v1001, %v1033
    %v1046 = vcombine.high %v1001, %v1033
    %v1047 = vcombine.low %v1008, %v1040
    %v1048 = vcombine.high %v1008, %v1040
    %v1049 = vcombine.low %v905, %v907
    %v1050 = vcombine.high %v905, %v907
    %v1052 = vunpack.c.l.s4 1983009808
    %v1053 = vunpack.c.0.s8 %v1052
    %v1054 = vlaneseq
    %v1055 = vshrl.u32 %v1054, 7
    %v1056 = vsub.s32 %v1053, %v1055
    %v1057 = vrot.slane %v1049, %v1056
    %v1059 = vunpack.c.l.s4 1983009808
    %v1060 = vunpack.c.0.s8 %v1059
    %v1061 = vlaneseq
    %v1062 = vshrl.u32 %v1061, 7
    %v1063 = vsub.s32 %v1060, %v1062
    %v1064 = vrot.slane %v1050, %v1063
    %v1065 = vcombine.low %v906, %v908
    %v1066 = vcombine.high %v906, %v908
    %v1068 = vunpack.c.l.s4 1983009808
    %v1069 = vunpack.c.0.s8 %v1068
    %v1070 = vlaneseq
    %v1071 = vshrl.u32 %v1070, 7
    %v1072 = vsub.s32 %v1069, %v1071
    %v1073 = vrot.slane %v1065, %v1072
    %v1075 = vunpack.c.l.s4 1983009808
    %v1076 = vunpack.c.0.s8 %v1075
    %v1077 = vlaneseq
    %v1078 = vshrl.u32 %v1077, 7
    %v1079 = vsub.s32 %v1076, %v1078
    %v1080 = vrot.slane %v1066, %v1079
    %v1081 = vcombine.low %v909, %v911
    %v1082 = vcombine.high %v909, %v911
    %v1084 = vunpack.c.l.s4 1983009808
    %v1085 = vunpack.c.0.s8 %v1084
    %v1086 = vlaneseq
    %v1087 = vshrl.u32 %v1086, 7
    %v1088 = vsub.s32 %v1085, %v1087
    %v1089 = vrot.slane %v1081, %v1088
    %v1091 = vunpack.c.l.s4 1983009808
    %v1092 = vunpack.c.0.s8 %v1091
    %v1093 = vlaneseq
    %v1094 = vshrl.u32 %v1093, 7
    %v1095 = vsub.s32 %v1092, %v1094
    %v1096 = vrot.slane %v1082, %v1095
    %v1097 = vcombine.low %v910, %v912
    %v1098 = vcombine.high %v910, %v912
    %v1100 = vunpack.c.l.s4 1983009808
    %v1101 = vunpack.c.0.s8 %v1100
    %v1102 = vlaneseq
    %v1103 = vshrl.u32 %v1102, 7
    %v1104 = vsub.s32 %v1101, %v1103
    %v1105 = vrot.slane %v1097, %v1104
    %v1107 = vunpack.c.l.s4 1983009808
    %v1108 = vunpack.c.0.s8 %v1107
    %v1109 = vlaneseq
    %v1110 = vshrl.u32 %v1109, 7
    %v1111 = vsub.s32 %v1108, %v1110
    %v1112 = vrot.slane %v1098, %v1111
    %v1113 = vcombine.low %v1057, %v1073
    %v1114 = vcombine.high %v1057, %v1073
    %v1116 = vunpack.c.l.s4 1934713408
    %v1117 = vunpack.c.0.s8 %v1116
    %v1118 = vlaneseq
    %v1119 = vshrl.u32 %v1118, 7
    %v1120 = vsub.s32 %v1117, %v1119
    %v1121 = vrot.slane %v1113, %v1120
    %v1123 = vunpack.c.l.s4 1934713408
    %v1124 = vunpack.c.0.s8 %v1123
    %v1125 = vlaneseq
    %v1126 = vshrl.u32 %v1125, 7
    %v1127 = vsub.s32 %v1124, %v1126
    %v1128 = vrot.slane %v1114, %v1127
    %v1129 = vcombine.low %v1064, %v1080
    %v1130 = vcombine.high %v1064, %v1080
    %v1132 = vunpack.c.l.s4 1934713408
    %v1133 = vunpack.c.0.s8 %v1132
    %v1134 = vlaneseq
    %v1135 = vshrl.u32 %v1134, 7
    %v1136 = vsub.s32 %v1133, %v1135
    %v1137 = vrot.slane %v1129, %v1136
    %v1139 = vunpack.c.l.s4 1934713408
    %v1140 = vunpack.c.0.s8 %v1139
    %v1141 = vlaneseq
    %v1142 = vshrl.u32 %v1141, 7
    %v1143 = vsub.s32 %v1140, %v1142
    %v1144 = vrot.slane %v1130, %v1143
    %v1145 = vcombine.low %v1089, %v1105
    %v1146 = vcombine.high %v1089, %v1105
    %v1148 = vunpack.c.l.s4 1934713408
    %v1149 = vunpack.c.0.s8 %v1148
    %v1150 = vlaneseq
    %v1151 = vshrl.u32 %v1150, 7
    %v1152 = vsub.s32 %v1149, %v1151
    %v1153 = vrot.slane %v1145, %v1152
    %v1155 = vunpack.c.l.s4 1934713408
    %v1156 = vunpack.c.0.s8 %v1155
    %v1157 = vlaneseq
    %v1158 = vshrl.u32 %v1157, 7
    %v1159 = vsub.s32 %v1156, %v1158
    %v1160 = vrot.slane %v1146, %v1159
    %v1161 = vcombine.low %v1096, %v1112
    %v1162 = vcombine.high %v1096, %v1112
    %v1164 = vunpack.c.l.s4 1934713408
    %v1165 = vunpack.c.0.s8 %v1164
    %v1166 = vlaneseq
    %v1167 = vshrl.u32 %v1166, 7
    %v1168 = vsub.s32 %v1165, %v1167
    %v1169 = vrot.slane %v1161, %v1168
    %v1171 = vunpack.c.l.s4 1934713408
    %v1172 = vunpack.c.0.s8 %v1171
    %v1173 = vlaneseq
    %v1174 = vshrl.u32 %v1173, 7
    %v1175 = vsub.s32 %v1172, %v1174
    %v1176 = vrot.slane %v1162, %v1175
    %v1177 = vcombine.low %v1121, %v1153
    %v1178 = vcombine.high %v1121, %v1153
    %v1179 = vcombine.low %v1128, %v1160
    %v1180 = vcombine.high %v1128, %v1160
    %v1181 = vcombine.low %v1137, %v1169
    %v1182 = vcombine.high %v1137, %v1169
    %v1183 = vcombine.low %v1144, %v1176
    %v1184 = vcombine.high %v1144, %v1176
    %v1185 = vcombine.low %v1041, %v1043
    %v1186 = vcombine.high %v1041, %v1043
    %v1188 = vunpack.c.l.s4 1983009808
    %v1189 = vunpack.c.0.s8 %v1188
    %v1190 = vlaneseq
    %v1191 = vshrl.u32 %v1190, 7
    %v1192 = vsub.s32 %v1189, %v1191
    %v1193 = vrot.slane %v1185, %v1192
    %v1195 = vunpack.c.l.s4 1983009808
    %v1196 = vunpack.c.0.s8 %v1195
    %v1197 = vlaneseq
    %v1198 = vshrl.u32 %v1197, 7
    %v1199 = vsub.s32 %v1196, %v1198
    %v1200 = vrot.slane %v1186, %v1199
    %v1201 = vcombine.low %v1042, %v1044
    %v1202 = vcombine.high %v1042, %v1044
    %v1204 = vunpack.c.l.s4 1983009808
    %v1205 = vunpack.c.0.s8 %v1204
    %v1206 = vlaneseq
    %v1207 = vshrl.u32 %v1206, 7
    %v1208 = vsub.s32 %v1205, %v1207
    %v1209 = vrot.slane %v1201, %v1208
    %v1211 = vunpack.c.l.s4 1983009808
    %v1212 = vunpack.c.0.s8 %v1211
    %v1213 = vlaneseq
    %v1214 = vshrl.u32 %v1213, 7
    %v1215 = vsub.s32 %v1212, %v1214
    %v1216 = vrot.slane %v1202, %v1215
    %v1217 = vcombine.low %v1045, %v1047
    %v1218 = vcombine.high %v1045, %v1047
    %v1220 = vunpack.c.l.s4 1983009808
    %v1221 = vunpack.c.0.s8 %v1220
    %v1222 = vlaneseq
    %v1223 = vshrl.u32 %v1222, 7
    %v1224 = vsub.s32 %v1221, %v1223
    %v1225 = vrot.slane %v1217, %v1224
    %v1227 = vunpack.c.l.s4 1983009808
    %v1228 = vunpack.c.0.s8 %v1227
    %v1229 = vlaneseq
    %v1230 = vshrl.u32 %v1229, 7
    %v1231 = vsub.s32 %v1228, %v1230
    %v1232 = vrot.slane %v1218, %v1231
    %v1233 = vcombine.low %v1046, %v1048
    %v1234 = vcombine.high %v1046, %v1048
    %v1236 = vunpack.c.l.s4 1983009808
    %v1237 = vunpack.c.0.s8 %v1236
    %v1238 = vlaneseq
    %v1239 = vshrl.u32 %v1238, 7
    %v1240 = vsub.s32 %v1237, %v1239
    %v1241 = vrot.slane %v1233, %v1240
    %v1243 = vunpack.c.l.s4 1983009808
    %v1244 = vunpack.c.0.s8 %v1243
    %v1245 = vlaneseq
    %v1246 = vshrl.u32 %v1245, 7
    %v1247 = vsub.s32 %v1244, %v1246
    %v1248 = vrot.slane %v1234, %v1247
    %v1249 = vcombine.low %v1193, %v1209
    %v1250 = vcombine.high %v1193, %v1209
    %v1252 = vunpack.c.l.s4 1934713408
    %v1253 = vunpack.c.0.s8 %v1252
    %v1254 = vlaneseq
    %v1255 = vshrl.u32 %v1254, 7
    %v1256 = vsub.s32 %v1253, %v1255
    %v1257 = vrot.slane %v1249, %v1256
    %v1259 = vunpack.c.l.s4 1934713408
    %v1260 = vunpack.c.0.s8 %v1259
    %v1261 = vlaneseq
    %v1262 = vshrl.u32 %v1261, 7
    %v1263 = vsub.s32 %v1260, %v1262
    %v1264 = vrot.slane %v1250, %v1263
    %v1265 = vcombine.low %v1200, %v1216
    %v1266 = vcombine.high %v1200, %v1216
    %v1268 = vunpack.c.l.s4 1934713408
    %v1269 = vunpack.c.0.s8 %v1268
    %v1270 = vlaneseq
    %v1271 = vshrl.u32 %v1270, 7
    %v1272 = vsub.s32 %v1269, %v1271
    %v1273 = vrot.slane %v1265, %v1272
    %v1275 = vunpack.c.l.s4 1934713408
    %v1276 = vunpack.c.0.s8 %v1275
    %v1277 = vlaneseq
    %v1278 = vshrl.u32 %v1277, 7
    %v1279 = vsub.s32 %v1276, %v1278
    %v1280 = vrot.slane %v1266, %v1279
    %v1281 = vcombine.low %v1225, %v1241
    %v1282 = vcombine.high %v1225, %v1241
    %v1284 = vunpack.c.l.s4 1934713408
    %v1285 = vunpack.c.0.s8 %v1284
    %v1286 = vlaneseq
    %v1287 = vshrl.u32 %v1286, 7
    %v1288 = vsub.s32 %v1285, %v1287
    %v1289 = vrot.slane %v1281, %v1288
    %v1291 = vunpack.c.l.s4 1934713408
    %v1292 = vunpack.c.0.s8 %v1291
    %v1293 = vlaneseq
    %v1294 = vshrl.u32 %v1293, 7
    %v1295 = vsub.s32 %v1292, %v1294
    %v1296 = vrot.slane %v1282, %v1295
    %v1297 = vcombine.low %v1232, %v1248
    %v1298 = vcombine.high %v1232, %v1248
    %v1300 = vunpack.c.l.s4 1934713408
    %v1301 = vunpack.c.0.s8 %v1300
    %v1302 = vlaneseq
    %v1303 = vshrl.u32 %v1302, 7
    %v1304 = vsub.s32 %v1301, %v1303
    %v1305 = vrot.slane %v1297, %v1304
    %v1307 = vunpack.c.l.s4 1934713408
    %v1308 = vunpack.c.0.s8 %v1307
    %v1309 = vlaneseq
    %v1310 = vshrl.u32 %v1309, 7
    %v1311 = vsub.s32 %v1308, %v1310
    %v1312 = vrot.slane %v1298, %v1311
    %v1313 = vcombine.low %v1257, %v1289
    %v1314 = vcombine.high %v1257, %v1289
    %v1315 = vcombine.low %v1264, %v1296
    %v1316 = vcombine.high %v1264, %v1296
    %v1317 = vcombine.low %v1273, %v1305
    %v1318 = vcombine.high %v1273, %v1305
    %v1319 = vcombine.low %v1280, %v1312
    %v1320 = vcombine.high %v1280, %v1312
    %1321 = vrot.lane.b32.xlu0 %v133, 64
    %v1322 = vpop.permute.xlu0 %1321
    %1323 = vrot.lane.b32.xlu0 %v138, 64
    %v1324 = vpop.permute.xlu0 %1323
    %1325 = vrot.lane.b32.xlu0 %v144, 64
    %v1326 = vpop.permute.xlu0 %1325
    %1327 = vrot.lane.b32.xlu0 %v146, 64
    %v1328 = vpop.permute.xlu0 %1327
    %1329 = vrot.lane.b32.xlu0 %v150, 64
    %v1330 = vpop.permute.xlu0 %1329
    %1331 = vrot.lane.b32.xlu0 %v152, 64
    %v1332 = vpop.permute.xlu0 %1331
    %1333 = vrot.lane.b32.xlu0 %v156, 64
    %v1334 = vpop.permute.xlu0 %1333
    %1335 = vrot.lane.b32.xlu0 %v158, 64
    %v1336 = vpop.permute.xlu0 %1335
    %1337 = vrot.lane.b32.xlu0 %v162, 64
    %v1338 = vpop.permute.xlu0 %1337
    %1339 = vrot.lane.b32.xlu0 %v164, 64
    %v1340 = vpop.permute.xlu0 %1339
    %1341 = vrot.lane.b32.xlu0 %v168, 64
    %v1342 = vpop.permute.xlu0 %1341
    %1343 = vrot.lane.b32.xlu0 %v170, 64
    %v1344 = vpop.permute.xlu0 %1343
    %1345 = vrot.lane.b32.xlu0 %v174, 64
    %v1346 = vpop.permute.xlu0 %1345
    %1347 = vrot.lane.b32.xlu0 %v176, 64
    %v1348 = vpop.permute.xlu0 %1347
    %1349 = vrot.lane.b32.xlu0 %v180, 64
    %v1350 = vpop.permute.xlu0 %1349
    %1351 = vrot.lane.b32.xlu0 %v182, 64
    %v1352 = vpop.permute.xlu0 %1351
    %v1369 = vcombine.low %v1322, %v1330
    %v1370 = vcombine.high %v1322, %v1330
    %v1372 = vunpack.c.l.s4 1983009808
    %v1373 = vunpack.c.0.s8 %v1372
    %v1374 = vlaneseq
    %v1375 = vshrl.u32 %v1374, 7
    %v1376 = vsub.s32 %v1373, %v1375
    %v1377 = vrot.slane %v1369, %v1376
    %v1379 = vunpack.c.l.s4 1983009808
    %v1380 = vunpack.c.0.s8 %v1379
    %v1381 = vlaneseq
    %v1382 = vshrl.u32 %v1381, 7
    %v1383 = vsub.s32 %v1380, %v1382
    %v1384 = vrot.slane %v1370, %v1383
    %v1385 = vcombine.low %v1326, %v1334
    %v1386 = vcombine.high %v1326, %v1334
    %v1388 = vunpack.c.l.s4 1983009808
    %v1389 = vunpack.c.0.s8 %v1388
    %v1390 = vlaneseq
    %v1391 = vshrl.u32 %v1390, 7
    %v1392 = vsub.s32 %v1389, %v1391
    %v1393 = vrot.slane %v1385, %v1392
    %v1395 = vunpack.c.l.s4 1983009808
    %v1396 = vunpack.c.0.s8 %v1395
    %v1397 = vlaneseq
    %v1398 = vshrl.u32 %v1397, 7
    %v1399 = vsub.s32 %v1396, %v1398
    %v1400 = vrot.slane %v1386, %v1399
    %v1401 = vcombine.low %v1338, %v1346
    %v1402 = vcombine.high %v1338, %v1346
    %v1404 = vunpack.c.l.s4 1983009808
    %v1405 = vunpack.c.0.s8 %v1404
    %v1406 = vlaneseq
    %v1407 = vshrl.u32 %v1406, 7
    %v1408 = vsub.s32 %v1405, %v1407
    %v1409 = vrot.slane %v1401, %v1408
    %v1411 = vunpack.c.l.s4 1983009808
    %v1412 = vunpack.c.0.s8 %v1411
    %v1413 = vlaneseq
    %v1414 = vshrl.u32 %v1413, 7
    %v1415 = vsub.s32 %v1412, %v1414
    %v1416 = vrot.slane %v1402, %v1415
    %v1417 = vcombine.low %v1342, %v1350
    %v1418 = vcombine.high %v1342, %v1350
    %v1420 = vunpack.c.l.s4 1983009808
    %v1421 = vunpack.c.0.s8 %v1420
    %v1422 = vlaneseq
    %v1423 = vshrl.u32 %v1422, 7
    %v1424 = vsub.s32 %v1421, %v1423
    %v1425 = vrot.slane %v1417, %v1424
    %v1427 = vunpack.c.l.s4 1983009808
    %v1428 = vunpack.c.0.s8 %v1427
    %v1429 = vlaneseq
    %v1430 = vshrl.u32 %v1429, 7
    %v1431 = vsub.s32 %v1428, %v1430
    %v1432 = vrot.slane %v1418, %v1431
    %v1433 = vcombine.low %v1377, %v1393
    %v1434 = vcombine.high %v1377, %v1393
    %v1436 = vunpack.c.l.s4 1934713408
    %v1437 = vunpack.c.0.s8 %v1436
    %v1438 = vlaneseq
    %v1439 = vshrl.u32 %v1438, 7
    %v1440 = vsub.s32 %v1437, %v1439
    %v1441 = vrot.slane %v1433, %v1440
    %v1443 = vunpack.c.l.s4 1934713408
    %v1444 = vunpack.c.0.s8 %v1443
    %v1445 = vlaneseq
    %v1446 = vshrl.u32 %v1445, 7
    %v1447 = vsub.s32 %v1444, %v1446
    %v1448 = vrot.slane %v1434, %v1447
    %v1449 = vcombine.low %v1384, %v1400
    %v1450 = vcombine.high %v1384, %v1400
    %v1452 = vunpack.c.l.s4 1934713408
    %v1453 = vunpack.c.0.s8 %v1452
    %v1454 = vlaneseq
    %v1455 = vshrl.u32 %v1454, 7
    %v1456 = vsub.s32 %v1453, %v1455
    %v1457 = vrot.slane %v1449, %v1456
    %v1459 = vunpack.c.l.s4 1934713408
    %v1460 = vunpack.c.0.s8 %v1459
    %v1461 = vlaneseq
    %v1462 = vshrl.u32 %v1461, 7
    %v1463 = vsub.s32 %v1460, %v1462
    %v1464 = vrot.slane %v1450, %v1463
    %v1465 = vcombine.low %v1409, %v1425
    %v1466 = vcombine.high %v1409, %v1425
    %v1468 = vunpack.c.l.s4 1934713408
    %v1469 = vunpack.c.0.s8 %v1468
    %v1470 = vlaneseq
    %v1471 = vshrl.u32 %v1470, 7
    %v1472 = vsub.s32 %v1469, %v1471
    %v1473 = vrot.slane %v1465, %v1472
    %v1475 = vunpack.c.l.s4 1934713408
    %v1476 = vunpack.c.0.s8 %v1475
    %v1477 = vlaneseq
    %v1478 = vshrl.u32 %v1477, 7
    %v1479 = vsub.s32 %v1476, %v1478
    %v1480 = vrot.slane %v1466, %v1479
    %v1481 = vcombine.low %v1416, %v1432
    %v1482 = vcombine.high %v1416, %v1432
    %v1484 = vunpack.c.l.s4 1934713408
    %v1485 = vunpack.c.0.s8 %v1484
    %v1486 = vlaneseq
    %v1487 = vshrl.u32 %v1486, 7
    %v1488 = vsub.s32 %v1485, %v1487
    %v1489 = vrot.slane %v1481, %v1488
    %v1491 = vunpack.c.l.s4 1934713408
    %v1492 = vunpack.c.0.s8 %v1491
    %v1493 = vlaneseq
    %v1494 = vshrl.u32 %v1493, 7
    %v1495 = vsub.s32 %v1492, %v1494
    %v1496 = vrot.slane %v1482, %v1495
    %v1497 = vcombine.low %v1441, %v1473
    %v1498 = vcombine.high %v1441, %v1473
    %v1499 = vcombine.low %v1448, %v1480
    %v1500 = vcombine.high %v1448, %v1480
    %v1501 = vcombine.low %v1457, %v1489
    %v1502 = vcombine.high %v1457, %v1489
    %v1503 = vcombine.low %v1464, %v1496
    %v1504 = vcombine.high %v1464, %v1496
    %v1505 = vcombine.low %v1324, %v1332
    %v1506 = vcombine.high %v1324, %v1332
    %v1508 = vunpack.c.l.s4 1983009808
    %v1509 = vunpack.c.0.s8 %v1508
    %v1510 = vlaneseq
    %v1511 = vshrl.u32 %v1510, 7
    %v1512 = vsub.s32 %v1509, %v1511
    %v1513 = vrot.slane %v1505, %v1512
    %v1515 = vunpack.c.l.s4 1983009808
    %v1516 = vunpack.c.0.s8 %v1515
    %v1517 = vlaneseq
    %v1518 = vshrl.u32 %v1517, 7
    %v1519 = vsub.s32 %v1516, %v1518
    %v1520 = vrot.slane %v1506, %v1519
    %v1521 = vcombine.low %v1328, %v1336
    %v1522 = vcombine.high %v1328, %v1336
    %v1524 = vunpack.c.l.s4 1983009808
    %v1525 = vunpack.c.0.s8 %v1524
    %v1526 = vlaneseq
    %v1527 = vshrl.u32 %v1526, 7
    %v1528 = vsub.s32 %v1525, %v1527
    %v1529 = vrot.slane %v1521, %v1528
    %v1531 = vunpack.c.l.s4 1983009808
    %v1532 = vunpack.c.0.s8 %v1531
    %v1533 = vlaneseq
    %v1534 = vshrl.u32 %v1533, 7
    %v1535 = vsub.s32 %v1532, %v1534
    %v1536 = vrot.slane %v1522, %v1535
    %v1537 = vcombine.low %v1340, %v1348
    %v1538 = vcombine.high %v1340, %v1348
    %v1540 = vunpack.c.l.s4 1983009808
    %v1541 = vunpack.c.0.s8 %v1540
    %v1542 = vlaneseq
    %v1543 = vshrl.u32 %v1542, 7
    %v1544 = vsub.s32 %v1541, %v1543
    %v1545 = vrot.slane %v1537, %v1544
    %v1547 = vunpack.c.l.s4 1983009808
    %v1548 = vunpack.c.0.s8 %v1547
    %v1549 = vlaneseq
    %v1550 = vshrl.u32 %v1549, 7
    %v1551 = vsub.s32 %v1548, %v1550
    %v1552 = vrot.slane %v1538, %v1551
    %v1553 = vcombine.low %v1344, %v1352
    %v1554 = vcombine.high %v1344, %v1352
    %v1556 = vunpack.c.l.s4 1983009808
    %v1557 = vunpack.c.0.s8 %v1556
    %v1558 = vlaneseq
    %v1559 = vshrl.u32 %v1558, 7
    %v1560 = vsub.s32 %v1557, %v1559
    %v1561 = vrot.slane %v1553, %v1560
    %v1563 = vunpack.c.l.s4 1983009808
    %v1564 = vunpack.c.0.s8 %v1563
    %v1565 = vlaneseq
    %v1566 = vshrl.u32 %v1565, 7
    %v1567 = vsub.s32 %v1564, %v1566
    %v1568 = vrot.slane %v1554, %v1567
    %v1569 = vcombine.low %v1513, %v1529
    %v1570 = vcombine.high %v1513, %v1529
    %v1572 = vunpack.c.l.s4 1934713408
    %v1573 = vunpack.c.0.s8 %v1572
    %v1574 = vlaneseq
    %v1575 = vshrl.u32 %v1574, 7
    %v1576 = vsub.s32 %v1573, %v1575
    %v1577 = vrot.slane %v1569, %v1576
    %v1579 = vunpack.c.l.s4 1934713408
    %v1580 = vunpack.c.0.s8 %v1579
    %v1581 = vlaneseq
    %v1582 = vshrl.u32 %v1581, 7
    %v1583 = vsub.s32 %v1580, %v1582
    %v1584 = vrot.slane %v1570, %v1583
    %v1585 = vcombine.low %v1520, %v1536
    %v1586 = vcombine.high %v1520, %v1536
    %v1588 = vunpack.c.l.s4 1934713408
    %v1589 = vunpack.c.0.s8 %v1588
    %v1590 = vlaneseq
    %v1591 = vshrl.u32 %v1590, 7
    %v1592 = vsub.s32 %v1589, %v1591
    %v1593 = vrot.slane %v1585, %v1592
    %v1595 = vunpack.c.l.s4 1934713408
    %v1596 = vunpack.c.0.s8 %v1595
    %v1597 = vlaneseq
    %v1598 = vshrl.u32 %v1597, 7
    %v1599 = vsub.s32 %v1596, %v1598
    %v1600 = vrot.slane %v1586, %v1599
    %v1601 = vcombine.low %v1545, %v1561
    %v1602 = vcombine.high %v1545, %v1561
    %v1604 = vunpack.c.l.s4 1934713408
    %v1605 = vunpack.c.0.s8 %v1604
    %v1606 = vlaneseq
    %v1607 = vshrl.u32 %v1606, 7
    %v1608 = vsub.s32 %v1605, %v1607
    %v1609 = vrot.slane %v1601, %v1608
    %v1611 = vunpack.c.l.s4 1934713408
    %v1612 = vunpack.c.0.s8 %v1611
    %v1613 = vlaneseq
    %v1614 = vshrl.u32 %v1613, 7
    %v1615 = vsub.s32 %v1612, %v1614
    %v1616 = vrot.slane %v1602, %v1615
    %v1617 = vcombine.low %v1552, %v1568
    %v1618 = vcombine.high %v1552, %v1568
    %v1620 = vunpack.c.l.s4 1934713408
    %v1621 = vunpack.c.0.s8 %v1620
    %v1622 = vlaneseq
    %v1623 = vshrl.u32 %v1622, 7
    %v1624 = vsub.s32 %v1621, %v1623
    %v1625 = vrot.slane %v1617, %v1624
    %v1627 = vunpack.c.l.s4 1934713408
    %v1628 = vunpack.c.0.s8 %v1627
    %v1629 = vlaneseq
    %v1630 = vshrl.u32 %v1629, 7
    %v1631 = vsub.s32 %v1628, %v1630
    %v1632 = vrot.slane %v1618, %v1631
    %v1633 = vcombine.low %v1577, %v1609
    %v1634 = vcombine.high %v1577, %v1609
    %v1635 = vcombine.low %v1584, %v1616
    %v1636 = vcombine.high %v1584, %v1616
    %v1637 = vcombine.low %v1593, %v1625
    %v1638 = vcombine.high %v1593, %v1625
    %v1639 = vcombine.low %v1600, %v1632
    %v1640 = vcombine.high %v1600, %v1632
    %v1641 = vcombine.low %v1497, %v1499
    %v1642 = vcombine.high %v1497, %v1499
    %v1644 = vunpack.c.l.s4 1983009808
    %v1645 = vunpack.c.0.s8 %v1644
    %v1646 = vlaneseq
    %v1647 = vshrl.u32 %v1646, 7
    %v1648 = vsub.s32 %v1645, %v1647
    %v1649 = vrot.slane %v1641, %v1648
    %v1651 = vunpack.c.l.s4 1983009808
    %v1652 = vunpack.c.0.s8 %v1651
    %v1653 = vlaneseq
    %v1654 = vshrl.u32 %v1653, 7
    %v1655 = vsub.s32 %v1652, %v1654
    %v1656 = vrot.slane %v1642, %v1655
    %v1657 = vcombine.low %v1498, %v1500
    %v1658 = vcombine.high %v1498, %v1500
    %v1660 = vunpack.c.l.s4 1983009808
    %v1661 = vunpack.c.0.s8 %v1660
    %v1662 = vlaneseq
    %v1663 = vshrl.u32 %v1662, 7
    %v1664 = vsub.s32 %v1661, %v1663
    %v1665 = vrot.slane %v1657, %v1664
    %v1667 = vunpack.c.l.s4 1983009808
    %v1668 = vunpack.c.0.s8 %v1667
    %v1669 = vlaneseq
    %v1670 = vshrl.u32 %v1669, 7
    %v1671 = vsub.s32 %v1668, %v1670
    %v1672 = vrot.slane %v1658, %v1671
    %v1673 = vcombine.low %v1501, %v1503
    %v1674 = vcombine.high %v1501, %v1503
    %v1676 = vunpack.c.l.s4 1983009808
    %v1677 = vunpack.c.0.s8 %v1676
    %v1678 = vlaneseq
    %v1679 = vshrl.u32 %v1678, 7
    %v1680 = vsub.s32 %v1677, %v1679
    %v1681 = vrot.slane %v1673, %v1680
    %v1683 = vunpack.c.l.s4 1983009808
    %v1684 = vunpack.c.0.s8 %v1683
    %v1685 = vlaneseq
    %v1686 = vshrl.u32 %v1685, 7
    %v1687 = vsub.s32 %v1684, %v1686
    %v1688 = vrot.slane %v1674, %v1687
    %v1689 = vcombine.low %v1502, %v1504
    %v1690 = vcombine.high %v1502, %v1504
    %v1692 = vunpack.c.l.s4 1983009808
    %v1693 = vunpack.c.0.s8 %v1692
    %v1694 = vlaneseq
    %v1695 = vshrl.u32 %v1694, 7
    %v1696 = vsub.s32 %v1693, %v1695
    %v1697 = vrot.slane %v1689, %v1696
    %v1699 = vunpack.c.l.s4 1983009808
    %v1700 = vunpack.c.0.s8 %v1699
    %v1701 = vlaneseq
    %v1702 = vshrl.u32 %v1701, 7
    %v1703 = vsub.s32 %v1700, %v1702
    %v1704 = vrot.slane %v1690, %v1703
    %v1705 = vcombine.low %v1649, %v1665
    %v1706 = vcombine.high %v1649, %v1665
    %v1708 = vunpack.c.l.s4 1934713408
    %v1709 = vunpack.c.0.s8 %v1708
    %v1710 = vlaneseq
    %v1711 = vshrl.u32 %v1710, 7
    %v1712 = vsub.s32 %v1709, %v1711
    %v1713 = vrot.slane %v1705, %v1712
    %v1715 = vunpack.c.l.s4 1934713408
    %v1716 = vunpack.c.0.s8 %v1715
    %v1717 = vlaneseq
    %v1718 = vshrl.u32 %v1717, 7
    %v1719 = vsub.s32 %v1716, %v1718
    %v1720 = vrot.slane %v1706, %v1719
    %v1721 = vcombine.low %v1656, %v1672
    %v1722 = vcombine.high %v1656, %v1672
    %v1724 = vunpack.c.l.s4 1934713408
    %v1725 = vunpack.c.0.s8 %v1724
    %v1726 = vlaneseq
    %v1727 = vshrl.u32 %v1726, 7
    %v1728 = vsub.s32 %v1725, %v1727
    %v1729 = vrot.slane %v1721, %v1728
    %v1731 = vunpack.c.l.s4 1934713408
    %v1732 = vunpack.c.0.s8 %v1731
    %v1733 = vlaneseq
    %v1734 = vshrl.u32 %v1733, 7
    %v1735 = vsub.s32 %v1732, %v1734
    %v1736 = vrot.slane %v1722, %v1735
    %v1737 = vcombine.low %v1681, %v1697
    %v1738 = vcombine.high %v1681, %v1697
    %v1740 = vunpack.c.l.s4 1934713408
    %v1741 = vunpack.c.0.s8 %v1740
    %v1742 = vlaneseq
    %v1743 = vshrl.u32 %v1742, 7
    %v1744 = vsub.s32 %v1741, %v1743
    %v1745 = vrot.slane %v1737, %v1744
    %v1747 = vunpack.c.l.s4 1934713408
    %v1748 = vunpack.c.0.s8 %v1747
    %v1749 = vlaneseq
    %v1750 = vshrl.u32 %v1749, 7
    %v1751 = vsub.s32 %v1748, %v1750
    %v1752 = vrot.slane %v1738, %v1751
    %v1753 = vcombine.low %v1688, %v1704
    %v1754 = vcombine.high %v1688, %v1704
    %v1756 = vunpack.c.l.s4 1934713408
    %v1757 = vunpack.c.0.s8 %v1756
    %v1758 = vlaneseq
    %v1759 = vshrl.u32 %v1758, 7
    %v1760 = vsub.s32 %v1757, %v1759
    %v1761 = vrot.slane %v1753, %v1760
    %v1763 = vunpack.c.l.s4 1934713408
    %v1764 = vunpack.c.0.s8 %v1763
    %v1765 = vlaneseq
    %v1766 = vshrl.u32 %v1765, 7
    %v1767 = vsub.s32 %v1764, %v1766
    %v1768 = vrot.slane %v1754, %v1767
    %v1769 = vcombine.low %v1713, %v1745
    %v1770 = vcombine.high %v1713, %v1745
    %v1771 = vcombine.low %v1720, %v1752
    %v1772 = vcombine.high %v1720, %v1752
    %v1773 = vcombine.low %v1729, %v1761
    %v1774 = vcombine.high %v1729, %v1761
    %v1775 = vcombine.low %v1736, %v1768
    %v1776 = vcombine.high %v1736, %v1768
    %v1777 = vcombine.low %v1633, %v1635
    %v1778 = vcombine.high %v1633, %v1635
    %v1780 = vunpack.c.l.s4 1983009808
    %v1781 = vunpack.c.0.s8 %v1780
    %v1782 = vlaneseq
    %v1783 = vshrl.u32 %v1782, 7
    %v1784 = vsub.s32 %v1781, %v1783
    %v1785 = vrot.slane %v1777, %v1784
    %v1787 = vunpack.c.l.s4 1983009808
    %v1788 = vunpack.c.0.s8 %v1787
    %v1789 = vlaneseq
    %v1790 = vshrl.u32 %v1789, 7
    %v1791 = vsub.s32 %v1788, %v1790
    %v1792 = vrot.slane %v1778, %v1791
    %v1793 = vcombine.low %v1634, %v1636
    %v1794 = vcombine.high %v1634, %v1636
    %v1796 = vunpack.c.l.s4 1983009808
    %v1797 = vunpack.c.0.s8 %v1796
    %v1798 = vlaneseq
    %v1799 = vshrl.u32 %v1798, 7
    %v1800 = vsub.s32 %v1797, %v1799
    %v1801 = vrot.slane %v1793, %v1800
    %v1803 = vunpack.c.l.s4 1983009808
    %v1804 = vunpack.c.0.s8 %v1803
    %v1805 = vlaneseq
    %v1806 = vshrl.u32 %v1805, 7
    %v1807 = vsub.s32 %v1804, %v1806
    %v1808 = vrot.slane %v1794, %v1807
    %v1809 = vcombine.low %v1637, %v1639
    %v1810 = vcombine.high %v1637, %v1639
    %v1812 = vunpack.c.l.s4 1983009808
    %v1813 = vunpack.c.0.s8 %v1812
    %v1814 = vlaneseq
    %v1815 = vshrl.u32 %v1814, 7
    %v1816 = vsub.s32 %v1813, %v1815
    %v1817 = vrot.slane %v1809, %v1816
    %v1819 = vunpack.c.l.s4 1983009808
    %v1820 = vunpack.c.0.s8 %v1819
    %v1821 = vlaneseq
    %v1822 = vshrl.u32 %v1821, 7
    %v1823 = vsub.s32 %v1820, %v1822
    %v1824 = vrot.slane %v1810, %v1823
    %v1825 = vcombine.low %v1638, %v1640
    %v1826 = vcombine.high %v1638, %v1640
    %v1828 = vunpack.c.l.s4 1983009808
    %v1829 = vunpack.c.0.s8 %v1828
    %v1830 = vlaneseq
    %v1831 = vshrl.u32 %v1830, 7
    %v1832 = vsub.s32 %v1829, %v1831
    %v1833 = vrot.slane %v1825, %v1832
    %v1835 = vunpack.c.l.s4 1983009808
    %v1836 = vunpack.c.0.s8 %v1835
    %v1837 = vlaneseq
    %v1838 = vshrl.u32 %v1837, 7
    %v1839 = vsub.s32 %v1836, %v1838
    %v1840 = vrot.slane %v1826, %v1839
    %v1841 = vcombine.low %v1785, %v1801
    %v1842 = vcombine.high %v1785, %v1801
    %v1844 = vunpack.c.l.s4 1934713408
    %v1845 = vunpack.c.0.s8 %v1844
    %v1846 = vlaneseq
    %v1847 = vshrl.u32 %v1846, 7
    %v1848 = vsub.s32 %v1845, %v1847
    %v1849 = vrot.slane %v1841, %v1848
    %v1851 = vunpack.c.l.s4 1934713408
    %v1852 = vunpack.c.0.s8 %v1851
    %v1853 = vlaneseq
    %v1854 = vshrl.u32 %v1853, 7
    %v1855 = vsub.s32 %v1852, %v1854
    %v1856 = vrot.slane %v1842, %v1855
    %v1857 = vcombine.low %v1792, %v1808
    %v1858 = vcombine.high %v1792, %v1808
    %v1860 = vunpack.c.l.s4 1934713408
    %v1861 = vunpack.c.0.s8 %v1860
    %v1862 = vlaneseq
    %v1863 = vshrl.u32 %v1862, 7
    %v1864 = vsub.s32 %v1861, %v1863
    %v1865 = vrot.slane %v1857, %v1864
    %v1867 = vunpack.c.l.s4 1934713408
    %v1868 = vunpack.c.0.s8 %v1867
    %v1869 = vlaneseq
    %v1870 = vshrl.u32 %v1869, 7
    %v1871 = vsub.s32 %v1868, %v1870
    %v1872 = vrot.slane %v1858, %v1871
    %v1873 = vcombine.low %v1817, %v1833
    %v1874 = vcombine.high %v1817, %v1833
    %v1876 = vunpack.c.l.s4 1934713408
    %v1877 = vunpack.c.0.s8 %v1876
    %v1878 = vlaneseq
    %v1879 = vshrl.u32 %v1878, 7
    %v1880 = vsub.s32 %v1877, %v1879
    %v1881 = vrot.slane %v1873, %v1880
    %v1883 = vunpack.c.l.s4 1934713408
    %v1884 = vunpack.c.0.s8 %v1883
    %v1885 = vlaneseq
    %v1886 = vshrl.u32 %v1885, 7
    %v1887 = vsub.s32 %v1884, %v1886
    %v1888 = vrot.slane %v1874, %v1887
    %v1889 = vcombine.low %v1824, %v1840
    %v1890 = vcombine.high %v1824, %v1840
    %v1892 = vunpack.c.l.s4 1934713408
    %v1893 = vunpack.c.0.s8 %v1892
    %v1894 = vlaneseq
    %v1895 = vshrl.u32 %v1894, 7
    %v1896 = vsub.s32 %v1893, %v1895
    %v1897 = vrot.slane %v1889, %v1896
    %v1899 = vunpack.c.l.s4 1934713408
    %v1900 = vunpack.c.0.s8 %v1899
    %v1901 = vlaneseq
    %v1902 = vshrl.u32 %v1901, 7
    %v1903 = vsub.s32 %v1900, %v1902
    %v1904 = vrot.slane %v1890, %v1903
    %v1905 = vcombine.low %v1849, %v1881
    %v1906 = vcombine.high %v1849, %v1881
    %v1907 = vcombine.low %v1856, %v1888
    %v1908 = vcombine.high %v1856, %v1888
    %v1909 = vcombine.low %v1865, %v1897
    %v1910 = vcombine.high %v1865, %v1897
    %v1911 = vcombine.low %v1872, %v1904
    %v1912 = vcombine.high %v1872, %v1904
    %vm1913 = vcmask 31744
    %v1915 = vsel %vm1913, %v585, 0
    %v1918 = vsel %vm1913, %v1177, 0
    %1920 = vmatprep.subr.mxu0 0.0
    %1921 = vmatpush1.xpose.msra.mxu0 %v1918
    %1922 = vmatprep.subr.mxu0 0.0
    %1923 = vmatpush1.xpose.msra.mxu0 0.0
    %1924 = vmatprep.subr.mxu0 0.0
    %1925 = vmatpush1.xpose.msra.mxu0 0.0
    %1926 = vmatprep.subr.mxu0 0.0
    %1927 = vmatpush1.xpose.msra.mxu0 0.0
    %1928 = vmatprep.subr.mxu0 0.0
    %1929 = vmatpush1.xpose.msra.mxu0 0.0
    %1930 = vmatprep.subr.mxu0 0.0
    %1931 = vmatpush1.xpose.msra.mxu0 0.0
    %1932 = vmatprep.subr.mxu0 0.0
    %1933 = vmatpush1.xpose.msra.mxu0 0.0
    %1934 = vmatprep.subr.mxu0 0.0
    %1935 = vmatpush1.xpose.msra.mxu0 0.0
    %1936 = vmatprep.subr.mxu0 0.0
    %1937 = vmatpush1.xpose.msra.mxu0 0.0
    %1938 = vmatprep.subr.mxu0 0.0
    %1939 = vmatpush1.xpose.msra.mxu0 0.0
    %1940 = vmatprep.subr.mxu0 0.0
    %1941 = vmatpush1.xpose.msra.mxu0 0.0
    %1942 = vmatprep.subr.mxu0 0.0
    %1943 = vmatpush1.xpose.msra.mxu0 0.0
    %1944 = vmatprep.subr.mxu0 0.0
    %1945 = vmatpush1.xpose.msra.mxu0 0.0
    %1946 = vmatprep.subr.mxu0 0.0
    %1947 = vmatpush1.xpose.msra.mxu0 0.0
    %1948 = vmatprep.subr.mxu0 0.0
    %1949 = vmatpush1.xpose.msra.mxu0 0.0
    %1950 = vmatprep.subr.mxu0 0.0
    %1951 = vmatpush1.xpose.msra.mxu0 0.0
    %1952 = vmatprep.subr.mxu0 0.0
    %1953 = vmatpush1.xpose.msra.mxu0 0.0
    %1954 = vmatprep.subr.mxu0 0.0
    %1955 = vmatpush1.xpose.msra.mxu0 0.0
    %1956 = vmatprep.subr.mxu0 0.0
    %1957 = vmatpush1.xpose.msra.mxu0 0.0
    %1958 = vmatprep.subr.mxu0 0.0
    %1959 = vmatpush1.xpose.msra.mxu0 0.0
    %1960 = vmatprep.subr.mxu0 0.0
    %1961 = vmatpush1.xpose.msra.mxu0 0.0
    %1962 = vmatprep.subr.mxu0 0.0
    %1963 = vmatpush1.xpose.msra.mxu0 0.0
    %1964 = vmatprep.subr.mxu0 0.0
    %1965 = vmatpush1.xpose.msra.mxu0 0.0
    %1966 = vmatprep.subr.mxu0 0.0
    %1967 = vmatpush1.xpose.msra.mxu0 0.0
    %1968 = vmatprep.subr.mxu0 0.0
    %1969 = vmatpush1.xpose.msra.mxu0 0.0
    %1970 = vmatprep.subr.mxu0 0.0
    %1971 = vmatpush1.xpose.msra.mxu0 0.0
    %1972 = vmatprep.subr.mxu0 0.0
    %1973 = vmatpush1.xpose.msra.mxu0 0.0
    %1974 = vmatprep.subr.mxu0 0.0
    %1975 = vmatpush1.xpose.msra.mxu0 0.0
    %1976 = vmatprep.subr.mxu0 0.0
    %1977 = vmatpush1.xpose.msra.mxu0 0.0
    %1978 = vmatprep.subr.mxu0 0.0
    %1979 = vmatpush1.xpose.msra.mxu0 0.0
    %1980 = vmatprep.subr.mxu0 0.0
    %1981 = vmatpush1.xpose.msra.mxu0 0.0
    %1982 = vmatprep.subr.mxu0 0.0
    %1983 = vmatpush1.xpose.msra.mxu0 0.0
    %1984 = vmatprep.mubr.f32.mxu0 0.0
    %1985 = vmatmul.mubr.f32.gmra.mrb[0].mxu0 %v1915
    %v1986 = vpop.f32.mrb[0].mxu0
    %v1987 = vadd.f32 0.0, %v1986
    %v1988 = vpop.f32.mrb[0].mxu0
    %1989 = vdwg.mxu0
    %v1991 = vsel %vm1913, %v586, 0
    %v1994 = vsel %vm1913, %v1178, 0
    %1996 = vmatprep.subr.mxu0 0.0
    %1997 = vmatpush1.xpose.msra.mxu0 %v1994
    %1998 = vmatprep.subr.mxu0 0.0
    %1999 = vmatpush1.xpose.msra.mxu0 0.0
    %2000 = vmatprep.subr.mxu0 0.0
    %2001 = vmatpush1.xpose.msra.mxu0 0.0
    %2002 = vmatprep.subr.mxu0 0.0
    %2003 = vmatpush1.xpose.msra.mxu0 0.0
    %2004 = vmatprep.subr.mxu0 0.0
    %2005 = vmatpush1.xpose.msra.mxu0 0.0
    %2006 = vmatprep.subr.mxu0 0.0
    %2007 = vmatpush1.xpose.msra.mxu0 0.0
    %2008 = vmatprep.subr.mxu0 0.0
    %2009 = vmatpush1.xpose.msra.mxu0 0.0
    %2010 = vmatprep.subr.mxu0 0.0
    %2011 = vmatpush1.xpose.msra.mxu0 0.0
    %2012 = vmatprep.subr.mxu0 0.0
    %2013 = vmatpush1.xpose.msra.mxu0 0.0
    %2014 = vmatprep.subr.mxu0 0.0
    %2015 = vmatpush1.xpose.msra.mxu0 0.0
    %2016 = vmatprep.subr.mxu0 0.0
    %2017 = vmatpush1.xpose.msra.mxu0 0.0
    %2018 = vmatprep.subr.mxu0 0.0
    %2019 = vmatpush1.xpose.msra.mxu0 0.0
    %2020 = vmatprep.subr.mxu0 0.0
    %2021 = vmatpush1.xpose.msra.mxu0 0.0
    %2022 = vmatprep.subr.mxu0 0.0
    %2023 = vmatpush1.xpose.msra.mxu0 0.0
    %2024 = vmatprep.subr.mxu0 0.0
    %2025 = vmatpush1.xpose.msra.mxu0 0.0
    %2026 = vmatprep.subr.mxu0 0.0
    %2027 = vmatpush1.xpose.msra.mxu0 0.0
    %2028 = vmatprep.subr.mxu0 0.0
    %2029 = vmatpush1.xpose.msra.mxu0 0.0
    %2030 = vmatprep.subr.mxu0 0.0
    %2031 = vmatpush1.xpose.msra.mxu0 0.0
    %2032 = vmatprep.subr.mxu0 0.0
    %2033 = vmatpush1.xpose.msra.mxu0 0.0
    %2034 = vmatprep.subr.mxu0 0.0
    %2035 = vmatpush1.xpose.msra.mxu0 0.0
    %2036 = vmatprep.subr.mxu0 0.0
    %2037 = vmatpush1.xpose.msra.mxu0 0.0
    %2038 = vmatprep.subr.mxu0 0.0
    %2039 = vmatpush1.xpose.msra.mxu0 0.0
    %2040 = vmatprep.subr.mxu0 0.0
    %2041 = vmatpush1.xpose.msra.mxu0 0.0
    %2042 = vmatprep.subr.mxu0 0.0
    %2043 = vmatpush1.xpose.msra.mxu0 0.0
    %2044 = vmatprep.subr.mxu0 0.0
    %2045 = vmatpush1.xpose.msra.mxu0 0.0
    %2046 = vmatprep.subr.mxu0 0.0
    %2047 = vmatpush1.xpose.msra.mxu0 0.0
    %2048 = vmatprep.subr.mxu0 0.0
    %2049 = vmatpush1.xpose.msra.mxu0 0.0
    %2050 = vmatprep.subr.mxu0 0.0
    %2051 = vmatpush1.xpose.msra.mxu0 0.0
    %2052 = vmatprep.subr.mxu0 0.0
    %2053 = vmatpush1.xpose.msra.mxu0 0.0
    %2054 = vmatprep.subr.mxu0 0.0
    %2055 = vmatpush1.xpose.msra.mxu0 0.0
    %2056 = vmatprep.subr.mxu0 0.0
    %2057 = vmatpush1.xpose.msra.mxu0 0.0
    %2058 = vmatprep.subr.mxu0 0.0
    %2059 = vmatpush1.xpose.msra.mxu0 0.0
    %2060 = vmatprep.mubr.f32.mxu0 0.0
    %2061 = vmatmul.mubr.f32.gmra.mrb[0].mxu0 %v1991
    %v2062 = vpop.f32.mrb[0].mxu0
    %v2063 = vadd.f32 0.0, %v2062
    %v2064 = vpop.f32.mrb[0].mxu0
    %2065 = vdwg.mxu0
    %v2067 = vsel %vm1913, %v587, 0
    %v2070 = vsel %vm1913, %v1179, 0
    %2072 = vmatprep.subr.mxu0 0.0
    %2073 = vmatpush1.xpose.msra.mxu0 %v2070
    %2074 = vmatprep.subr.mxu0 0.0
    %2075 = vmatpush1.xpose.msra.mxu0 0.0
    %2076 = vmatprep.subr.mxu0 0.0
    %2077 = vmatpush1.xpose.msra.mxu0 0.0
    %2078 = vmatprep.subr.mxu0 0.0
    %2079 = vmatpush1.xpose.msra.mxu0 0.0
    %2080 = vmatprep.subr.mxu0 0.0
    %2081 = vmatpush1.xpose.msra.mxu0 0.0
    %2082 = vmatprep.subr.mxu0 0.0
    %2083 = vmatpush1.xpose.msra.mxu0 0.0
    %2084 = vmatprep.subr.mxu0 0.0
    %2085 = vmatpush1.xpose.msra.mxu0 0.0
    %2086 = vmatprep.subr.mxu0 0.0
    %2087 = vmatpush1.xpose.msra.mxu0 0.0
    %2088 = vmatprep.subr.mxu0 0.0
    %2089 = vmatpush1.xpose.msra.mxu0 0.0
    %2090 = vmatprep.subr.mxu0 0.0
    %2091 = vmatpush1.xpose.msra.mxu0 0.0
    %2092 = vmatprep.subr.mxu0 0.0
    %2093 = vmatpush1.xpose.msra.mxu0 0.0
    %2094 = vmatprep.subr.mxu0 0.0
    %2095 = vmatpush1.xpose.msra.mxu0 0.0
    %2096 = vmatprep.subr.mxu0 0.0
    %2097 = vmatpush1.xpose.msra.mxu0 0.0
    %2098 = vmatprep.subr.mxu0 0.0
    %2099 = vmatpush1.xpose.msra.mxu0 0.0
    %2100 = vmatprep.subr.mxu0 0.0
    %2101 = vmatpush1.xpose.msra.mxu0 0.0
    %2102 = vmatprep.subr.mxu0 0.0
    %2103 = vmatpush1.xpose.msra.mxu0 0.0
    %2104 = vmatprep.subr.mxu0 0.0
    %2105 = vmatpush1.xpose.msra.mxu0 0.0
    %2106 = vmatprep.subr.mxu0 0.0
    %2107 = vmatpush1.xpose.msra.mxu0 0.0
    %2108 = vmatprep.subr.mxu0 0.0
    %2109 = vmatpush1.xpose.msra.mxu0 0.0
    %2110 = vmatprep.subr.mxu0 0.0
    %2111 = vmatpush1.xpose.msra.mxu0 0.0
    %2112 = vmatprep.subr.mxu0 0.0
    %2113 = vmatpush1.xpose.msra.mxu0 0.0
    %2114 = vmatprep.subr.mxu0 0.0
    %2115 = vmatpush1.xpose.msra.mxu0 0.0
    %2116 = vmatprep.subr.mxu0 0.0
    %2117 = vmatpush1.xpose.msra.mxu0 0.0
    %2118 = vmatprep.subr.mxu0 0.0
    %2119 = vmatpush1.xpose.msra.mxu0 0.0
    %2120 = vmatprep.subr.mxu0 0.0
    %2121 = vmatpush1.xpose.msra.mxu0 0.0
    %2122 = vmatprep.subr.mxu0 0.0
    %2123 = vmatpush1.xpose.msra.mxu0 0.0
    %2124 = vmatprep.subr.mxu0 0.0
    %2125 = vmatpush1.xpose.msra.mxu0 0.0
    %2126 = vmatprep.subr.mxu0 0.0
    %2127 = vmatpush1.xpose.msra.mxu0 0.0
    %2128 = vmatprep.subr.mxu0 0.0
    %2129 = vmatpush1.xpose.msra.mxu0 0.0
    %2130 = vmatprep.subr.mxu0 0.0
    %2131 = vmatpush1.xpose.msra.mxu0 0.0
    %2132 = vmatprep.subr.mxu0 0.0
    %2133 = vmatpush1.xpose.msra.mxu0 0.0
    %2134 = vmatprep.subr.mxu0 0.0
    %2135 = vmatpush1.xpose.msra.mxu0 0.0
    %2136 = vmatprep.mubr.f32.mxu0 0.0
    %2137 = vmatmul.mubr.f32.gmra.mrb[0].mxu0 %v2067
    %v2138 = vpop.f32.mrb[0].mxu0
    %v2139 = vadd.f32 0.0, %v2138
    %v2140 = vpop.f32.mrb[0].mxu0
    %2141 = vdwg.mxu0
    %v2143 = vsel %vm1913, %v588, 0
    %v2146 = vsel %vm1913, %v1180, 0
    %2148 = vmatprep.subr.mxu0 0.0
    %2149 = vmatpush1.xpose.msra.mxu0 %v2146
    %2150 = vmatprep.subr.mxu0 0.0
    %2151 = vmatpush1.xpose.msra.mxu0 0.0
    %2152 = vmatprep.subr.mxu0 0.0
    %2153 = vmatpush1.xpose.msra.mxu0 0.0
    %2154 = vmatprep.subr.mxu0 0.0
    %2155 = vmatpush1.xpose.msra.mxu0 0.0
    %2156 = vmatprep.subr.mxu0 0.0
    %2157 = vmatpush1.xpose.msra.mxu0 0.0
    %2158 = vmatprep.subr.mxu0 0.0
    %2159 = vmatpush1.xpose.msra.mxu0 0.0
    %2160 = vmatprep.subr.mxu0 0.0
    %2161 = vmatpush1.xpose.msra.mxu0 0.0
    %2162 = vmatprep.subr.mxu0 0.0
    %2163 = vmatpush1.xpose.msra.mxu0 0.0
    %2164 = vmatprep.subr.mxu0 0.0
    %2165 = vmatpush1.xpose.msra.mxu0 0.0
    %2166 = vmatprep.subr.mxu0 0.0
    %2167 = vmatpush1.xpose.msra.mxu0 0.0
    %2168 = vmatprep.subr.mxu0 0.0
    %2169 = vmatpush1.xpose.msra.mxu0 0.0
    %2170 = vmatprep.subr.mxu0 0.0
    %2171 = vmatpush1.xpose.msra.mxu0 0.0
    %2172 = vmatprep.subr.mxu0 0.0
    %2173 = vmatpush1.xpose.msra.mxu0 0.0
    %2174 = vmatprep.subr.mxu0 0.0
    %2175 = vmatpush1.xpose.msra.mxu0 0.0
    %2176 = vmatprep.subr.mxu0 0.0
    %2177 = vmatpush1.xpose.msra.mxu0 0.0
    %2178 = vmatprep.subr.mxu0 0.0
    %2179 = vmatpush1.xpose.msra.mxu0 0.0
    %2180 = vmatprep.subr.mxu0 0.0
    %2181 = vmatpush1.xpose.msra.mxu0 0.0
    %2182 = vmatprep.subr.mxu0 0.0
    %2183 = vmatpush1.xpose.msra.mxu0 0.0
    %2184 = vmatprep.subr.mxu0 0.0
    %2185 = vmatpush1.xpose.msra.mxu0 0.0
    %2186 = vmatprep.subr.mxu0 0.0
    %2187 = vmatpush1.xpose.msra.mxu0 0.0
    %2188 = vmatprep.subr.mxu0 0.0
    %2189 = vmatpush1.xpose.msra.mxu0 0.0
    %2190 = vmatprep.subr.mxu0 0.0
    %2191 = vmatpush1.xpose.msra.mxu0 0.0
    %2192 = vmatprep.subr.mxu0 0.0
    %2193 = vmatpush1.xpose.msra.mxu0 0.0
    %2194 = vmatprep.subr.mxu0 0.0
    %2195 = vmatpush1.xpose.msra.mxu0 0.0
    %2196 = vmatprep.subr.mxu0 0.0
    %2197 = vmatpush1.xpose.msra.mxu0 0.0
    %2198 = vmatprep.subr.mxu0 0.0
    %2199 = vmatpush1.xpose.msra.mxu0 0.0
    %2200 = vmatprep.subr.mxu0 0.0
    %2201 = vmatpush1.xpose.msra.mxu0 0.0
    %2202 = vmatprep.subr.mxu0 0.0
    %2203 = vmatpush1.xpose.msra.mxu0 0.0
    %2204 = vmatprep.subr.mxu0 0.0
    %2205 = vmatpush1.xpose.msra.mxu0 0.0
    %2206 = vmatprep.subr.mxu0 0.0
    %2207 = vmatpush1.xpose.msra.mxu0 0.0
    %2208 = vmatprep.subr.mxu0 0.0
    %2209 = vmatpush1.xpose.msra.mxu0 0.0
    %2210 = vmatprep.subr.mxu0 0.0
    %2211 = vmatpush1.xpose.msra.mxu0 0.0
    %2212 = vmatprep.mubr.f32.mxu0 0.0
    %2213 = vmatmul.mubr.f32.gmra.mrb[0].mxu0 %v2143
    %v2214 = vpop.f32.mrb[0].mxu0
    %v2215 = vadd.f32 0.0, %v2214
    %v2216 = vpop.f32.mrb[0].mxu0
    %2217 = vdwg.mxu0
    %v2219 = vsel %vm1913, %v589, 0
    %v2222 = vsel %vm1913, %v1181, 0
    %2224 = vmatprep.subr.mxu0 0.0
    %2225 = vmatpush1.xpose.msra.mxu0 %v2222
    %2226 = vmatprep.subr.mxu0 0.0
    %2227 = vmatpush1.xpose.msra.mxu0 0.0
    %2228 = vmatprep.subr.mxu0 0.0
    %2229 = vmatpush1.xpose.msra.mxu0 0.0
    %2230 = vmatprep.subr.mxu0 0.0
    %2231 = vmatpush1.xpose.msra.mxu0 0.0
    %2232 = vmatprep.subr.mxu0 0.0
    %2233 = vmatpush1.xpose.msra.mxu0 0.0
    %2234 = vmatprep.subr.mxu0 0.0
    %2235 = vmatpush1.xpose.msra.mxu0 0.0
    %2236 = vmatprep.subr.mxu0 0.0
    %2237 = vmatpush1.xpose.msra.mxu0 0.0
    %2238 = vmatprep.subr.mxu0 0.0
    %2239 = vmatpush1.xpose.msra.mxu0 0.0
    %2240 = vmatprep.subr.mxu0 0.0
    %2241 = vmatpush1.xpose.msra.mxu0 0.0
    %2242 = vmatprep.subr.mxu0 0.0
    %2243 = vmatpush1.xpose.msra.mxu0 0.0
    %2244 = vmatprep.subr.mxu0 0.0
    %2245 = vmatpush1.xpose.msra.mxu0 0.0
    %2246 = vmatprep.subr.mxu0 0.0
    %2247 = vmatpush1.xpose.msra.mxu0 0.0
    %2248 = vmatprep.subr.mxu0 0.0
    %2249 = vmatpush1.xpose.msra.mxu0 0.0
    %2250 = vmatprep.subr.mxu0 0.0
    %2251 = vmatpush1.xpose.msra.mxu0 0.0
    %2252 = vmatprep.subr.mxu0 0.0
    %2253 = vmatpush1.xpose.msra.mxu0 0.0
    %2254 = vmatprep.subr.mxu0 0.0
    %2255 = vmatpush1.xpose.msra.mxu0 0.0
    %2256 = vmatprep.subr.mxu0 0.0
    %2257 = vmatpush1.xpose.msra.mxu0 0.0
    %2258 = vmatprep.subr.mxu0 0.0
    %2259 = vmatpush1.xpose.msra.mxu0 0.0
    %2260 = vmatprep.subr.mxu0 0.0
    %2261 = vmatpush1.xpose.msra.mxu0 0.0
    %2262 = vmatprep.subr.mxu0 0.0
    %2263 = vmatpush1.xpose.msra.mxu0 0.0
    %2264 = vmatprep.subr.mxu0 0.0
    %2265 = vmatpush1.xpose.msra.mxu0 0.0
    %2266 = vmatprep.subr.mxu0 0.0
    %2267 = vmatpush1.xpose.msra.mxu0 0.0
    %2268 = vmatprep.subr.mxu0 0.0
    %2269 = vmatpush1.xpose.msra.mxu0 0.0
    %2270 = vmatprep.subr.mxu0 0.0
    %2271 = vmatpush1.xpose.msra.mxu0 0.0
    %2272 = vmatprep.subr.mxu0 0.0
    %2273 = vmatpush1.xpose.msra.mxu0 0.0
    %2274 = vmatprep.subr.mxu0 0.0
    %2275 = vmatpush1.xpose.msra.mxu0 0.0
    %2276 = vmatprep.subr.mxu0 0.0
    %2277 = vmatpush1.xpose.msra.mxu0 0.0
    %2278 = vmatprep.subr.mxu0 0.0
    %2279 = vmatpush1.xpose.msra.mxu0 0.0
    %2280 = vmatprep.subr.mxu0 0.0
    %2281 = vmatpush1.xpose.msra.mxu0 0.0
    %2282 = vmatprep.subr.mxu0 0.0
    %2283 = vmatpush1.xpose.msra.mxu0 0.0
    %2284 = vmatprep.subr.mxu0 0.0
    %2285 = vmatpush1.xpose.msra.mxu0 0.0
    %2286 = vmatprep.subr.mxu0 0.0
    %2287 = vmatpush1.xpose.msra.mxu0 0.0
    %2288 = vmatprep.mubr.f32.mxu0 0.0
    %2289 = vmatmul.mubr.f32.gmra.mrb[0].mxu0 %v2219
    %v2290 = vpop.f32.mrb[0].mxu0
    %v2291 = vadd.f32 0.0, %v2290
    %v2292 = vpop.f32.mrb[0].mxu0
    %2293 = vdwg.mxu0
    %v2295 = vsel %vm1913, %v590, 0
    %v2298 = vsel %vm1913, %v1182, 0
    %2300 = vmatprep.subr.mxu0 0.0
    %2301 = vmatpush1.xpose.msra.mxu0 %v2298
    %2302 = vmatprep.subr.mxu0 0.0
    %2303 = vmatpush1.xpose.msra.mxu0 0.0
    %2304 = vmatprep.subr.mxu0 0.0
    %2305 = vmatpush1.xpose.msra.mxu0 0.0
    %2306 = vmatprep.subr.mxu0 0.0
    %2307 = vmatpush1.xpose.msra.mxu0 0.0
    %2308 = vmatprep.subr.mxu0 0.0
    %2309 = vmatpush1.xpose.msra.mxu0 0.0
    %2310 = vmatprep.subr.mxu0 0.0
    %2311 = vmatpush1.xpose.msra.mxu0 0.0
    %2312 = vmatprep.subr.mxu0 0.0
    %2313 = vmatpush1.xpose.msra.mxu0 0.0
    %2314 = vmatprep.subr.mxu0 0.0
    %2315 = vmatpush1.xpose.msra.mxu0 0.0
    %2316 = vmatprep.subr.mxu0 0.0
    %2317 = vmatpush1.xpose.msra.mxu0 0.0
    %2318 = vmatprep.subr.mxu0 0.0
    %2319 = vmatpush1.xpose.msra.mxu0 0.0
    %2320 = vmatprep.subr.mxu0 0.0
    %2321 = vmatpush1.xpose.msra.mxu0 0.0
    %2322 = vmatprep.subr.mxu0 0.0
    %2323 = vmatpush1.xpose.msra.mxu0 0.0
    %2324 = vmatprep.subr.mxu0 0.0
    %2325 = vmatpush1.xpose.msra.mxu0 0.0
    %2326 = vmatprep.subr.mxu0 0.0
    %2327 = vmatpush1.xpose.msra.mxu0 0.0
    %2328 = vmatprep.subr.mxu0 0.0
    %2329 = vmatpush1.xpose.msra.mxu0 0.0
    %2330 = vmatprep.subr.mxu0 0.0
    %2331 = vmatpush1.xpose.msra.mxu0 0.0
    %2332 = vmatprep.subr.mxu0 0.0
    %2333 = vmatpush1.xpose.msra.mxu0 0.0
    %2334 = vmatprep.subr.mxu0 0.0
    %2335 = vmatpush1.xpose.msra.mxu0 0.0
    %2336 = vmatprep.subr.mxu0 0.0
    %2337 = vmatpush1.xpose.msra.mxu0 0.0
    %2338 = vmatprep.subr.mxu0 0.0
    %2339 = vmatpush1.xpose.msra.mxu0 0.0
    %2340 = vmatprep.subr.mxu0 0.0
    %2341 = vmatpush1.xpose.msra.mxu0 0.0
    %2342 = vmatprep.subr.mxu0 0.0
    %2343 = vmatpush1.xpose.msra.mxu0 0.0
    %2344 = vmatprep.subr.mxu0 0.0
    %2345 = vmatpush1.xpose.msra.mxu0 0.0
    %2346 = vmatprep.subr.mxu0 0.0
    %2347 = vmatpush1.xpose.msra.mxu0 0.0
    %2348 = vmatprep.subr.mxu0 0.0
    %2349 = vmatpush1.xpose.msra.mxu0 0.0
    %2350 = vmatprep.subr.mxu0 0.0
    %2351 = vmatpush1.xpose.msra.mxu0 0.0
    %2352 = vmatprep.subr.mxu0 0.0
    %2353 = vmatpush1.xpose.msra.mxu0 0.0
    %2354 = vmatprep.subr.mxu0 0.0
    %2355 = vmatpush1.xpose.msra.mxu0 0.0
    %2356 = vmatprep.subr.mxu0 0.0
    %2357 = vmatpush1.xpose.msra.mxu0 0.0
    %2358 = vmatprep.subr.mxu0 0.0
    %2359 = vmatpush1.xpose.msra.mxu0 0.0
    %2360 = vmatprep.subr.mxu0 0.0
    %2361 = vmatpush1.xpose.msra.mxu0 0.0
    %2362 = vmatprep.subr.mxu0 0.0
    %2363 = vmatpush1.xpose.msra.mxu0 0.0
    %2364 = vmatprep.mubr.f32.mxu0 0.0
    %2365 = vmatmul.mubr.f32.gmra.mrb[0].mxu0 %v2295
    %v2366 = vpop.f32.mrb[0].mxu0
    %v2367 = vadd.f32 0.0, %v2366
    %v2368 = vpop.f32.mrb[0].mxu0
    %2369 = vdwg.mxu0
    %v2371 = vsel %vm1913, %v591, 0
    %v2374 = vsel %vm1913, %v1183, 0
    %2376 = vmatprep.subr.mxu0 0.0
    %2377 = vmatpush1.xpose.msra.mxu0 %v2374
    %2378 = vmatprep.subr.mxu0 0.0
    %2379 = vmatpush1.xpose.msra.mxu0 0.0
    %2380 = vmatprep.subr.mxu0 0.0
    %2381 = vmatpush1.xpose.msra.mxu0 0.0
    %2382 = vmatprep.subr.mxu0 0.0
    %2383 = vmatpush1.xpose.msra.mxu0 0.0
    %2384 = vmatprep.subr.mxu0 0.0
    %2385 = vmatpush1.xpose.msra.mxu0 0.0
    %2386 = vmatprep.subr.mxu0 0.0
    %2387 = vmatpush1.xpose.msra.mxu0 0.0
    %2388 = vmatprep.subr.mxu0 0.0
    %2389 = vmatpush1.xpose.msra.mxu0 0.0
    %2390 = vmatprep.subr.mxu0 0.0
    %2391 = vmatpush1.xpose.msra.mxu0 0.0
    %2392 = vmatprep.subr.mxu0 0.0
    %2393 = vmatpush1.xpose.msra.mxu0 0.0
    %2394 = vmatprep.subr.mxu0 0.0
    %2395 = vmatpush1.xpose.msra.mxu0 0.0
    %2396 = vmatprep.subr.mxu0 0.0
    %2397 = vmatpush1.xpose.msra.mxu0 0.0
    %2398 = vmatprep.subr.mxu0 0.0
    %2399 = vmatpush1.xpose.msra.mxu0 0.0
    %2400 = vmatprep.subr.mxu0 0.0
    %2401 = vmatpush1.xpose.msra.mxu0 0.0
    %2402 = vmatprep.subr.mxu0 0.0
    %2403 = vmatpush1.xpose.msra.mxu0 0.0
    %2404 = vmatprep.subr.mxu0 0.0
    %2405 = vmatpush1.xpose.msra.mxu0 0.0
    %2406 = vmatprep.subr.mxu0 0.0
    %2407 = vmatpush1.xpose.msra.mxu0 0.0
    %2408 = vmatprep.subr.mxu0 0.0
    %2409 = vmatpush1.xpose.msra.mxu0 0.0
    %2410 = vmatprep.subr.mxu0 0.0
    %2411 = vmatpush1.xpose.msra.mxu0 0.0
    %2412 = vmatprep.subr.mxu0 0.0
    %2413 = vmatpush1.xpose.msra.mxu0 0.0
    %2414 = vmatprep.subr.mxu0 0.0
    %2415 = vmatpush1.xpose.msra.mxu0 0.0
    %2416 = vmatprep.subr.mxu0 0.0
    %2417 = vmatpush1.xpose.msra.mxu0 0.0
    %2418 = vmatprep.subr.mxu0 0.0
    %2419 = vmatpush1.xpose.msra.mxu0 0.0
    %2420 = vmatprep.subr.mxu0 0.0
    %2421 = vmatpush1.xpose.msra.mxu0 0.0
    %2422 = vmatprep.subr.mxu0 0.0
    %2423 = vmatpush1.xpose.msra.mxu0 0.0
    %2424 = vmatprep.subr.mxu0 0.0
    %2425 = vmatpush1.xpose.msra.mxu0 0.0
    %2426 = vmatprep.subr.mxu0 0.0
    %2427 = vmatpush1.xpose.msra.mxu0 0.0
    %2428 = vmatprep.subr.mxu0 0.0
    %2429 = vmatpush1.xpose.msra.mxu0 0.0
    %2430 = vmatprep.subr.mxu0 0.0
    %2431 = vmatpush1.xpose.msra.mxu0 0.0
    %2432 = vmatprep.subr.mxu0 0.0
    %2433 = vmatpush1.xpose.msra.mxu0 0.0
    %2434 = vmatprep.subr.mxu0 0.0
    %2435 = vmatpush1.xpose.msra.mxu0 0.0
    %2436 = vmatprep.subr.mxu0 0.0
    %2437 = vmatpush1.xpose.msra.mxu0 0.0
    %2438 = vmatprep.subr.mxu0 0.0
    %2439 = vmatpush1.xpose.msra.mxu0 0.0
    %2440 = vmatprep.mubr.f32.mxu0 0.0
    %2441 = vmatmul.mubr.f32.gmra.mrb[0].mxu0 %v2371
    %v2442 = vpop.f32.mrb[0].mxu0
    %v2443 = vadd.f32 0.0, %v2442
    %v2444 = vpop.f32.mrb[0].mxu0
    %2445 = vdwg.mxu0
    %v2447 = vsel %vm1913, %v592, 0
    %v2450 = vsel %vm1913, %v1184, 0
    %2452 = vmatprep.subr.mxu0 0.0
    %2453 = vmatpush1.xpose.msra.mxu0 %v2450
    %2454 = vmatprep.subr.mxu0 0.0
    %2455 = vmatpush1.xpose.msra.mxu0 0.0
    %2456 = vmatprep.subr.mxu0 0.0
    %2457 = vmatpush1.xpose.msra.mxu0 0.0
    %2458 = vmatprep.subr.mxu0 0.0
    %2459 = vmatpush1.xpose.msra.mxu0 0.0
    %2460 = vmatprep.subr.mxu0 0.0
    %2461 = vmatpush1.xpose.msra.mxu0 0.0
    %2462 = vmatprep.subr.mxu0 0.0
    %2463 = vmatpush1.xpose.msra.mxu0 0.0
    %2464 = vmatprep.subr.mxu0 0.0
    %2465 = vmatpush1.xpose.msra.mxu0 0.0
    %2466 = vmatprep.subr.mxu0 0.0
    %2467 = vmatpush1.xpose.msra.mxu0 0.0
    %2468 = vmatprep.subr.mxu0 0.0
    %2469 = vmatpush1.xpose.msra.mxu0 0.0
    %2470 = vmatprep.subr.mxu0 0.0
    %2471 = vmatpush1.xpose.msra.mxu0 0.0
    %2472 = vmatprep.subr.mxu0 0.0
    %2473 = vmatpush1.xpose.msra.mxu0 0.0
    %2474 = vmatprep.subr.mxu0 0.0
    %2475 = vmatpush1.xpose.msra.mxu0 0.0
    %2476 = vmatprep.subr.mxu0 0.0
    %2477 = vmatpush1.xpose.msra.mxu0 0.0
    %2478 = vmatprep.subr.mxu0 0.0
    %2479 = vmatpush1.xpose.msra.mxu0 0.0
    %2480 = vmatprep.subr.mxu0 0.0
    %2481 = vmatpush1.xpose.msra.mxu0 0.0
    %2482 = vmatprep.subr.mxu0 0.0
    %2483 = vmatpush1.xpose.msra.mxu0 0.0
    %2484 = vmatprep.subr.mxu0 0.0
    %2485 = vmatpush1.xpose.msra.mxu0 0.0
    %2486 = vmatprep.subr.mxu0 0.0
    %2487 = vmatpush1.xpose.msra.mxu0 0.0
    %2488 = vmatprep.subr.mxu0 0.0
    %2489 = vmatpush1.xpose.msra.mxu0 0.0
    %2490 = vmatprep.subr.mxu0 0.0
    %2491 = vmatpush1.xpose.msra.mxu0 0.0
    %2492 = vmatprep.subr.mxu0 0.0
    %2493 = vmatpush1.xpose.msra.mxu0 0.0
    %2494 = vmatprep.subr.mxu0 0.0
    %2495 = vmatpush1.xpose.msra.mxu0 0.0
    %2496 = vmatprep.subr.mxu0 0.0
    %2497 = vmatpush1.xpose.msra.mxu0 0.0
    %2498 = vmatprep.subr.mxu0 0.0
    %2499 = vmatpush1.xpose.msra.mxu0 0.0
    %2500 = vmatprep.subr.mxu0 0.0
    %2501 = vmatpush1.xpose.msra.mxu0 0.0
    %2502 = vmatprep.subr.mxu0 0.0
    %2503 = vmatpush1.xpose.msra.mxu0 0.0
    %2504 = vmatprep.subr.mxu0 0.0
    %2505 = vmatpush1.xpose.msra.mxu0 0.0
    %2506 = vmatprep.subr.mxu0 0.0
    %2507 = vmatpush1.xpose.msra.mxu0 0.0
    %2508 = vmatprep.subr.mxu0 0.0
    %2509 = vmatpush1.xpose.msra.mxu0 0.0
    %2510 = vmatprep.subr.mxu0 0.0
    %2511 = vmatpush1.xpose.msra.mxu0 0.0
    %2512 = vmatprep.subr.mxu0 0.0
    %2513 = vmatpush1.xpose.msra.mxu0 0.0
    %2514 = vmatprep.subr.mxu0 0.0
    %2515 = vmatpush1.xpose.msra.mxu0 0.0
    %2516 = vmatprep.mubr.f32.mxu0 0.0
    %2517 = vmatmul.mubr.f32.gmra.mrb[0].mxu0 %v2447
    %v2518 = vpop.f32.mrb[0].mxu0
    %v2519 = vadd.f32 0.0, %v2518
    %v2520 = vpop.f32.mrb[0].mxu0
    %2521 = vdwg.mxu0
    %v2523 = vsel %vm1913, %v721, 0
    %v2526 = vsel %vm1913, %v1313, 0
    %2528 = vmatprep.subr.mxu0 0.0
    %2529 = vmatpush1.xpose.msra.mxu0 %v2526
    %2530 = vmatprep.subr.mxu0 0.0
    %2531 = vmatpush1.xpose.msra.mxu0 0.0
    %2532 = vmatprep.subr.mxu0 0.0
    %2533 = vmatpush1.xpose.msra.mxu0 0.0
    %2534 = vmatprep.subr.mxu0 0.0
    %2535 = vmatpush1.xpose.msra.mxu0 0.0
    %2536 = vmatprep.subr.mxu0 0.0
    %2537 = vmatpush1.xpose.msra.mxu0 0.0
    %2538 = vmatprep.subr.mxu0 0.0
    %2539 = vmatpush1.xpose.msra.mxu0 0.0
    %2540 = vmatprep.subr.mxu0 0.0
    %2541 = vmatpush1.xpose.msra.mxu0 0.0
    %2542 = vmatprep.subr.mxu0 0.0
    %2543 = vmatpush1.xpose.msra.mxu0 0.0
    %2544 = vmatprep.subr.mxu0 0.0
    %2545 = vmatpush1.xpose.msra.mxu0 0.0
    %2546 = vmatprep.subr.mxu0 0.0
    %2547 = vmatpush1.xpose.msra.mxu0 0.0
    %2548 = vmatprep.subr.mxu0 0.0
    %2549 = vmatpush1.xpose.msra.mxu0 0.0
    %2550 = vmatprep.subr.mxu0 0.0
    %2551 = vmatpush1.xpose.msra.mxu0 0.0
    %2552 = vmatprep.subr.mxu0 0.0
    %2553 = vmatpush1.xpose.msra.mxu0 0.0
    %2554 = vmatprep.subr.mxu0 0.0
    %2555 = vmatpush1.xpose.msra.mxu0 0.0
    %2556 = vmatprep.subr.mxu0 0.0
    %2557 = vmatpush1.xpose.msra.mxu0 0.0
    %2558 = vmatprep.subr.mxu0 0.0
    %2559 = vmatpush1.xpose.msra.mxu0 0.0
    %2560 = vmatprep.subr.mxu0 0.0
    %2561 = vmatpush1.xpose.msra.mxu0 0.0
    %2562 = vmatprep.subr.mxu0 0.0
    %2563 = vmatpush1.xpose.msra.mxu0 0.0
    %2564 = vmatprep.subr.mxu0 0.0
    %2565 = vmatpush1.xpose.msra.mxu0 0.0
    %2566 = vmatprep.subr.mxu0 0.0
    %2567 = vmatpush1.xpose.msra.mxu0 0.0
    %2568 = vmatprep.subr.mxu0 0.0
    %2569 = vmatpush1.xpose.msra.mxu0 0.0
    %2570 = vmatprep.subr.mxu0 0.0
    %2571 = vmatpush1.xpose.msra.mxu0 0.0
    %2572 = vmatprep.subr.mxu0 0.0
    %2573 = vmatpush1.xpose.msra.mxu0 0.0
    %2574 = vmatprep.subr.mxu0 0.0
    %2575 = vmatpush1.xpose.msra.mxu0 0.0
    %2576 = vmatprep.subr.mxu0 0.0
    %2577 = vmatpush1.xpose.msra.mxu0 0.0
    %2578 = vmatprep.subr.mxu0 0.0
    %2579 = vmatpush1.xpose.msra.mxu0 0.0
    %2580 = vmatprep.subr.mxu0 0.0
    %2581 = vmatpush1.xpose.msra.mxu0 0.0
    %2582 = vmatprep.subr.mxu0 0.0
    %2583 = vmatpush1.xpose.msra.mxu0 0.0
    %2584 = vmatprep.subr.mxu0 0.0
    %2585 = vmatpush1.xpose.msra.mxu0 0.0
    %2586 = vmatprep.subr.mxu0 0.0
    %2587 = vmatpush1.xpose.msra.mxu0 0.0
    %2588 = vmatprep.subr.mxu0 0.0
    %2589 = vmatpush1.xpose.msra.mxu0 0.0
    %2590 = vmatprep.subr.mxu0 0.0
    %2591 = vmatpush1.xpose.msra.mxu0 0.0
    %2592 = vmatprep.mubr.f32.mxu0 0.0
    %2593 = vmatmul.mubr.f32.gmra.mrb[0].mxu0 %v2523
    %v2594 = vpop.f32.mrb[0].mxu0
    %v2595 = vadd.f32 0.0, %v2594
    %v2596 = vpop.f32.mrb[0].mxu0
    %2597 = vdwg.mxu0
    %v2599 = vsel %vm1913, %v722, 0
    %v2602 = vsel %vm1913, %v1314, 0
    %2604 = vmatprep.subr.mxu0 0.0
    %2605 = vmatpush1.xpose.msra.mxu0 %v2602
    %2606 = vmatprep.subr.mxu0 0.0
    %2607 = vmatpush1.xpose.msra.mxu0 0.0
    %2608 = vmatprep.subr.mxu0 0.0
    %2609 = vmatpush1.xpose.msra.mxu0 0.0
    %2610 = vmatprep.subr.mxu0 0.0
    %2611 = vmatpush1.xpose.msra.mxu0 0.0
    %2612 = vmatprep.subr.mxu0 0.0
    %2613 = vmatpush1.xpose.msra.mxu0 0.0
    %2614 = vmatprep.subr.mxu0 0.0
    %2615 = vmatpush1.xpose.msra.mxu0 0.0
    %2616 = vmatprep.subr.mxu0 0.0
    %2617 = vmatpush1.xpose.msra.mxu0 0.0
    %2618 = vmatprep.subr.mxu0 0.0
    %2619 = vmatpush1.xpose.msra.mxu0 0.0
    %2620 = vmatprep.subr.mxu0 0.0
    %2621 = vmatpush1.xpose.msra.mxu0 0.0
    %2622 = vmatprep.subr.mxu0 0.0
    %2623 = vmatpush1.xpose.msra.mxu0 0.0
    %2624 = vmatprep.subr.mxu0 0.0
    %2625 = vmatpush1.xpose.msra.mxu0 0.0
    %2626 = vmatprep.subr.mxu0 0.0
    %2627 = vmatpush1.xpose.msra.mxu0 0.0
    %2628 = vmatprep.subr.mxu0 0.0
    %2629 = vmatpush1.xpose.msra.mxu0 0.0
    %2630 = vmatprep.subr.mxu0 0.0
    %2631 = vmatpush1.xpose.msra.mxu0 0.0
    %2632 = vmatprep.subr.mxu0 0.0
    %2633 = vmatpush1.xpose.msra.mxu0 0.0
    %2634 = vmatprep.subr.mxu0 0.0
    %2635 = vmatpush1.xpose.msra.mxu0 0.0
    %2636 = vmatprep.subr.mxu0 0.0
    %2637 = vmatpush1.xpose.msra.mxu0 0.0
    %2638 = vmatprep.subr.mxu0 0.0
    %2639 = vmatpush1.xpose.msra.mxu0 0.0
    %2640 = vmatprep.subr.mxu0 0.0
    %2641 = vmatpush1.xpose.msra.mxu0 0.0
    %2642 = vmatprep.subr.mxu0 0.0
    %2643 = vmatpush1.xpose.msra.mxu0 0.0
    %2644 = vmatprep.subr.mxu0 0.0
    %2645 = vmatpush1.xpose.msra.mxu0 0.0
    %2646 = vmatprep.subr.mxu0 0.0
    %2647 = vmatpush1.xpose.msra.mxu0 0.0
    %2648 = vmatprep.subr.mxu0 0.0
    %2649 = vmatpush1.xpose.msra.mxu0 0.0
    %2650 = vmatprep.subr.mxu0 0.0
    %2651 = vmatpush1.xpose.msra.mxu0 0.0
    %2652 = vmatprep.subr.mxu0 0.0
    %2653 = vmatpush1.xpose.msra.mxu0 0.0
    %2654 = vmatprep.subr.mxu0 0.0
    %2655 = vmatpush1.xpose.msra.mxu0 0.0
    %2656 = vmatprep.subr.mxu0 0.0
    %2657 = vmatpush1.xpose.msra.mxu0 0.0
    %2658 = vmatprep.subr.mxu0 0.0
    %2659 = vmatpush1.xpose.msra.mxu0 0.0
    %2660 = vmatprep.subr.mxu0 0.0
    %2661 = vmatpush1.xpose.msra.mxu0 0.0
    %2662 = vmatprep.subr.mxu0 0.0
    %2663 = vmatpush1.xpose.msra.mxu0 0.0
    %2664 = vmatprep.subr.mxu0 0.0
    %2665 = vmatpush1.xpose.msra.mxu0 0.0
    %2666 = vmatprep.subr.mxu0 0.0
    %2667 = vmatpush1.xpose.msra.mxu0 0.0
    %2668 = vmatprep.mubr.f32.mxu0 0.0
    %2669 = vmatmul.mubr.f32.gmra.mrb[0].mxu0 %v2599
    %v2670 = vpop.f32.mrb[0].mxu0
    %v2671 = vadd.f32 0.0, %v2670
    %v2672 = vpop.f32.mrb[0].mxu0
    %2673 = vdwg.mxu0
    %v2675 = vsel %vm1913, %v723, 0
    %v2678 = vsel %vm1913, %v1315, 0
    %2680 = vmatprep.subr.mxu0 0.0
    %2681 = vmatpush1.xpose.msra.mxu0 %v2678
    %2682 = vmatprep.subr.mxu0 0.0
    %2683 = vmatpush1.xpose.msra.mxu0 0.0
    %2684 = vmatprep.subr.mxu0 0.0
    %2685 = vmatpush1.xpose.msra.mxu0 0.0
    %2686 = vmatprep.subr.mxu0 0.0
    %2687 = vmatpush1.xpose.msra.mxu0 0.0
    %2688 = vmatprep.subr.mxu0 0.0
    %2689 = vmatpush1.xpose.msra.mxu0 0.0
    %2690 = vmatprep.subr.mxu0 0.0
    %2691 = vmatpush1.xpose.msra.mxu0 0.0
    %2692 = vmatprep.subr.mxu0 0.0
    %2693 = vmatpush1.xpose.msra.mxu0 0.0
    %2694 = vmatprep.subr.mxu0 0.0
    %2695 = vmatpush1.xpose.msra.mxu0 0.0
    %2696 = vmatprep.subr.mxu0 0.0
    %2697 = vmatpush1.xpose.msra.mxu0 0.0
    %2698 = vmatprep.subr.mxu0 0.0
    %2699 = vmatpush1.xpose.msra.mxu0 0.0
    %2700 = vmatprep.subr.mxu0 0.0
    %2701 = vmatpush1.xpose.msra.mxu0 0.0
    %2702 = vmatprep.subr.mxu0 0.0
    %2703 = vmatpush1.xpose.msra.mxu0 0.0
    %2704 = vmatprep.subr.mxu0 0.0
    %2705 = vmatpush1.xpose.msra.mxu0 0.0
    %2706 = vmatprep.subr.mxu0 0.0
    %2707 = vmatpush1.xpose.msra.mxu0 0.0
    %2708 = vmatprep.subr.mxu0 0.0
    %2709 = vmatpush1.xpose.msra.mxu0 0.0
    %2710 = vmatprep.subr.mxu0 0.0
    %2711 = vmatpush1.xpose.msra.mxu0 0.0
    %2712 = vmatprep.subr.mxu0 0.0
    %2713 = vmatpush1.xpose.msra.mxu0 0.0
    %2714 = vmatprep.subr.mxu0 0.0
    %2715 = vmatpush1.xpose.msra.mxu0 0.0
    %2716 = vmatprep.subr.mxu0 0.0
    %2717 = vmatpush1.xpose.msra.mxu0 0.0
    %2718 = vmatprep.subr.mxu0 0.0
    %2719 = vmatpush1.xpose.msra.mxu0 0.0
    %2720 = vmatprep.subr.mxu0 0.0
    %2721 = vmatpush1.xpose.msra.mxu0 0.0
    %2722 = vmatprep.subr.mxu0 0.0
    %2723 = vmatpush1.xpose.msra.mxu0 0.0
    %2724 = vmatprep.subr.mxu0 0.0
    %2725 = vmatpush1.xpose.msra.mxu0 0.0
    %2726 = vmatprep.subr.mxu0 0.0
    %2727 = vmatpush1.xpose.msra.mxu0 0.0
    %2728 = vmatprep.subr.mxu0 0.0
    %2729 = vmatpush1.xpose.msra.mxu0 0.0
    %2730 = vmatprep.subr.mxu0 0.0
    %2731 = vmatpush1.xpose.msra.mxu0 0.0
    %2732 = vmatprep.subr.mxu0 0.0
    %2733 = vmatpush1.xpose.msra.mxu0 0.0
    %2734 = vmatprep.subr.mxu0 0.0
    %2735 = vmatpush1.xpose.msra.mxu0 0.0
    %2736 = vmatprep.subr.mxu0 0.0
    %2737 = vmatpush1.xpose.msra.mxu0 0.0
    %2738 = vmatprep.subr.mxu0 0.0
    %2739 = vmatpush1.xpose.msra.mxu0 0.0
    %2740 = vmatprep.subr.mxu0 0.0
    %2741 = vmatpush1.xpose.msra.mxu0 0.0
    %2742 = vmatprep.subr.mxu0 0.0
    %2743 = vmatpush1.xpose.msra.mxu0 0.0
    %2744 = vmatprep.mubr.f32.mxu0 0.0
    %2745 = vmatmul.mubr.f32.gmra.mrb[0].mxu0 %v2675
    %v2746 = vpop.f32.mrb[0].mxu0
    %v2747 = vadd.f32 0.0, %v2746
    %v2748 = vpop.f32.mrb[0].mxu0
    %2749 = vdwg.mxu0
    %v2751 = vsel %vm1913, %v724, 0
    %v2754 = vsel %vm1913, %v1316, 0
    %2756 = vmatprep.subr.mxu0 0.0
    %2757 = vmatpush1.xpose.msra.mxu0 %v2754
    %2758 = vmatprep.subr.mxu0 0.0
    %2759 = vmatpush1.xpose.msra.mxu0 0.0
    %2760 = vmatprep.subr.mxu0 0.0
    %2761 = vmatpush1.xpose.msra.mxu0 0.0
    %2762 = vmatprep.subr.mxu0 0.0
    %2763 = vmatpush1.xpose.msra.mxu0 0.0
    %2764 = vmatprep.subr.mxu0 0.0
    %2765 = vmatpush1.xpose.msra.mxu0 0.0
    %2766 = vmatprep.subr.mxu0 0.0
    %2767 = vmatpush1.xpose.msra.mxu0 0.0
    %2768 = vmatprep.subr.mxu0 0.0
    %2769 = vmatpush1.xpose.msra.mxu0 0.0
    %2770 = vmatprep.subr.mxu0 0.0
    %2771 = vmatpush1.xpose.msra.mxu0 0.0
    %2772 = vmatprep.subr.mxu0 0.0
    %2773 = vmatpush1.xpose.msra.mxu0 0.0
    %2774 = vmatprep.subr.mxu0 0.0
    %2775 = vmatpush1.xpose.msra.mxu0 0.0
    %2776 = vmatprep.subr.mxu0 0.0
    %2777 = vmatpush1.xpose.msra.mxu0 0.0
    %2778 = vmatprep.subr.mxu0 0.0
    %2779 = vmatpush1.xpose.msra.mxu0 0.0
    %2780 = vmatprep.subr.mxu0 0.0
    %2781 = vmatpush1.xpose.msra.mxu0 0.0
    %2782 = vmatprep.subr.mxu0 0.0
    %2783 = vmatpush1.xpose.msra.mxu0 0.0
    %2784 = vmatprep.subr.mxu0 0.0
    %2785 = vmatpush1.xpose.msra.mxu0 0.0
    %2786 = vmatprep.subr.mxu0 0.0
    %2787 = vmatpush1.xpose.msra.mxu0 0.0
    %2788 = vmatprep.subr.mxu0 0.0
    %2789 = vmatpush1.xpose.msra.mxu0 0.0
    %2790 = vmatprep.subr.mxu0 0.0
    %2791 = vmatpush1.xpose.msra.mxu0 0.0
    %2792 = vmatprep.subr.mxu0 0.0
    %2793 = vmatpush1.xpose.msra.mxu0 0.0
    %2794 = vmatprep.subr.mxu0 0.0
    %2795 = vmatpush1.xpose.msra.mxu0 0.0
    %2796 = vmatprep.subr.mxu0 0.0
    %2797 = vmatpush1.xpose.msra.mxu0 0.0
    %2798 = vmatprep.subr.mxu0 0.0
    %2799 = vmatpush1.xpose.msra.mxu0 0.0
    %2800 = vmatprep.subr.mxu0 0.0
    %2801 = vmatpush1.xpose.msra.mxu0 0.0
    %2802 = vmatprep.subr.mxu0 0.0
    %2803 = vmatpush1.xpose.msra.mxu0 0.0
    %2804 = vmatprep.subr.mxu0 0.0
    %2805 = vmatpush1.xpose.msra.mxu0 0.0
    %2806 = vmatprep.subr.mxu0 0.0
    %2807 = vmatpush1.xpose.msra.mxu0 0.0
    %2808 = vmatprep.subr.mxu0 0.0
    %2809 = vmatpush1.xpose.msra.mxu0 0.0
    %2810 = vmatprep.subr.mxu0 0.0
    %2811 = vmatpush1.xpose.msra.mxu0 0.0
    %2812 = vmatprep.subr.mxu0 0.0
    %2813 = vmatpush1.xpose.msra.mxu0 0.0
    %2814 = vmatprep.subr.mxu0 0.0
    %2815 = vmatpush1.xpose.msra.mxu0 0.0
    %2816 = vmatprep.subr.mxu0 0.0
    %2817 = vmatpush1.xpose.msra.mxu0 0.0
    %2818 = vmatprep.subr.mxu0 0.0
    %2819 = vmatpush1.xpose.msra.mxu0 0.0
    %2820 = vmatprep.mubr.f32.mxu0 0.0
    %2821 = vmatmul.mubr.f32.gmra.mrb[0].mxu0 %v2751
    %v2822 = vpop.f32.mrb[0].mxu0
    %v2823 = vadd.f32 0.0, %v2822
    %v2824 = vpop.f32.mrb[0].mxu0
    %2825 = vdwg.mxu0
    %v2827 = vsel %vm1913, %v725, 0
    %v2830 = vsel %vm1913, %v1317, 0
    %2832 = vmatprep.subr.mxu0 0.0
    %2833 = vmatpush1.xpose.msra.mxu0 %v2830
    %2834 = vmatprep.subr.mxu0 0.0
    %2835 = vmatpush1.xpose.msra.mxu0 0.0
    %2836 = vmatprep.subr.mxu0 0.0
    %2837 = vmatpush1.xpose.msra.mxu0 0.0
    %2838 = vmatprep.subr.mxu0 0.0
    %2839 = vmatpush1.xpose.msra.mxu0 0.0
    %2840 = vmatprep.subr.mxu0 0.0
    %2841 = vmatpush1.xpose.msra.mxu0 0.0
    %2842 = vmatprep.subr.mxu0 0.0
    %2843 = vmatpush1.xpose.msra.mxu0 0.0
    %2844 = vmatprep.subr.mxu0 0.0
    %2845 = vmatpush1.xpose.msra.mxu0 0.0
    %2846 = vmatprep.subr.mxu0 0.0
    %2847 = vmatpush1.xpose.msra.mxu0 0.0
    %2848 = vmatprep.subr.mxu0 0.0
    %2849 = vmatpush1.xpose.msra.mxu0 0.0
    %2850 = vmatprep.subr.mxu0 0.0
    %2851 = vmatpush1.xpose.msra.mxu0 0.0
    %2852 = vmatprep.subr.mxu0 0.0
    %2853 = vmatpush1.xpose.msra.mxu0 0.0
    %2854 = vmatprep.subr.mxu0 0.0
    %2855 = vmatpush1.xpose.msra.mxu0 0.0
    %2856 = vmatprep.subr.mxu0 0.0
    %2857 = vmatpush1.xpose.msra.mxu0 0.0
    %2858 = vmatprep.subr.mxu0 0.0
    %2859 = vmatpush1.xpose.msra.mxu0 0.0
    %2860 = vmatprep.subr.mxu0 0.0
    %2861 = vmatpush1.xpose.msra.mxu0 0.0
    %2862 = vmatprep.subr.mxu0 0.0
    %2863 = vmatpush1.xpose.msra.mxu0 0.0
    %2864 = vmatprep.subr.mxu0 0.0
    %2865 = vmatpush1.xpose.msra.mxu0 0.0
    %2866 = vmatprep.subr.mxu0 0.0
    %2867 = vmatpush1.xpose.msra.mxu0 0.0
    %2868 = vmatprep.subr.mxu0 0.0
    %2869 = vmatpush1.xpose.msra.mxu0 0.0
    %2870 = vmatprep.subr.mxu0 0.0
    %2871 = vmatpush1.xpose.msra.mxu0 0.0
    %2872 = vmatprep.subr.mxu0 0.0
    %2873 = vmatpush1.xpose.msra.mxu0 0.0
    %2874 = vmatprep.subr.mxu0 0.0
    %2875 = vmatpush1.xpose.msra.mxu0 0.0
    %2876 = vmatprep.subr.mxu0 0.0
    %2877 = vmatpush1.xpose.msra.mxu0 0.0
    %2878 = vmatprep.subr.mxu0 0.0
    %2879 = vmatpush1.xpose.msra.mxu0 0.0
    %2880 = vmatprep.subr.mxu0 0.0
    %2881 = vmatpush1.xpose.msra.mxu0 0.0
    %2882 = vmatprep.subr.mxu0 0.0
    %2883 = vmatpush1.xpose.msra.mxu0 0.0
    %2884 = vmatprep.subr.mxu0 0.0
    %2885 = vmatpush1.xpose.msra.mxu0 0.0
    %2886 = vmatprep.subr.mxu0 0.0
    %2887 = vmatpush1.xpose.msra.mxu0 0.0
    %2888 = vmatprep.subr.mxu0 0.0
    %2889 = vmatpush1.xpose.msra.mxu0 0.0
    %2890 = vmatprep.subr.mxu0 0.0
    %2891 = vmatpush1.xpose.msra.mxu0 0.0
    %2892 = vmatprep.subr.mxu0 0.0
    %2893 = vmatpush1.xpose.msra.mxu0 0.0
    %2894 = vmatprep.subr.mxu0 0.0
    %2895 = vmatpush1.xpose.msra.mxu0 0.0
    %2896 = vmatprep.mubr.f32.mxu0 0.0
    %2897 = vmatmul.mubr.f32.gmra.mrb[0].mxu0 %v2827
    %v2898 = vpop.f32.mrb[0].mxu0
    %v2899 = vadd.f32 0.0, %v2898
    %v2900 = vpop.f32.mrb[0].mxu0
    %2901 = vdwg.mxu0
    %v2903 = vsel %vm1913, %v726, 0
    %v2906 = vsel %vm1913, %v1318, 0
    %2908 = vmatprep.subr.mxu0 0.0
    %2909 = vmatpush1.xpose.msra.mxu0 %v2906
    %2910 = vmatprep.subr.mxu0 0.0
    %2911 = vmatpush1.xpose.msra.mxu0 0.0
    %2912 = vmatprep.subr.mxu0 0.0
    %2913 = vmatpush1.xpose.msra.mxu0 0.0
    %2914 = vmatprep.subr.mxu0 0.0
    %2915 = vmatpush1.xpose.msra.mxu0 0.0
    %2916 = vmatprep.subr.mxu0 0.0
    %2917 = vmatpush1.xpose.msra.mxu0 0.0
    %2918 = vmatprep.subr.mxu0 0.0
    %2919 = vmatpush1.xpose.msra.mxu0 0.0
    %2920 = vmatprep.subr.mxu0 0.0
    %2921 = vmatpush1.xpose.msra.mxu0 0.0
    %2922 = vmatprep.subr.mxu0 0.0
    %2923 = vmatpush1.xpose.msra.mxu0 0.0
    %2924 = vmatprep.subr.mxu0 0.0
    %2925 = vmatpush1.xpose.msra.mxu0 0.0
    %2926 = vmatprep.subr.mxu0 0.0
    %2927 = vmatpush1.xpose.msra.mxu0 0.0
    %2928 = vmatprep.subr.mxu0 0.0
    %2929 = vmatpush1.xpose.msra.mxu0 0.0
    %2930 = vmatprep.subr.mxu0 0.0
    %2931 = vmatpush1.xpose.msra.mxu0 0.0
    %2932 = vmatprep.subr.mxu0 0.0
    %2933 = vmatpush1.xpose.msra.mxu0 0.0
    %2934 = vmatprep.subr.mxu0 0.0
    %2935 = vmatpush1.xpose.msra.mxu0 0.0
    %2936 = vmatprep.subr.mxu0 0.0
    %2937 = vmatpush1.xpose.msra.mxu0 0.0
    %2938 = vmatprep.subr.mxu0 0.0
    %2939 = vmatpush1.xpose.msra.mxu0 0.0
    %2940 = vmatprep.subr.mxu0 0.0
    %2941 = vmatpush1.xpose.msra.mxu0 0.0
    %2942 = vmatprep.subr.mxu0 0.0
    %2943 = vmatpush1.xpose.msra.mxu0 0.0
    %2944 = vmatprep.subr.mxu0 0.0
    %2945 = vmatpush1.xpose.msra.mxu0 0.0
    %2946 = vmatprep.subr.mxu0 0.0
    %2947 = vmatpush1.xpose.msra.mxu0 0.0
    %2948 = vmatprep.subr.mxu0 0.0
    %2949 = vmatpush1.xpose.msra.mxu0 0.0
    %2950 = vmatprep.subr.mxu0 0.0
    %2951 = vmatpush1.xpose.msra.mxu0 0.0
    %2952 = vmatprep.subr.mxu0 0.0
    %2953 = vmatpush1.xpose.msra.mxu0 0.0
    %2954 = vmatprep.subr.mxu0 0.0
    %2955 = vmatpush1.xpose.msra.mxu0 0.0
    %2956 = vmatprep.subr.mxu0 0.0
    %2957 = vmatpush1.xpose.msra.mxu0 0.0
    %2958 = vmatprep.subr.mxu0 0.0
    %2959 = vmatpush1.xpose.msra.mxu0 0.0
    %2960 = vmatprep.subr.mxu0 0.0
    %2961 = vmatpush1.xpose.msra.mxu0 0.0
    %2962 = vmatprep.subr.mxu0 0.0
    %2963 = vmatpush1.xpose.msra.mxu0 0.0
    %2964 = vmatprep.subr.mxu0 0.0
    %2965 = vmatpush1.xpose.msra.mxu0 0.0
    %2966 = vmatprep.subr.mxu0 0.0
    %2967 = vmatpush1.xpose.msra.mxu0 0.0
    %2968 = vmatprep.subr.mxu0 0.0
    %2969 = vmatpush1.xpose.msra.mxu0 0.0
    %2970 = vmatprep.subr.mxu0 0.0
    %2971 = vmatpush1.xpose.msra.mxu0 0.0
    %2972 = vmatprep.mubr.f32.mxu0 0.0
    %2973 = vmatmul.mubr.f32.gmra.mrb[0].mxu0 %v2903
    %v2974 = vpop.f32.mrb[0].mxu0
    %v2975 = vadd.f32 0.0, %v2974
    %v2976 = vpop.f32.mrb[0].mxu0
    %2977 = vdwg.mxu0
    %v2979 = vsel %vm1913, %v727, 0
    %v2982 = vsel %vm1913, %v1319, 0
    %2984 = vmatprep.subr.mxu0 0.0
    %2985 = vmatpush1.xpose.msra.mxu0 %v2982
    %2986 = vmatprep.subr.mxu0 0.0
    %2987 = vmatpush1.xpose.msra.mxu0 0.0
    %2988 = vmatprep.subr.mxu0 0.0
    %2989 = vmatpush1.xpose.msra.mxu0 0.0
    %2990 = vmatprep.subr.mxu0 0.0
    %2991 = vmatpush1.xpose.msra.mxu0 0.0
    %2992 = vmatprep.subr.mxu0 0.0
    %2993 = vmatpush1.xpose.msra.mxu0 0.0
    %2994 = vmatprep.subr.mxu0 0.0
    %2995 = vmatpush1.xpose.msra.mxu0 0.0
    %2996 = vmatprep.subr.mxu0 0.0
    %2997 = vmatpush1.xpose.msra.mxu0 0.0
    %2998 = vmatprep.subr.mxu0 0.0
    %2999 = vmatpush1.xpose.msra.mxu0 0.0
    %3000 = vmatprep.subr.mxu0 0.0
    %3001 = vmatpush1.xpose.msra.mxu0 0.0
    %3002 = vmatprep.subr.mxu0 0.0
    %3003 = vmatpush1.xpose.msra.mxu0 0.0
    %3004 = vmatprep.subr.mxu0 0.0
    %3005 = vmatpush1.xpose.msra.mxu0 0.0
    %3006 = vmatprep.subr.mxu0 0.0
    %3007 = vmatpush1.xpose.msra.mxu0 0.0
    %3008 = vmatprep.subr.mxu0 0.0
    %3009 = vmatpush1.xpose.msra.mxu0 0.0
    %3010 = vmatprep.subr.mxu0 0.0
    %3011 = vmatpush1.xpose.msra.mxu0 0.0
    %3012 = vmatprep.subr.mxu0 0.0
    %3013 = vmatpush1.xpose.msra.mxu0 0.0
    %3014 = vmatprep.subr.mxu0 0.0
    %3015 = vmatpush1.xpose.msra.mxu0 0.0
    %3016 = vmatprep.subr.mxu0 0.0
    %3017 = vmatpush1.xpose.msra.mxu0 0.0
    %3018 = vmatprep.subr.mxu0 0.0
    %3019 = vmatpush1.xpose.msra.mxu0 0.0
    %3020 = vmatprep.subr.mxu0 0.0
    %3021 = vmatpush1.xpose.msra.mxu0 0.0
    %3022 = vmatprep.subr.mxu0 0.0
    %3023 = vmatpush1.xpose.msra.mxu0 0.0
    %3024 = vmatprep.subr.mxu0 0.0
    %3025 = vmatpush1.xpose.msra.mxu0 0.0
    %3026 = vmatprep.subr.mxu0 0.0
    %3027 = vmatpush1.xpose.msra.mxu0 0.0
    %3028 = vmatprep.subr.mxu0 0.0
    %3029 = vmatpush1.xpose.msra.mxu0 0.0
    %3030 = vmatprep.subr.mxu0 0.0
    %3031 = vmatpush1.xpose.msra.mxu0 0.0
    %3032 = vmatprep.subr.mxu0 0.0
    %3033 = vmatpush1.xpose.msra.mxu0 0.0
    %3034 = vmatprep.subr.mxu0 0.0
    %3035 = vmatpush1.xpose.msra.mxu0 0.0
    %3036 = vmatprep.subr.mxu0 0.0
    %3037 = vmatpush1.xpose.msra.mxu0 0.0
    %3038 = vmatprep.subr.mxu0 0.0
    %3039 = vmatpush1.xpose.msra.mxu0 0.0
    %3040 = vmatprep.subr.mxu0 0.0
    %3041 = vmatpush1.xpose.msra.mxu0 0.0
    %3042 = vmatprep.subr.mxu0 0.0
    %3043 = vmatpush1.xpose.msra.mxu0 0.0
    %3044 = vmatprep.subr.mxu0 0.0
    %3045 = vmatpush1.xpose.msra.mxu0 0.0
    %3046 = vmatprep.subr.mxu0 0.0
    %3047 = vmatpush1.xpose.msra.mxu0 0.0
    %3048 = vmatprep.mubr.f32.mxu0 0.0
    %3049 = vmatmul.mubr.f32.gmra.mrb[0].mxu0 %v2979
    %v3050 = vpop.f32.mrb[0].mxu0
    %v3051 = vadd.f32 0.0, %v3050
    %v3052 = vpop.f32.mrb[0].mxu0
    %3053 = vdwg.mxu0
    %v3055 = vsel %vm1913, %v728, 0
    %v3058 = vsel %vm1913, %v1320, 0
    %3060 = vmatprep.subr.mxu0 0.0
    %3061 = vmatpush1.xpose.msra.mxu0 %v3058
    %3062 = vmatprep.subr.mxu0 0.0
    %3063 = vmatpush1.xpose.msra.mxu0 0.0
    %3064 = vmatprep.subr.mxu0 0.0
    %3065 = vmatpush1.xpose.msra.mxu0 0.0
    %3066 = vmatprep.subr.mxu0 0.0
    %3067 = vmatpush1.xpose.msra.mxu0 0.0
    %3068 = vmatprep.subr.mxu0 0.0
    %3069 = vmatpush1.xpose.msra.mxu0 0.0
    %3070 = vmatprep.subr.mxu0 0.0
    %3071 = vmatpush1.xpose.msra.mxu0 0.0
    %3072 = vmatprep.subr.mxu0 0.0
    %3073 = vmatpush1.xpose.msra.mxu0 0.0
    %3074 = vmatprep.subr.mxu0 0.0
    %3075 = vmatpush1.xpose.msra.mxu0 0.0
    %3076 = vmatprep.subr.mxu0 0.0
    %3077 = vmatpush1.xpose.msra.mxu0 0.0
    %3078 = vmatprep.subr.mxu0 0.0
    %3079 = vmatpush1.xpose.msra.mxu0 0.0
    %3080 = vmatprep.subr.mxu0 0.0
    %3081 = vmatpush1.xpose.msra.mxu0 0.0
    %3082 = vmatprep.subr.mxu0 0.0
    %3083 = vmatpush1.xpose.msra.mxu0 0.0
    %3084 = vmatprep.subr.mxu0 0.0
    %3085 = vmatpush1.xpose.msra.mxu0 0.0
    %3086 = vmatprep.subr.mxu0 0.0
    %3087 = vmatpush1.xpose.msra.mxu0 0.0
    %3088 = vmatprep.subr.mxu0 0.0
    %3089 = vmatpush1.xpose.msra.mxu0 0.0
    %3090 = vmatprep.subr.mxu0 0.0
    %3091 = vmatpush1.xpose.msra.mxu0 0.0
    %3092 = vmatprep.subr.mxu0 0.0
    %3093 = vmatpush1.xpose.msra.mxu0 0.0
    %3094 = vmatprep.subr.mxu0 0.0
    %3095 = vmatpush1.xpose.msra.mxu0 0.0
    %3096 = vmatprep.subr.mxu0 0.0
    %3097 = vmatpush1.xpose.msra.mxu0 0.0
    %3098 = vmatprep.subr.mxu0 0.0
    %3099 = vmatpush1.xpose.msra.mxu0 0.0
    %3100 = vmatprep.subr.mxu0 0.0
    %3101 = vmatpush1.xpose.msra.mxu0 0.0
    %3102 = vmatprep.subr.mxu0 0.0
    %3103 = vmatpush1.xpose.msra.mxu0 0.0
    %3104 = vmatprep.subr.mxu0 0.0
    %3105 = vmatpush1.xpose.msra.mxu0 0.0
    %3106 = vmatprep.subr.mxu0 0.0
    %3107 = vmatpush1.xpose.msra.mxu0 0.0
    %3108 = vmatprep.subr.mxu0 0.0
    %3109 = vmatpush1.xpose.msra.mxu0 0.0
    %3110 = vmatprep.subr.mxu0 0.0
    %3111 = vmatpush1.xpose.msra.mxu0 0.0
    %3112 = vmatprep.subr.mxu0 0.0
    %3113 = vmatpush1.xpose.msra.mxu0 0.0
    %3114 = vmatprep.subr.mxu0 0.0
    %3115 = vmatpush1.xpose.msra.mxu0 0.0
    %3116 = vmatprep.subr.mxu0 0.0
    %3117 = vmatpush1.xpose.msra.mxu0 0.0
    %3118 = vmatprep.subr.mxu0 0.0
    %3119 = vmatpush1.xpose.msra.mxu0 0.0
    %3120 = vmatprep.subr.mxu0 0.0
    %3121 = vmatpush1.xpose.msra.mxu0 0.0
    %3122 = vmatprep.subr.mxu0 0.0
    %3123 = vmatpush1.xpose.msra.mxu0 0.0
    %3124 = vmatprep.mubr.f32.mxu0 0.0
    %3125 = vmatmul.mubr.f32.gmra.mrb[0].mxu0 %v3055
    %v3126 = vpop.f32.mrb[0].mxu0
    %v3127 = vadd.f32 0.0, %v3126
    %v3128 = vpop.f32.mrb[0].mxu0
    %3129 = vdwg.mxu0
    %v3130 = vmul.f32 %v1987, 0.5
    %v3131 = vmul.f32 %v2063, 0.5
    %v3132 = vmul.f32 %v2139, 0.5
    %v3133 = vmul.f32 %v2215, 0.5
    %v3134 = vmul.f32 %v2291, 0.5
    %v3135 = vmul.f32 %v2367, 0.5
    %v3136 = vmul.f32 %v2443, 0.5
    %v3137 = vmul.f32 %v2519, 0.5
    %v3138 = vmul.f32 %v2595, 0.5
    %v3139 = vmul.f32 %v2671, 0.5
    %v3140 = vmul.f32 %v2747, 0.5
    %v3141 = vmul.f32 %v2823, 0.5
    %v3142 = vmul.f32 %v2899, 0.5
    %v3143 = vmul.f32 %v2975, 0.5
    %v3144 = vmul.f32 %v3051, 0.5
    %v3145 = vmul.f32 %v3127, 0.5
    %vm3146 = vcmask 64512
    %v3147 = vsel %vm3146, %v3130, -inf
    %3148 = vmax.xlane.f32.xlu0 %v3147
    %v3149 = vpop.xlane.xlu0 %3148
    %v3150 = vsel %vm3146, %v3131, -inf
    %3151 = vmax.xlane.f32.xlu0 %v3150
    %v3152 = vpop.xlane.xlu0 %3151
    %v3153 = vsel %vm3146, %v3132, -inf
    %3154 = vmax.xlane.f32.xlu0 %v3153
    %v3155 = vpop.xlane.xlu0 %3154
    %v3156 = vsel %vm3146, %v3133, -inf
    %3157 = vmax.xlane.f32.xlu0 %v3156
    %v3158 = vpop.xlane.xlu0 %3157
    %v3159 = vsel %vm3146, %v3134, -inf
    %3160 = vmax.xlane.f32.xlu0 %v3159
    %v3161 = vpop.xlane.xlu0 %3160
    %v3162 = vsel %vm3146, %v3135, -inf
    %3163 = vmax.xlane.f32.xlu0 %v3162
    %v3164 = vpop.xlane.xlu0 %3163
    %v3165 = vsel %vm3146, %v3136, -inf
    %3166 = vmax.xlane.f32.xlu0 %v3165
    %v3167 = vpop.xlane.xlu0 %3166
    %v3168 = vsel %vm3146, %v3137, -inf
    %3169 = vmax.xlane.f32.xlu0 %v3168
    %v3170 = vpop.xlane.xlu0 %3169
    %v3171 = vsel %vm3146, %v3138, -inf
    %3172 = vmax.xlane.f32.xlu0 %v3171
    %v3173 = vpop.xlane.xlu0 %3172
    %v3174 = vsel %vm3146, %v3139, -inf
    %3175 = vmax.xlane.f32.xlu0 %v3174
    %v3176 = vpop.xlane.xlu0 %3175
    %v3177 = vsel %vm3146, %v3140, -inf
    %3178 = vmax.xlane.f32.xlu0 %v3177
    %v3179 = vpop.xlane.xlu0 %3178
    %v3180 = vsel %vm3146, %v3141, -inf
    %3181 = vmax.xlane.f32.xlu0 %v3180
    %v3182 = vpop.xlane.xlu0 %3181
    %v3183 = vsel %vm3146, %v3142, -inf
    %3184 = vmax.xlane.f32.xlu0 %v3183
    %v3185 = vpop.xlane.xlu0 %3184
    %v3186 = vsel %vm3146, %v3143, -inf
    %3187 = vmax.xlane.f32.xlu0 %v3186
    %v3188 = vpop.xlane.xlu0 %3187
    %v3189 = vsel %vm3146, %v3144, -inf
    %3190 = vmax.xlane.f32.xlu0 %v3189
    %v3191 = vpop.xlane.xlu0 %3190
    %v3192 = vsel %vm3146, %v3145, -inf
    %3193 = vmax.xlane.f32.xlu0 %v3192
    %v3194 = vpop.xlane.xlu0 %3193
    %v3195 = vsub.f32 %v3130, %v3149
    %v3196 = vsub.f32 %v3131, %v3152
    %v3197 = vsub.f32 %v3132, %v3155
    %v3198 = vsub.f32 %v3133, %v3158
    %v3199 = vsub.f32 %v3134, %v3161
    %v3200 = vsub.f32 %v3135, %v3164
    %v3201 = vsub.f32 %v3136, %v3167
    %v3202 = vsub.f32 %v3137, %v3170
    %v3203 = vsub.f32 %v3138, %v3173
    %v3204 = vsub.f32 %v3139, %v3176
    %v3205 = vsub.f32 %v3140, %v3179
    %v3206 = vsub.f32 %v3141, %v3182
    %v3207 = vsub.f32 %v3142, %v3185
    %v3208 = vsub.f32 %v3143, %v3188
    %v3209 = vsub.f32 %v3144, %v3191
    %v3210 = vsub.f32 %v3145, %v3194
    %v3211 = vmul.f32 %v3195, 1.442695
    %v3212 = vpow.pop %v3211
    %v3213 = vmul.f32 %v3196, 1.442695
    %v3214 = vpow.pop %v3213
    %v3215 = vmul.f32 %v3197, 1.442695
    %v3216 = vpow.pop %v3215
    %v3217 = vmul.f32 %v3198, 1.442695
    %v3218 = vpow.pop %v3217
    %v3219 = vmul.f32 %v3199, 1.442695
    %v3220 = vpow.pop %v3219
    %v3221 = vmul.f32 %v3200, 1.442695
    %v3222 = vpow.pop %v3221
    %v3223 = vmul.f32 %v3201, 1.442695
    %v3224 = vpow.pop %v3223
    %v3225 = vmul.f32 %v3202, 1.442695
    %v3226 = vpow.pop %v3225
    %v3227 = vmul.f32 %v3203, 1.442695
    %v3228 = vpow.pop %v3227
    %v3229 = vmul.f32 %v3204, 1.442695
    %v3230 = vpow.pop %v3229
    %v3231 = vmul.f32 %v3205, 1.442695
    %v3232 = vpow.pop %v3231
    %v3233 = vmul.f32 %v3206, 1.442695
    %v3234 = vpow.pop %v3233
    %v3235 = vmul.f32 %v3207, 1.442695
    %v3236 = vpow.pop %v3235
    %v3237 = vmul.f32 %v3208, 1.442695
    %v3238 = vpow.pop %v3237
    %v3239 = vmul.f32 %v3209, 1.442695
    %v3240 = vpow.pop %v3239
    %v3241 = vmul.f32 %v3210, 1.442695
    %v3242 = vpow.pop %v3241
    %v3243 = vsel %vm3146, %v3212, 0.0
    %3244 = vadd.xlane.f32.xlu0 %v3243
    %v3245 = vpop.xlane.xlu0 %3244
    %v3246 = vsel %vm3146, %v3214, 0.0
    %3247 = vadd.xlane.f32.xlu0 %v3246
    %v3248 = vpop.xlane.xlu0 %3247
    %v3249 = vsel %vm3146, %v3216, 0.0
    %3250 = vadd.xlane.f32.xlu0 %v3249
    %v3251 = vpop.xlane.xlu0 %3250
    %v3252 = vsel %vm3146, %v3218, 0.0
    %3253 = vadd.xlane.f32.xlu0 %v3252
    %v3254 = vpop.xlane.xlu0 %3253
    %v3255 = vsel %vm3146, %v3220, 0.0
    %3256 = vadd.xlane.f32.xlu0 %v3255
    %v3257 = vpop.xlane.xlu0 %3256
    %v3258 = vsel %vm3146, %v3222, 0.0
    %3259 = vadd.xlane.f32.xlu0 %v3258
    %v3260 = vpop.xlane.xlu0 %3259
    %v3261 = vsel %vm3146, %v3224, 0.0
    %3262 = vadd.xlane.f32.xlu0 %v3261
    %v3263 = vpop.xlane.xlu0 %3262
    %v3264 = vsel %vm3146, %v3226, 0.0
    %3265 = vadd.xlane.f32.xlu0 %v3264
    %v3266 = vpop.xlane.xlu0 %3265
    %v3267 = vsel %vm3146, %v3228, 0.0
    %3268 = vadd.xlane.f32.xlu0 %v3267
    %v3269 = vpop.xlane.xlu0 %3268
    %v3270 = vsel %vm3146, %v3230, 0.0
    %3271 = vadd.xlane.f32.xlu0 %v3270
    %v3272 = vpop.xlane.xlu0 %3271
    %v3273 = vsel %vm3146, %v3232, 0.0
    %3274 = vadd.xlane.f32.xlu0 %v3273
    %v3275 = vpop.xlane.xlu0 %3274
    %v3276 = vsel %vm3146, %v3234, 0.0
    %3277 = vadd.xlane.f32.xlu0 %v3276
    %v3278 = vpop.xlane.xlu0 %3277
    %v3279 = vsel %vm3146, %v3236, 0.0
    %3280 = vadd.xlane.f32.xlu0 %v3279
    %v3281 = vpop.xlane.xlu0 %3280
    %v3282 = vsel %vm3146, %v3238, 0.0
    %3283 = vadd.xlane.f32.xlu0 %v3282
    %v3284 = vpop.xlane.xlu0 %3283
    %v3285 = vsel %vm3146, %v3240, 0.0
    %3286 = vadd.xlane.f32.xlu0 %v3285
    %v3287 = vpop.xlane.xlu0 %3286
    %v3288 = vsel %vm3146, %v3242, 0.0
    %3289 = vadd.xlane.f32.xlu0 %v3288
    %v3290 = vpop.xlane.xlu0 %3289
    %v3291 = vrcp.pop %v3245
    %v3292 = vrcp.pop %v3248
    %v3293 = vrcp.pop %v3251
    %v3294 = vrcp.pop %v3254
    %v3295 = vrcp.pop %v3257
    %v3296 = vrcp.pop %v3260
    %v3297 = vrcp.pop %v3263
    %v3298 = vrcp.pop %v3266
    %v3299 = vrcp.pop %v3269
    %v3300 = vrcp.pop %v3272
    %v3301 = vrcp.pop %v3275
    %v3302 = vrcp.pop %v3278
    %v3303 = vrcp.pop %v3281
    %v3304 = vrcp.pop %v3284
    %v3305 = vrcp.pop %v3287
    %v3306 = vrcp.pop %v3290
    %v3307 = vmul.f32 %v3212, %v3291
    %v3308 = vmul.f32 %v3214, %v3292
    %v3309 = vmul.f32 %v3216, %v3293
    %v3310 = vmul.f32 %v3218, %v3294
    %v3311 = vmul.f32 %v3220, %v3295
    %v3312 = vmul.f32 %v3222, %v3296
    %v3313 = vmul.f32 %v3224, %v3297
    %v3314 = vmul.f32 %v3226, %v3298
    %v3315 = vmul.f32 %v3228, %v3299
    %v3316 = vmul.f32 %v3230, %v3300
    %v3317 = vmul.f32 %v3232, %v3301
    %v3318 = vmul.f32 %v3234, %v3302
    %v3319 = vmul.f32 %v3236, %v3303
    %v3320 = vmul.f32 %v3238, %v3304
    %v3321 = vmul.f32 %v3240, %v3305
    %v3322 = vmul.f32 %v3242, %v3306
    %v3324 = vsel %vm3146, %v3307, 0
    %3326 = vmatprep.subr.mxu0 0.0
    %3327 = vmatpush1.msra.mxu0 %v1769
    %3328 = vmatprep.subr.mxu0 0.0
    %3329 = vmatpush1.msra.mxu0 0.0
    %3330 = vmatprep.subr.mxu0 0.0
    %3331 = vmatpush1.msra.mxu0 0.0
    %3332 = vmatprep.subr.mxu0 0.0
    %3333 = vmatpush1.msra.mxu0 0.0
    %3334 = vmatprep.subr.mxu0 0.0
    %3335 = vmatpush1.msra.mxu0 0.0
    %3336 = vmatprep.subr.mxu0 0.0
    %3337 = vmatpush1.msra.mxu0 0.0
    %3338 = vmatprep.subr.mxu0 0.0
    %3339 = vmatpush1.msra.mxu0 0.0
    %3340 = vmatprep.subr.mxu0 0.0
    %3341 = vmatpush1.msra.mxu0 0.0
    %3342 = vmatprep.subr.mxu0 0.0
    %3343 = vmatpush1.msra.mxu0 0.0
    %3344 = vmatprep.subr.mxu0 0.0
    %3345 = vmatpush1.msra.mxu0 0.0
    %3346 = vmatprep.subr.mxu0 0.0
    %3347 = vmatpush1.msra.mxu0 0.0
    %3348 = vmatprep.subr.mxu0 0.0
    %3349 = vmatpush1.msra.mxu0 0.0
    %3350 = vmatprep.subr.mxu0 0.0
    %3351 = vmatpush1.msra.mxu0 0.0
    %3352 = vmatprep.subr.mxu0 0.0
    %3353 = vmatpush1.msra.mxu0 0.0
    %3354 = vmatprep.subr.mxu0 0.0
    %3355 = vmatpush1.msra.mxu0 0.0
    %3356 = vmatprep.subr.mxu0 0.0
    %3357 = vmatpush1.msra.mxu0 0.0
    %3358 = vmatprep.subr.mxu0 0.0
    %3359 = vmatpush1.msra.mxu0 0.0
    %3360 = vmatprep.subr.mxu0 0.0
    %3361 = vmatpush1.msra.mxu0 0.0
    %3362 = vmatprep.subr.mxu0 0.0
    %3363 = vmatpush1.msra.mxu0 0.0
    %3364 = vmatprep.subr.mxu0 0.0
    %3365 = vmatpush1.msra.mxu0 0.0
    %3366 = vmatprep.subr.mxu0 0.0
    %3367 = vmatpush1.msra.mxu0 0.0
    %3368 = vmatprep.subr.mxu0 0.0
    %3369 = vmatpush1.msra.mxu0 0.0
    %3370 = vmatprep.subr.mxu0 0.0
    %3371 = vmatpush1.msra.mxu0 0.0
    %3372 = vmatprep.subr.mxu0 0.0
    %3373 = vmatpush1.msra.mxu0 0.0
    %3374 = vmatprep.subr.mxu0 0.0
    %3375 = vmatpush1.msra.mxu0 0.0
    %3376 = vmatprep.subr.mxu0 0.0
    %3377 = vmatpush1.msra.mxu0 0.0
    %3378 = vmatprep.subr.mxu0 0.0
    %3379 = vmatpush1.msra.mxu0 0.0
    %3380 = vmatprep.subr.mxu0 0.0
    %3381 = vmatpush1.msra.mxu0 0.0
    %3382 = vmatprep.subr.mxu0 0.0
    %3383 = vmatpush1.msra.mxu0 0.0
    %3384 = vmatprep.subr.mxu0 0.0
    %3385 = vmatpush1.msra.mxu0 0.0
    %3386 = vmatprep.subr.mxu0 0.0
    %3387 = vmatpush1.msra.mxu0 0.0
    %3388 = vmatprep.subr.mxu0 0.0
    %3389 = vmatpush1.msra.mxu0 0.0
    %3390 = vmatprep.mubr.f32.mxu0 0.0
    %3391 = vmatmul.mubr.f32.gmra.mrb[0].mxu0 %v3324
    %v3392 = vpop.f32.mrb[0].mxu0
    %v3393 = vadd.f32 0.0, %v3392
    %v3394 = vpop.f32.mrb[0].mxu0
    %3395 = vdwg.mxu0
    %v3397 = vsel %vm3146, %v3308, 0
    %3399 = vmatprep.subr.mxu0 0.0
    %3400 = vmatpush1.msra.mxu0 %v1770
    %3401 = vmatprep.subr.mxu0 0.0
    %3402 = vmatpush1.msra.mxu0 0.0
    %3403 = vmatprep.subr.mxu0 0.0
    %3404 = vmatpush1.msra.mxu0 0.0
    %3405 = vmatprep.subr.mxu0 0.0
    %3406 = vmatpush1.msra.mxu0 0.0
    %3407 = vmatprep.subr.mxu0 0.0
    %3408 = vmatpush1.msra.mxu0 0.0
    %3409 = vmatprep.subr.mxu0 0.0
    %3410 = vmatpush1.msra.mxu0 0.0
    %3411 = vmatprep.subr.mxu0 0.0
    %3412 = vmatpush1.msra.mxu0 0.0
    %3413 = vmatprep.subr.mxu0 0.0
    %3414 = vmatpush1.msra.mxu0 0.0
    %3415 = vmatprep.subr.mxu0 0.0
    %3416 = vmatpush1.msra.mxu0 0.0
    %3417 = vmatprep.subr.mxu0 0.0
    %3418 = vmatpush1.msra.mxu0 0.0
    %3419 = vmatprep.subr.mxu0 0.0
    %3420 = vmatpush1.msra.mxu0 0.0
    %3421 = vmatprep.subr.mxu0 0.0
    %3422 = vmatpush1.msra.mxu0 0.0
    %3423 = vmatprep.subr.mxu0 0.0
    %3424 = vmatpush1.msra.mxu0 0.0
    %3425 = vmatprep.subr.mxu0 0.0
    %3426 = vmatpush1.msra.mxu0 0.0
    %3427 = vmatprep.subr.mxu0 0.0
    %3428 = vmatpush1.msra.mxu0 0.0
    %3429 = vmatprep.subr.mxu0 0.0
    %3430 = vmatpush1.msra.mxu0 0.0
    %3431 = vmatprep.subr.mxu0 0.0
    %3432 = vmatpush1.msra.mxu0 0.0
    %3433 = vmatprep.subr.mxu0 0.0
    %3434 = vmatpush1.msra.mxu0 0.0
    %3435 = vmatprep.subr.mxu0 0.0
    %3436 = vmatpush1.msra.mxu0 0.0
    %3437 = vmatprep.subr.mxu0 0.0
    %3438 = vmatpush1.msra.mxu0 0.0
    %3439 = vmatprep.subr.mxu0 0.0
    %3440 = vmatpush1.msra.mxu0 0.0
    %3441 = vmatprep.subr.mxu0 0.0
    %3442 = vmatpush1.msra.mxu0 0.0
    %3443 = vmatprep.subr.mxu0 0.0
    %3444 = vmatpush1.msra.mxu0 0.0
    %3445 = vmatprep.subr.mxu0 0.0
    %3446 = vmatpush1.msra.mxu0 0.0
    %3447 = vmatprep.subr.mxu0 0.0
    %3448 = vmatpush1.msra.mxu0 0.0
    %3449 = vmatprep.subr.mxu0 0.0
    %3450 = vmatpush1.msra.mxu0 0.0
    %3451 = vmatprep.subr.mxu0 0.0
    %3452 = vmatpush1.msra.mxu0 0.0
    %3453 = vmatprep.subr.mxu0 0.0
    %3454 = vmatpush1.msra.mxu0 0.0
    %3455 = vmatprep.subr.mxu0 0.0
    %3456 = vmatpush1.msra.mxu0 0.0
    %3457 = vmatprep.subr.mxu0 0.0
    %3458 = vmatpush1.msra.mxu0 0.0
    %3459 = vmatprep.subr.mxu0 0.0
    %3460 = vmatpush1.msra.mxu0 0.0
    %3461 = vmatprep.subr.mxu0 0.0
    %3462 = vmatpush1.msra.mxu0 0.0
    %3463 = vmatprep.mubr.f32.mxu0 0.0
    %3464 = vmatmul.mubr.f32.gmra.mrb[0].mxu0 %v3397
    %v3465 = vpop.f32.mrb[0].mxu0
    %v3466 = vadd.f32 0.0, %v3465
    %v3467 = vpop.f32.mrb[0].mxu0
    %3468 = vdwg.mxu0
    %v3470 = vsel %vm3146, %v3309, 0
    %3472 = vmatprep.subr.mxu0 0.0
    %3473 = vmatpush1.msra.mxu0 %v1771
    %3474 = vmatprep.subr.mxu0 0.0
    %3475 = vmatpush1.msra.mxu0 0.0
    %3476 = vmatprep.subr.mxu0 0.0
    %3477 = vmatpush1.msra.mxu0 0.0
    %3478 = vmatprep.subr.mxu0 0.0
    %3479 = vmatpush1.msra.mxu0 0.0
    %3480 = vmatprep.subr.mxu0 0.0
    %3481 = vmatpush1.msra.mxu0 0.0
    %3482 = vmatprep.subr.mxu0 0.0
    %3483 = vmatpush1.msra.mxu0 0.0
    %3484 = vmatprep.subr.mxu0 0.0
    %3485 = vmatpush1.msra.mxu0 0.0
    %3486 = vmatprep.subr.mxu0 0.0
    %3487 = vmatpush1.msra.mxu0 0.0
    %3488 = vmatprep.subr.mxu0 0.0
    %3489 = vmatpush1.msra.mxu0 0.0
    %3490 = vmatprep.subr.mxu0 0.0
    %3491 = vmatpush1.msra.mxu0 0.0
    %3492 = vmatprep.subr.mxu0 0.0
    %3493 = vmatpush1.msra.mxu0 0.0
    %3494 = vmatprep.subr.mxu0 0.0
    %3495 = vmatpush1.msra.mxu0 0.0
    %3496 = vmatprep.subr.mxu0 0.0
    %3497 = vmatpush1.msra.mxu0 0.0
    %3498 = vmatprep.subr.mxu0 0.0
    %3499 = vmatpush1.msra.mxu0 0.0
    %3500 = vmatprep.subr.mxu0 0.0
    %3501 = vmatpush1.msra.mxu0 0.0
    %3502 = vmatprep.subr.mxu0 0.0
    %3503 = vmatpush1.msra.mxu0 0.0
    %3504 = vmatprep.subr.mxu0 0.0
    %3505 = vmatpush1.msra.mxu0 0.0
    %3506 = vmatprep.subr.mxu0 0.0
    %3507 = vmatpush1.msra.mxu0 0.0
    %3508 = vmatprep.subr.mxu0 0.0
    %3509 = vmatpush1.msra.mxu0 0.0
    %3510 = vmatprep.subr.mxu0 0.0
    %3511 = vmatpush1.msra.mxu0 0.0
    %3512 = vmatprep.subr.mxu0 0.0
    %3513 = vmatpush1.msra.mxu0 0.0
    %3514 = vmatprep.subr.mxu0 0.0
    %3515 = vmatpush1.msra.mxu0 0.0
    %3516 = vmatprep.subr.mxu0 0.0
    %3517 = vmatpush1.msra.mxu0 0.0
    %3518 = vmatprep.subr.mxu0 0.0
    %3519 = vmatpush1.msra.mxu0 0.0
    %3520 = vmatprep.subr.mxu0 0.0
    %3521 = vmatpush1.msra.mxu0 0.0
    %3522 = vmatprep.subr.mxu0 0.0
    %3523 = vmatpush1.msra.mxu0 0.0
    %3524 = vmatprep.subr.mxu0 0.0
    %3525 = vmatpush1.msra.mxu0 0.0
    %3526 = vmatprep.subr.mxu0 0.0
    %3527 = vmatpush1.msra.mxu0 0.0
    %3528 = vmatprep.subr.mxu0 0.0
    %3529 = vmatpush1.msra.mxu0 0.0
    %3530 = vmatprep.subr.mxu0 0.0
    %3531 = vmatpush1.msra.mxu0 0.0
    %3532 = vmatprep.subr.mxu0 0.0
    %3533 = vmatpush1.msra.mxu0 0.0
    %3534 = vmatprep.subr.mxu0 0.0
    %3535 = vmatpush1.msra.mxu0 0.0
    %3536 = vmatprep.mubr.f32.mxu0 0.0
    %3537 = vmatmul.mubr.f32.gmra.mrb[0].mxu0 %v3470
    %v3538 = vpop.f32.mrb[0].mxu0
    %v3539 = vadd.f32 0.0, %v3538
    %v3540 = vpop.f32.mrb[0].mxu0
    %3541 = vdwg.mxu0
    %v3543 = vsel %vm3146, %v3310, 0
    %3545 = vmatprep.subr.mxu0 0.0
    %3546 = vmatpush1.msra.mxu0 %v1772
    %3547 = vmatprep.subr.mxu0 0.0
    %3548 = vmatpush1.msra.mxu0 0.0
    %3549 = vmatprep.subr.mxu0 0.0
    %3550 = vmatpush1.msra.mxu0 0.0
    %3551 = vmatprep.subr.mxu0 0.0
    %3552 = vmatpush1.msra.mxu0 0.0
    %3553 = vmatprep.subr.mxu0 0.0
    %3554 = vmatpush1.msra.mxu0 0.0
    %3555 = vmatprep.subr.mxu0 0.0
    %3556 = vmatpush1.msra.mxu0 0.0
    %3557 = vmatprep.subr.mxu0 0.0
    %3558 = vmatpush1.msra.mxu0 0.0
    %3559 = vmatprep.subr.mxu0 0.0
    %3560 = vmatpush1.msra.mxu0 0.0
    %3561 = vmatprep.subr.mxu0 0.0
    %3562 = vmatpush1.msra.mxu0 0.0
    %3563 = vmatprep.subr.mxu0 0.0
    %3564 = vmatpush1.msra.mxu0 0.0
    %3565 = vmatprep.subr.mxu0 0.0
    %3566 = vmatpush1.msra.mxu0 0.0
    %3567 = vmatprep.subr.mxu0 0.0
    %3568 = vmatpush1.msra.mxu0 0.0
    %3569 = vmatprep.subr.mxu0 0.0
    %3570 = vmatpush1.msra.mxu0 0.0
    %3571 = vmatprep.subr.mxu0 0.0
    %3572 = vmatpush1.msra.mxu0 0.0
    %3573 = vmatprep.subr.mxu0 0.0
    %3574 = vmatpush1.msra.mxu0 0.0
    %3575 = vmatprep.subr.mxu0 0.0
    %3576 = vmatpush1.msra.mxu0 0.0
    %3577 = vmatprep.subr.mxu0 0.0
    %3578 = vmatpush1.msra.mxu0 0.0
    %3579 = vmatprep.subr.mxu0 0.0
    %3580 = vmatpush1.msra.mxu0 0.0
    %3581 = vmatprep.subr.mxu0 0.0
    %3582 = vmatpush1.msra.mxu0 0.0
    %3583 = vmatprep.subr.mxu0 0.0
    %3584 = vmatpush1.msra.mxu0 0.0
    %3585 = vmatprep.subr.mxu0 0.0
    %3586 = vmatpush1.msra.mxu0 0.0
    %3587 = vmatprep.subr.mxu0 0.0
    %3588 = vmatpush1.msra.mxu0 0.0
    %3589 = vmatprep.subr.mxu0 0.0
    %3590 = vmatpush1.msra.mxu0 0.0
    %3591 = vmatprep.subr.mxu0 0.0
    %3592 = vmatpush1.msra.mxu0 0.0
    %3593 = vmatprep.subr.mxu0 0.0
    %3594 = vmatpush1.msra.mxu0 0.0
    %3595 = vmatprep.subr.mxu0 0.0
    %3596 = vmatpush1.msra.mxu0 0.0
    %3597 = vmatprep.subr.mxu0 0.0
    %3598 = vmatpush1.msra.mxu0 0.0
    %3599 = vmatprep.subr.mxu0 0.0
    %3600 = vmatpush1.msra.mxu0 0.0
    %3601 = vmatprep.subr.mxu0 0.0
    %3602 = vmatpush1.msra.mxu0 0.0
    %3603 = vmatprep.subr.mxu0 0.0
    %3604 = vmatpush1.msra.mxu0 0.0
    %3605 = vmatprep.subr.mxu0 0.0
    %3606 = vmatpush1.msra.mxu0 0.0
    %3607 = vmatprep.subr.mxu0 0.0
    %3608 = vmatpush1.msra.mxu0 0.0
    %3609 = vmatprep.mubr.f32.mxu0 0.0
    %3610 = vmatmul.mubr.f32.gmra.mrb[0].mxu0 %v3543
    %v3611 = vpop.f32.mrb[0].mxu0
    %v3612 = vadd.f32 0.0, %v3611
    %v3613 = vpop.f32.mrb[0].mxu0
    %3614 = vdwg.mxu0
    %v3616 = vsel %vm3146, %v3311, 0
    %3618 = vmatprep.subr.mxu0 0.0
    %3619 = vmatpush1.msra.mxu0 %v1773
    %3620 = vmatprep.subr.mxu0 0.0
    %3621 = vmatpush1.msra.mxu0 0.0
    %3622 = vmatprep.subr.mxu0 0.0
    %3623 = vmatpush1.msra.mxu0 0.0
    %3624 = vmatprep.subr.mxu0 0.0
    %3625 = vmatpush1.msra.mxu0 0.0
    %3626 = vmatprep.subr.mxu0 0.0
    %3627 = vmatpush1.msra.mxu0 0.0
    %3628 = vmatprep.subr.mxu0 0.0
    %3629 = vmatpush1.msra.mxu0 0.0
    %3630 = vmatprep.subr.mxu0 0.0
    %3631 = vmatpush1.msra.mxu0 0.0
    %3632 = vmatprep.subr.mxu0 0.0
    %3633 = vmatpush1.msra.mxu0 0.0
    %3634 = vmatprep.subr.mxu0 0.0
    %3635 = vmatpush1.msra.mxu0 0.0
    %3636 = vmatprep.subr.mxu0 0.0
    %3637 = vmatpush1.msra.mxu0 0.0
    %3638 = vmatprep.subr.mxu0 0.0
    %3639 = vmatpush1.msra.mxu0 0.0
    %3640 = vmatprep.subr.mxu0 0.0
    %3641 = vmatpush1.msra.mxu0 0.0
    %3642 = vmatprep.subr.mxu0 0.0
    %3643 = vmatpush1.msra.mxu0 0.0
    %3644 = vmatprep.subr.mxu0 0.0
    %3645 = vmatpush1.msra.mxu0 0.0
    %3646 = vmatprep.subr.mxu0 0.0
    %3647 = vmatpush1.msra.mxu0 0.0
    %3648 = vmatprep.subr.mxu0 0.0
    %3649 = vmatpush1.msra.mxu0 0.0
    %3650 = vmatprep.subr.mxu0 0.0
    %3651 = vmatpush1.msra.mxu0 0.0
    %3652 = vmatprep.subr.mxu0 0.0
    %3653 = vmatpush1.msra.mxu0 0.0
    %3654 = vmatprep.subr.mxu0 0.0
    %3655 = vmatpush1.msra.mxu0 0.0
    %3656 = vmatprep.subr.mxu0 0.0
    %3657 = vmatpush1.msra.mxu0 0.0
    %3658 = vmatprep.subr.mxu0 0.0
    %3659 = vmatpush1.msra.mxu0 0.0
    %3660 = vmatprep.subr.mxu0 0.0
    %3661 = vmatpush1.msra.mxu0 0.0
    %3662 = vmatprep.subr.mxu0 0.0
    %3663 = vmatpush1.msra.mxu0 0.0
    %3664 = vmatprep.subr.mxu0 0.0
    %3665 = vmatpush1.msra.mxu0 0.0
    %3666 = vmatprep.subr.mxu0 0.0
    %3667 = vmatpush1.msra.mxu0 0.0
    %3668 = vmatprep.subr.mxu0 0.0
    %3669 = vmatpush1.msra.mxu0 0.0
    %3670 = vmatprep.subr.mxu0 0.0
    %3671 = vmatpush1.msra.mxu0 0.0
    %3672 = vmatprep.subr.mxu0 0.0
    %3673 = vmatpush1.msra.mxu0 0.0
    %3674 = vmatprep.subr.mxu0 0.0
    %3675 = vmatpush1.msra.mxu0 0.0
    %3676 = vmatprep.subr.mxu0 0.0
    %3677 = vmatpush1.msra.mxu0 0.0
    %3678 = vmatprep.subr.mxu0 0.0
    %3679 = vmatpush1.msra.mxu0 0.0
    %3680 = vmatprep.subr.mxu0 0.0
    %3681 = vmatpush1.msra.mxu0 0.0
    %3682 = vmatprep.mubr.f32.mxu0 0.0
    %3683 = vmatmul.mubr.f32.gmra.mrb[0].mxu0 %v3616
    %v3684 = vpop.f32.mrb[0].mxu0
    %v3685 = vadd.f32 0.0, %v3684
    %v3686 = vpop.f32.mrb[0].mxu0
    %3687 = vdwg.mxu0
    %v3689 = vsel %vm3146, %v3312, 0
    %3691 = vmatprep.subr.mxu0 0.0
    %3692 = vmatpush1.msra.mxu0 %v1774
    %3693 = vmatprep.subr.mxu0 0.0
    %3694 = vmatpush1.msra.mxu0 0.0
    %3695 = vmatprep.subr.mxu0 0.0
    %3696 = vmatpush1.msra.mxu0 0.0
    %3697 = vmatprep.subr.mxu0 0.0
    %3698 = vmatpush1.msra.mxu0 0.0
    %3699 = vmatprep.subr.mxu0 0.0
    %3700 = vmatpush1.msra.mxu0 0.0
    %3701 = vmatprep.subr.mxu0 0.0
    %3702 = vmatpush1.msra.mxu0 0.0
    %3703 = vmatprep.subr.mxu0 0.0
    %3704 = vmatpush1.msra.mxu0 0.0
    %3705 = vmatprep.subr.mxu0 0.0
    %3706 = vmatpush1.msra.mxu0 0.0
    %3707 = vmatprep.subr.mxu0 0.0
    %3708 = vmatpush1.msra.mxu0 0.0
    %3709 = vmatprep.subr.mxu0 0.0
    %3710 = vmatpush1.msra.mxu0 0.0
    %3711 = vmatprep.subr.mxu0 0.0
    %3712 = vmatpush1.msra.mxu0 0.0
    %3713 = vmatprep.subr.mxu0 0.0
    %3714 = vmatpush1.msra.mxu0 0.0
    %3715 = vmatprep.subr.mxu0 0.0
    %3716 = vmatpush1.msra.mxu0 0.0
    %3717 = vmatprep.subr.mxu0 0.0
    %3718 = vmatpush1.msra.mxu0 0.0
    %3719 = vmatprep.subr.mxu0 0.0
    %3720 = vmatpush1.msra.mxu0 0.0
    %3721 = vmatprep.subr.mxu0 0.0
    %3722 = vmatpush1.msra.mxu0 0.0
    %3723 = vmatprep.subr.mxu0 0.0
    %3724 = vmatpush1.msra.mxu0 0.0
    %3725 = vmatprep.subr.mxu0 0.0
    %3726 = vmatpush1.msra.mxu0 0.0
    %3727 = vmatprep.subr.mxu0 0.0
    %3728 = vmatpush1.msra.mxu0 0.0
    %3729 = vmatprep.subr.mxu0 0.0
    %3730 = vmatpush1.msra.mxu0 0.0
    %3731 = vmatprep.subr.mxu0 0.0
    %3732 = vmatpush1.msra.mxu0 0.0
    %3733 = vmatprep.subr.mxu0 0.0
    %3734 = vmatpush1.msra.mxu0 0.0
    %3735 = vmatprep.subr.mxu0 0.0
    %3736 = vmatpush1.msra.mxu0 0.0
    %3737 = vmatprep.subr.mxu0 0.0
    %3738 = vmatpush1.msra.mxu0 0.0
    %3739 = vmatprep.subr.mxu0 0.0
    %3740 = vmatpush1.msra.mxu0 0.0
    %3741 = vmatprep.subr.mxu0 0.0
    %3742 = vmatpush1.msra.mxu0 0.0
    %3743 = vmatprep.subr.mxu0 0.0
    %3744 = vmatpush1.msra.mxu0 0.0
    %3745 = vmatprep.subr.mxu0 0.0
    %3746 = vmatpush1.msra.mxu0 0.0
    %3747 = vmatprep.subr.mxu0 0.0
    %3748 = vmatpush1.msra.mxu0 0.0
    %3749 = vmatprep.subr.mxu0 0.0
    %3750 = vmatpush1.msra.mxu0 0.0
    %3751 = vmatprep.subr.mxu0 0.0
    %3752 = vmatpush1.msra.mxu0 0.0
    %3753 = vmatprep.subr.mxu0 0.0
    %3754 = vmatpush1.msra.mxu0 0.0
    %3755 = vmatprep.mubr.f32.mxu0 0.0
    %3756 = vmatmul.mubr.f32.gmra.mrb[0].mxu0 %v3689
    %v3757 = vpop.f32.mrb[0].mxu0
    %v3758 = vadd.f32 0.0, %v3757
    %v3759 = vpop.f32.mrb[0].mxu0
    %3760 = vdwg.mxu0
    %v3762 = vsel %vm3146, %v3313, 0
    %3764 = vmatprep.subr.mxu0 0.0
    %3765 = vmatpush1.msra.mxu0 %v1775
    %3766 = vmatprep.subr.mxu0 0.0
    %3767 = vmatpush1.msra.mxu0 0.0
    %3768 = vmatprep.subr.mxu0 0.0
    %3769 = vmatpush1.msra.mxu0 0.0
    %3770 = vmatprep.subr.mxu0 0.0
    %3771 = vmatpush1.msra.mxu0 0.0
    %3772 = vmatprep.subr.mxu0 0.0
    %3773 = vmatpush1.msra.mxu0 0.0
    %3774 = vmatprep.subr.mxu0 0.0
    %3775 = vmatpush1.msra.mxu0 0.0
    %3776 = vmatprep.subr.mxu0 0.0
    %3777 = vmatpush1.msra.mxu0 0.0
    %3778 = vmatprep.subr.mxu0 0.0
    %3779 = vmatpush1.msra.mxu0 0.0
    %3780 = vmatprep.subr.mxu0 0.0
    %3781 = vmatpush1.msra.mxu0 0.0
    %3782 = vmatprep.subr.mxu0 0.0
    %3783 = vmatpush1.msra.mxu0 0.0
    %3784 = vmatprep.subr.mxu0 0.0
    %3785 = vmatpush1.msra.mxu0 0.0
    %3786 = vmatprep.subr.mxu0 0.0
    %3787 = vmatpush1.msra.mxu0 0.0
    %3788 = vmatprep.subr.mxu0 0.0
    %3789 = vmatpush1.msra.mxu0 0.0
    %3790 = vmatprep.subr.mxu0 0.0
    %3791 = vmatpush1.msra.mxu0 0.0
    %3792 = vmatprep.subr.mxu0 0.0
    %3793 = vmatpush1.msra.mxu0 0.0
    %3794 = vmatprep.subr.mxu0 0.0
    %3795 = vmatpush1.msra.mxu0 0.0
    %3796 = vmatprep.subr.mxu0 0.0
    %3797 = vmatpush1.msra.mxu0 0.0
    %3798 = vmatprep.subr.mxu0 0.0
    %3799 = vmatpush1.msra.mxu0 0.0
    %3800 = vmatprep.subr.mxu0 0.0
    %3801 = vmatpush1.msra.mxu0 0.0
    %3802 = vmatprep.subr.mxu0 0.0
    %3803 = vmatpush1.msra.mxu0 0.0
    %3804 = vmatprep.subr.mxu0 0.0
    %3805 = vmatpush1.msra.mxu0 0.0
    %3806 = vmatprep.subr.mxu0 0.0
    %3807 = vmatpush1.msra.mxu0 0.0
    %3808 = vmatprep.subr.mxu0 0.0
    %3809 = vmatpush1.msra.mxu0 0.0
    %3810 = vmatprep.subr.mxu0 0.0
    %3811 = vmatpush1.msra.mxu0 0.0
    %3812 = vmatprep.subr.mxu0 0.0
    %3813 = vmatpush1.msra.mxu0 0.0
    %3814 = vmatprep.subr.mxu0 0.0
    %3815 = vmatpush1.msra.mxu0 0.0
    %3816 = vmatprep.subr.mxu0 0.0
    %3817 = vmatpush1.msra.mxu0 0.0
    %3818 = vmatprep.subr.mxu0 0.0
    %3819 = vmatpush1.msra.mxu0 0.0
    %3820 = vmatprep.subr.mxu0 0.0
    %3821 = vmatpush1.msra.mxu0 0.0
    %3822 = vmatprep.subr.mxu0 0.0
    %3823 = vmatpush1.msra.mxu0 0.0
    %3824 = vmatprep.subr.mxu0 0.0
    %3825 = vmatpush1.msra.mxu0 0.0
    %3826 = vmatprep.subr.mxu0 0.0
    %3827 = vmatpush1.msra.mxu0 0.0
    %3828 = vmatprep.mubr.f32.mxu0 0.0
    %3829 = vmatmul.mubr.f32.gmra.mrb[0].mxu0 %v3762
    %v3830 = vpop.f32.mrb[0].mxu0
    %v3831 = vadd.f32 0.0, %v3830
    %v3832 = vpop.f32.mrb[0].mxu0
    %3833 = vdwg.mxu0
    %v3835 = vsel %vm3146, %v3314, 0
    %3837 = vmatprep.subr.mxu0 0.0
    %3838 = vmatpush1.msra.mxu0 %v1776
    %3839 = vmatprep.subr.mxu0 0.0
    %3840 = vmatpush1.msra.mxu0 0.0
    %3841 = vmatprep.subr.mxu0 0.0
    %3842 = vmatpush1.msra.mxu0 0.0
    %3843 = vmatprep.subr.mxu0 0.0
    %3844 = vmatpush1.msra.mxu0 0.0
    %3845 = vmatprep.subr.mxu0 0.0
    %3846 = vmatpush1.msra.mxu0 0.0
    %3847 = vmatprep.subr.mxu0 0.0
    %3848 = vmatpush1.msra.mxu0 0.0
    %3849 = vmatprep.subr.mxu0 0.0
    %3850 = vmatpush1.msra.mxu0 0.0
    %3851 = vmatprep.subr.mxu0 0.0
    %3852 = vmatpush1.msra.mxu0 0.0
    %3853 = vmatprep.subr.mxu0 0.0
    %3854 = vmatpush1.msra.mxu0 0.0
    %3855 = vmatprep.subr.mxu0 0.0
    %3856 = vmatpush1.msra.mxu0 0.0
    %3857 = vmatprep.subr.mxu0 0.0
    %3858 = vmatpush1.msra.mxu0 0.0
    %3859 = vmatprep.subr.mxu0 0.0
    %3860 = vmatpush1.msra.mxu0 0.0
    %3861 = vmatprep.subr.mxu0 0.0
    %3862 = vmatpush1.msra.mxu0 0.0
    %3863 = vmatprep.subr.mxu0 0.0
    %3864 = vmatpush1.msra.mxu0 0.0
    %3865 = vmatprep.subr.mxu0 0.0
    %3866 = vmatpush1.msra.mxu0 0.0
    %3867 = vmatprep.subr.mxu0 0.0
    %3868 = vmatpush1.msra.mxu0 0.0
    %3869 = vmatprep.subr.mxu0 0.0
    %3870 = vmatpush1.msra.mxu0 0.0
    %3871 = vmatprep.subr.mxu0 0.0
    %3872 = vmatpush1.msra.mxu0 0.0
    %3873 = vmatprep.subr.mxu0 0.0
    %3874 = vmatpush1.msra.mxu0 0.0
    %3875 = vmatprep.subr.mxu0 0.0
    %3876 = vmatpush1.msra.mxu0 0.0
    %3877 = vmatprep.subr.mxu0 0.0
    %3878 = vmatpush1.msra.mxu0 0.0
    %3879 = vmatprep.subr.mxu0 0.0
    %3880 = vmatpush1.msra.mxu0 0.0
    %3881 = vmatprep.subr.mxu0 0.0
    %3882 = vmatpush1.msra.mxu0 0.0
    %3883 = vmatprep.subr.mxu0 0.0
    %3884 = vmatpush1.msra.mxu0 0.0
    %3885 = vmatprep.subr.mxu0 0.0
    %3886 = vmatpush1.msra.mxu0 0.0
    %3887 = vmatprep.subr.mxu0 0.0
    %3888 = vmatpush1.msra.mxu0 0.0
    %3889 = vmatprep.subr.mxu0 0.0
    %3890 = vmatpush1.msra.mxu0 0.0
    %3891 = vmatprep.subr.mxu0 0.0
    %3892 = vmatpush1.msra.mxu0 0.0
    %3893 = vmatprep.subr.mxu0 0.0
    %3894 = vmatpush1.msra.mxu0 0.0
    %3895 = vmatprep.subr.mxu0 0.0
    %3896 = vmatpush1.msra.mxu0 0.0
    %3897 = vmatprep.subr.mxu0 0.0
    %3898 = vmatpush1.msra.mxu0 0.0
    %3899 = vmatprep.subr.mxu0 0.0
    %3900 = vmatpush1.msra.mxu0 0.0
    %3901 = vmatprep.mubr.f32.mxu0 0.0
    %3902 = vmatmul.mubr.f32.gmra.mrb[0].mxu0 %v3835
    %v3903 = vpop.f32.mrb[0].mxu0
    %v3904 = vadd.f32 0.0, %v3903
    %v3905 = vpop.f32.mrb[0].mxu0
    %3906 = vdwg.mxu0
    %v3908 = vsel %vm3146, %v3315, 0
    %3910 = vmatprep.subr.mxu0 0.0
    %3911 = vmatpush1.msra.mxu0 %v1905
    %3912 = vmatprep.subr.mxu0 0.0
    %3913 = vmatpush1.msra.mxu0 0.0
    %3914 = vmatprep.subr.mxu0 0.0
    %3915 = vmatpush1.msra.mxu0 0.0
    %3916 = vmatprep.subr.mxu0 0.0
    %3917 = vmatpush1.msra.mxu0 0.0
    %3918 = vmatprep.subr.mxu0 0.0
    %3919 = vmatpush1.msra.mxu0 0.0
    %3920 = vmatprep.subr.mxu0 0.0
    %3921 = vmatpush1.msra.mxu0 0.0
    %3922 = vmatprep.subr.mxu0 0.0
    %3923 = vmatpush1.msra.mxu0 0.0
    %3924 = vmatprep.subr.mxu0 0.0
    %3925 = vmatpush1.msra.mxu0 0.0
    %3926 = vmatprep.subr.mxu0 0.0
    %3927 = vmatpush1.msra.mxu0 0.0
    %3928 = vmatprep.subr.mxu0 0.0
    %3929 = vmatpush1.msra.mxu0 0.0
    %3930 = vmatprep.subr.mxu0 0.0
    %3931 = vmatpush1.msra.mxu0 0.0
    %3932 = vmatprep.subr.mxu0 0.0
    %3933 = vmatpush1.msra.mxu0 0.0
    %3934 = vmatprep.subr.mxu0 0.0
    %3935 = vmatpush1.msra.mxu0 0.0
    %3936 = vmatprep.subr.mxu0 0.0
    %3937 = vmatpush1.msra.mxu0 0.0
    %3938 = vmatprep.subr.mxu0 0.0
    %3939 = vmatpush1.msra.mxu0 0.0
    %3940 = vmatprep.subr.mxu0 0.0
    %3941 = vmatpush1.msra.mxu0 0.0
    %3942 = vmatprep.subr.mxu0 0.0
    %3943 = vmatpush1.msra.mxu0 0.0
    %3944 = vmatprep.subr.mxu0 0.0
    %3945 = vmatpush1.msra.mxu0 0.0
    %3946 = vmatprep.subr.mxu0 0.0
    %3947 = vmatpush1.msra.mxu0 0.0
    %3948 = vmatprep.subr.mxu0 0.0
    %3949 = vmatpush1.msra.mxu0 0.0
    %3950 = vmatprep.subr.mxu0 0.0
    %3951 = vmatpush1.msra.mxu0 0.0
    %3952 = vmatprep.subr.mxu0 0.0
    %3953 = vmatpush1.msra.mxu0 0.0
    %3954 = vmatprep.subr.mxu0 0.0
    %3955 = vmatpush1.msra.mxu0 0.0
    %3956 = vmatprep.subr.mxu0 0.0
    %3957 = vmatpush1.msra.mxu0 0.0
    %3958 = vmatprep.subr.mxu0 0.0
    %3959 = vmatpush1.msra.mxu0 0.0
    %3960 = vmatprep.subr.mxu0 0.0
    %3961 = vmatpush1.msra.mxu0 0.0
    %3962 = vmatprep.subr.mxu0 0.0
    %3963 = vmatpush1.msra.mxu0 0.0
    %3964 = vmatprep.subr.mxu0 0.0
    %3965 = vmatpush1.msra.mxu0 0.0
    %3966 = vmatprep.subr.mxu0 0.0
    %3967 = vmatpush1.msra.mxu0 0.0
    %3968 = vmatprep.subr.mxu0 0.0
    %3969 = vmatpush1.msra.mxu0 0.0
    %3970 = vmatprep.subr.mxu0 0.0
    %3971 = vmatpush1.msra.mxu0 0.0
    %3972 = vmatprep.subr.mxu0 0.0
    %3973 = vmatpush1.msra.mxu0 0.0
    %3974 = vmatprep.mubr.f32.mxu0 0.0
    %3975 = vmatmul.mubr.f32.gmra.mrb[0].mxu0 %v3908
    %v3976 = vpop.f32.mrb[0].mxu0
    %v3977 = vadd.f32 0.0, %v3976
    %v3978 = vpop.f32.mrb[0].mxu0
    %3979 = vdwg.mxu0
    %v3981 = vsel %vm3146, %v3316, 0
    %3983 = vmatprep.subr.mxu0 0.0
    %3984 = vmatpush1.msra.mxu0 %v1906
    %3985 = vmatprep.subr.mxu0 0.0
    %3986 = vmatpush1.msra.mxu0 0.0
    %3987 = vmatprep.subr.mxu0 0.0
    %3988 = vmatpush1.msra.mxu0 0.0
    %3989 = vmatprep.subr.mxu0 0.0
    %3990 = vmatpush1.msra.mxu0 0.0
    %3991 = vmatprep.subr.mxu0 0.0
    %3992 = vmatpush1.msra.mxu0 0.0
    %3993 = vmatprep.subr.mxu0 0.0
    %3994 = vmatpush1.msra.mxu0 0.0
    %3995 = vmatprep.subr.mxu0 0.0
    %3996 = vmatpush1.msra.mxu0 0.0
    %3997 = vmatprep.subr.mxu0 0.0
    %3998 = vmatpush1.msra.mxu0 0.0
    %3999 = vmatprep.subr.mxu0 0.0
    %4000 = vmatpush1.msra.mxu0 0.0
    %4001 = vmatprep.subr.mxu0 0.0
    %4002 = vmatpush1.msra.mxu0 0.0
    %4003 = vmatprep.subr.mxu0 0.0
    %4004 = vmatpush1.msra.mxu0 0.0
    %4005 = vmatprep.subr.mxu0 0.0
    %4006 = vmatpush1.msra.mxu0 0.0
    %4007 = vmatprep.subr.mxu0 0.0
    %4008 = vmatpush1.msra.mxu0 0.0
    %4009 = vmatprep.subr.mxu0 0.0
    %4010 = vmatpush1.msra.mxu0 0.0
    %4011 = vmatprep.subr.mxu0 0.0
    %4012 = vmatpush1.msra.mxu0 0.0
    %4013 = vmatprep.subr.mxu0 0.0
    %4014 = vmatpush1.msra.mxu0 0.0
    %4015 = vmatprep.subr.mxu0 0.0
    %4016 = vmatpush1.msra.mxu0 0.0
    %4017 = vmatprep.subr.mxu0 0.0
    %4018 = vmatpush1.msra.mxu0 0.0
    %4019 = vmatprep.subr.mxu0 0.0
    %4020 = vmatpush1.msra.mxu0 0.0
    %4021 = vmatprep.subr.mxu0 0.0
    %4022 = vmatpush1.msra.mxu0 0.0
    %4023 = vmatprep.subr.mxu0 0.0
    %4024 = vmatpush1.msra.mxu0 0.0
    %4025 = vmatprep.subr.mxu0 0.0
    %4026 = vmatpush1.msra.mxu0 0.0
    %4027 = vmatprep.subr.mxu0 0.0
    %4028 = vmatpush1.msra.mxu0 0.0
    %4029 = vmatprep.subr.mxu0 0.0
    %4030 = vmatpush1.msra.mxu0 0.0
    %4031 = vmatprep.subr.mxu0 0.0
    %4032 = vmatpush1.msra.mxu0 0.0
    %4033 = vmatprep.subr.mxu0 0.0
    %4034 = vmatpush1.msra.mxu0 0.0
    %4035 = vmatprep.subr.mxu0 0.0
    %4036 = vmatpush1.msra.mxu0 0.0
    %4037 = vmatprep.subr.mxu0 0.0
    %4038 = vmatpush1.msra.mxu0 0.0
    %4039 = vmatprep.subr.mxu0 0.0
    %4040 = vmatpush1.msra.mxu0 0.0
    %4041 = vmatprep.subr.mxu0 0.0
    %4042 = vmatpush1.msra.mxu0 0.0
    %4043 = vmatprep.subr.mxu0 0.0
    %4044 = vmatpush1.msra.mxu0 0.0
    %4045 = vmatprep.subr.mxu0 0.0
    %4046 = vmatpush1.msra.mxu0 0.0
    %4047 = vmatprep.mubr.f32.mxu0 0.0
    %4048 = vmatmul.mubr.f32.gmra.mrb[0].mxu0 %v3981
    %v4049 = vpop.f32.mrb[0].mxu0
    %v4050 = vadd.f32 0.0, %v4049
    %v4051 = vpop.f32.mrb[0].mxu0
    %4052 = vdwg.mxu0
    %v4054 = vsel %vm3146, %v3317, 0
    %4056 = vmatprep.subr.mxu0 0.0
    %4057 = vmatpush1.msra.mxu0 %v1907
    %4058 = vmatprep.subr.mxu0 0.0
    %4059 = vmatpush1.msra.mxu0 0.0
    %4060 = vmatprep.subr.mxu0 0.0
    %4061 = vmatpush1.msra.mxu0 0.0
    %4062 = vmatprep.subr.mxu0 0.0
    %4063 = vmatpush1.msra.mxu0 0.0
    %4064 = vmatprep.subr.mxu0 0.0
    %4065 = vmatpush1.msra.mxu0 0.0
    %4066 = vmatprep.subr.mxu0 0.0
    %4067 = vmatpush1.msra.mxu0 0.0
    %4068 = vmatprep.subr.mxu0 0.0
    %4069 = vmatpush1.msra.mxu0 0.0
    %4070 = vmatprep.subr.mxu0 0.0
    %4071 = vmatpush1.msra.mxu0 0.0
    %4072 = vmatprep.subr.mxu0 0.0
    %4073 = vmatpush1.msra.mxu0 0.0
    %4074 = vmatprep.subr.mxu0 0.0
    %4075 = vmatpush1.msra.mxu0 0.0
    %4076 = vmatprep.subr.mxu0 0.0
    %4077 = vmatpush1.msra.mxu0 0.0
    %4078 = vmatprep.subr.mxu0 0.0
    %4079 = vmatpush1.msra.mxu0 0.0
    %4080 = vmatprep.subr.mxu0 0.0
    %4081 = vmatpush1.msra.mxu0 0.0
    %4082 = vmatprep.subr.mxu0 0.0
    %4083 = vmatpush1.msra.mxu0 0.0
    %4084 = vmatprep.subr.mxu0 0.0
    %4085 = vmatpush1.msra.mxu0 0.0
    %4086 = vmatprep.subr.mxu0 0.0
    %4087 = vmatpush1.msra.mxu0 0.0
    %4088 = vmatprep.subr.mxu0 0.0
    %4089 = vmatpush1.msra.mxu0 0.0
    %4090 = vmatprep.subr.mxu0 0.0
    %4091 = vmatpush1.msra.mxu0 0.0
    %4092 = vmatprep.subr.mxu0 0.0
    %4093 = vmatpush1.msra.mxu0 0.0
    %4094 = vmatprep.subr.mxu0 0.0
    %4095 = vmatpush1.msra.mxu0 0.0
    %4096 = vmatprep.subr.mxu0 0.0
    %4097 = vmatpush1.msra.mxu0 0.0
    %4098 = vmatprep.subr.mxu0 0.0
    %4099 = vmatpush1.msra.mxu0 0.0
    %4100 = vmatprep.subr.mxu0 0.0
    %4101 = vmatpush1.msra.mxu0 0.0
    %4102 = vmatprep.subr.mxu0 0.0
    %4103 = vmatpush1.msra.mxu0 0.0
    %4104 = vmatprep.subr.mxu0 0.0
    %4105 = vmatpush1.msra.mxu0 0.0
    %4106 = vmatprep.subr.mxu0 0.0
    %4107 = vmatpush1.msra.mxu0 0.0
    %4108 = vmatprep.subr.mxu0 0.0
    %4109 = vmatpush1.msra.mxu0 0.0
    %4110 = vmatprep.subr.mxu0 0.0
    %4111 = vmatpush1.msra.mxu0 0.0
    %4112 = vmatprep.subr.mxu0 0.0
    %4113 = vmatpush1.msra.mxu0 0.0
    %4114 = vmatprep.subr.mxu0 0.0
    %4115 = vmatpush1.msra.mxu0 0.0
    %4116 = vmatprep.subr.mxu0 0.0
    %4117 = vmatpush1.msra.mxu0 0.0
    %4118 = vmatprep.subr.mxu0 0.0
    %4119 = vmatpush1.msra.mxu0 0.0
    %4120 = vmatprep.mubr.f32.mxu0 0.0
    %4121 = vmatmul.mubr.f32.gmra.mrb[0].mxu0 %v4054
    %v4122 = vpop.f32.mrb[0].mxu0
    %v4123 = vadd.f32 0.0, %v4122
    %v4124 = vpop.f32.mrb[0].mxu0
    %4125 = vdwg.mxu0
    %v4127 = vsel %vm3146, %v3318, 0
    %4129 = vmatprep.subr.mxu0 0.0
    %4130 = vmatpush1.msra.mxu0 %v1908
    %4131 = vmatprep.subr.mxu0 0.0
    %4132 = vmatpush1.msra.mxu0 0.0
    %4133 = vmatprep.subr.mxu0 0.0
    %4134 = vmatpush1.msra.mxu0 0.0
    %4135 = vmatprep.subr.mxu0 0.0
    %4136 = vmatpush1.msra.mxu0 0.0
    %4137 = vmatprep.subr.mxu0 0.0
    %4138 = vmatpush1.msra.mxu0 0.0
    %4139 = vmatprep.subr.mxu0 0.0
    %4140 = vmatpush1.msra.mxu0 0.0
    %4141 = vmatprep.subr.mxu0 0.0
    %4142 = vmatpush1.msra.mxu0 0.0
    %4143 = vmatprep.subr.mxu0 0.0
    %4144 = vmatpush1.msra.mxu0 0.0
    %4145 = vmatprep.subr.mxu0 0.0
    %4146 = vmatpush1.msra.mxu0 0.0
    %4147 = vmatprep.subr.mxu0 0.0
    %4148 = vmatpush1.msra.mxu0 0.0
    %4149 = vmatprep.subr.mxu0 0.0
    %4150 = vmatpush1.msra.mxu0 0.0
    %4151 = vmatprep.subr.mxu0 0.0
    %4152 = vmatpush1.msra.mxu0 0.0
    %4153 = vmatprep.subr.mxu0 0.0
    %4154 = vmatpush1.msra.mxu0 0.0
    %4155 = vmatprep.subr.mxu0 0.0
    %4156 = vmatpush1.msra.mxu0 0.0
    %4157 = vmatprep.subr.mxu0 0.0
    %4158 = vmatpush1.msra.mxu0 0.0
    %4159 = vmatprep.subr.mxu0 0.0
    %4160 = vmatpush1.msra.mxu0 0.0
    %4161 = vmatprep.subr.mxu0 0.0
    %4162 = vmatpush1.msra.mxu0 0.0
    %4163 = vmatprep.subr.mxu0 0.0
    %4164 = vmatpush1.msra.mxu0 0.0
    %4165 = vmatprep.subr.mxu0 0.0
    %4166 = vmatpush1.msra.mxu0 0.0
    %4167 = vmatprep.subr.mxu0 0.0
    %4168 = vmatpush1.msra.mxu0 0.0
    %4169 = vmatprep.subr.mxu0 0.0
    %4170 = vmatpush1.msra.mxu0 0.0
    %4171 = vmatprep.subr.mxu0 0.0
    %4172 = vmatpush1.msra.mxu0 0.0
    %4173 = vmatprep.subr.mxu0 0.0
    %4174 = vmatpush1.msra.mxu0 0.0
    %4175 = vmatprep.subr.mxu0 0.0
    %4176 = vmatpush1.msra.mxu0 0.0
    %4177 = vmatprep.subr.mxu0 0.0
    %4178 = vmatpush1.msra.mxu0 0.0
    %4179 = vmatprep.subr.mxu0 0.0
    %4180 = vmatpush1.msra.mxu0 0.0
    %4181 = vmatprep.subr.mxu0 0.0
    %4182 = vmatpush1.msra.mxu0 0.0
    %4183 = vmatprep.subr.mxu0 0.0
    %4184 = vmatpush1.msra.mxu0 0.0
    %4185 = vmatprep.subr.mxu0 0.0
    %4186 = vmatpush1.msra.mxu0 0.0
    %4187 = vmatprep.subr.mxu0 0.0
    %4188 = vmatpush1.msra.mxu0 0.0
    %4189 = vmatprep.subr.mxu0 0.0
    %4190 = vmatpush1.msra.mxu0 0.0
    %4191 = vmatprep.subr.mxu0 0.0
    %4192 = vmatpush1.msra.mxu0 0.0
    %4193 = vmatprep.mubr.f32.mxu0 0.0
    %4194 = vmatmul.mubr.f32.gmra.mrb[0].mxu0 %v4127
    %v4195 = vpop.f32.mrb[0].mxu0
    %v4196 = vadd.f32 0.0, %v4195
    %v4197 = vpop.f32.mrb[0].mxu0
    %4198 = vdwg.mxu0
    %v4200 = vsel %vm3146, %v3319, 0
    %4202 = vmatprep.subr.mxu0 0.0
    %4203 = vmatpush1.msra.mxu0 %v1909
    %4204 = vmatprep.subr.mxu0 0.0
    %4205 = vmatpush1.msra.mxu0 0.0
    %4206 = vmatprep.subr.mxu0 0.0
    %4207 = vmatpush1.msra.mxu0 0.0
    %4208 = vmatprep.subr.mxu0 0.0
    %4209 = vmatpush1.msra.mxu0 0.0
    %4210 = vmatprep.subr.mxu0 0.0
    %4211 = vmatpush1.msra.mxu0 0.0
    %4212 = vmatprep.subr.mxu0 0.0
    %4213 = vmatpush1.msra.mxu0 0.0
    %4214 = vmatprep.subr.mxu0 0.0
    %4215 = vmatpush1.msra.mxu0 0.0
    %4216 = vmatprep.subr.mxu0 0.0
    %4217 = vmatpush1.msra.mxu0 0.0
    %4218 = vmatprep.subr.mxu0 0.0
    %4219 = vmatpush1.msra.mxu0 0.0
    %4220 = vmatprep.subr.mxu0 0.0
    %4221 = vmatpush1.msra.mxu0 0.0
    %4222 = vmatprep.subr.mxu0 0.0
    %4223 = vmatpush1.msra.mxu0 0.0
    %4224 = vmatprep.subr.mxu0 0.0
    %4225 = vmatpush1.msra.mxu0 0.0
    %4226 = vmatprep.subr.mxu0 0.0
    %4227 = vmatpush1.msra.mxu0 0.0
    %4228 = vmatprep.subr.mxu0 0.0
    %4229 = vmatpush1.msra.mxu0 0.0
    %4230 = vmatprep.subr.mxu0 0.0
    %4231 = vmatpush1.msra.mxu0 0.0
    %4232 = vmatprep.subr.mxu0 0.0
    %4233 = vmatpush1.msra.mxu0 0.0
    %4234 = vmatprep.subr.mxu0 0.0
    %4235 = vmatpush1.msra.mxu0 0.0
    %4236 = vmatprep.subr.mxu0 0.0
    %4237 = vmatpush1.msra.mxu0 0.0
    %4238 = vmatprep.subr.mxu0 0.0
    %4239 = vmatpush1.msra.mxu0 0.0
    %4240 = vmatprep.subr.mxu0 0.0
    %4241 = vmatpush1.msra.mxu0 0.0
    %4242 = vmatprep.subr.mxu0 0.0
    %4243 = vmatpush1.msra.mxu0 0.0
    %4244 = vmatprep.subr.mxu0 0.0
    %4245 = vmatpush1.msra.mxu0 0.0
    %4246 = vmatprep.subr.mxu0 0.0
    %4247 = vmatpush1.msra.mxu0 0.0
    %4248 = vmatprep.subr.mxu0 0.0
    %4249 = vmatpush1.msra.mxu0 0.0
    %4250 = vmatprep.subr.mxu0 0.0
    %4251 = vmatpush1.msra.mxu0 0.0
    %4252 = vmatprep.subr.mxu0 0.0
    %4253 = vmatpush1.msra.mxu0 0.0
    %4254 = vmatprep.subr.mxu0 0.0
    %4255 = vmatpush1.msra.mxu0 0.0
    %4256 = vmatprep.subr.mxu0 0.0
    %4257 = vmatpush1.msra.mxu0 0.0
    %4258 = vmatprep.subr.mxu0 0.0
    %4259 = vmatpush1.msra.mxu0 0.0
    %4260 = vmatprep.subr.mxu0 0.0
    %4261 = vmatpush1.msra.mxu0 0.0
    %4262 = vmatprep.subr.mxu0 0.0
    %4263 = vmatpush1.msra.mxu0 0.0
    %4264 = vmatprep.subr.mxu0 0.0
    %4265 = vmatpush1.msra.mxu0 0.0
    %4266 = vmatprep.mubr.f32.mxu0 0.0
    %4267 = vmatmul.mubr.f32.gmra.mrb[0].mxu0 %v4200
    %v4268 = vpop.f32.mrb[0].mxu0
    %v4269 = vadd.f32 0.0, %v4268
    %v4270 = vpop.f32.mrb[0].mxu0
    %4271 = vdwg.mxu0
    %v4273 = vsel %vm3146, %v3320, 0
    %4275 = vmatprep.subr.mxu0 0.0
    %4276 = vmatpush1.msra.mxu0 %v1910
    %4277 = vmatprep.subr.mxu0 0.0
    %4278 = vmatpush1.msra.mxu0 0.0
    %4279 = vmatprep.subr.mxu0 0.0
    %4280 = vmatpush1.msra.mxu0 0.0
    %4281 = vmatprep.subr.mxu0 0.0
    %4282 = vmatpush1.msra.mxu0 0.0
    %4283 = vmatprep.subr.mxu0 0.0
    %4284 = vmatpush1.msra.mxu0 0.0
    %4285 = vmatprep.subr.mxu0 0.0
    %4286 = vmatpush1.msra.mxu0 0.0
    %4287 = vmatprep.subr.mxu0 0.0
    %4288 = vmatpush1.msra.mxu0 0.0
    %4289 = vmatprep.subr.mxu0 0.0
    %4290 = vmatpush1.msra.mxu0 0.0
    %4291 = vmatprep.subr.mxu0 0.0
    %4292 = vmatpush1.msra.mxu0 0.0
    %4293 = vmatprep.subr.mxu0 0.0
    %4294 = vmatpush1.msra.mxu0 0.0
    %4295 = vmatprep.subr.mxu0 0.0
    %4296 = vmatpush1.msra.mxu0 0.0
    %4297 = vmatprep.subr.mxu0 0.0
    %4298 = vmatpush1.msra.mxu0 0.0
    %4299 = vmatprep.subr.mxu0 0.0
    %4300 = vmatpush1.msra.mxu0 0.0
    %4301 = vmatprep.subr.mxu0 0.0
    %4302 = vmatpush1.msra.mxu0 0.0
    %4303 = vmatprep.subr.mxu0 0.0
    %4304 = vmatpush1.msra.mxu0 0.0
    %4305 = vmatprep.subr.mxu0 0.0
    %4306 = vmatpush1.msra.mxu0 0.0
    %4307 = vmatprep.subr.mxu0 0.0
    %4308 = vmatpush1.msra.mxu0 0.0
    %4309 = vmatprep.subr.mxu0 0.0
    %4310 = vmatpush1.msra.mxu0 0.0
    %4311 = vmatprep.subr.mxu0 0.0
    %4312 = vmatpush1.msra.mxu0 0.0
    %4313 = vmatprep.subr.mxu0 0.0
    %4314 = vmatpush1.msra.mxu0 0.0
    %4315 = vmatprep.subr.mxu0 0.0
    %4316 = vmatpush1.msra.mxu0 0.0
    %4317 = vmatprep.subr.mxu0 0.0
    %4318 = vmatpush1.msra.mxu0 0.0
    %4319 = vmatprep.subr.mxu0 0.0
    %4320 = vmatpush1.msra.mxu0 0.0
    %4321 = vmatprep.subr.mxu0 0.0
    %4322 = vmatpush1.msra.mxu0 0.0
    %4323 = vmatprep.subr.mxu0 0.0
    %4324 = vmatpush1.msra.mxu0 0.0
    %4325 = vmatprep.subr.mxu0 0.0
    %4326 = vmatpush1.msra.mxu0 0.0
    %4327 = vmatprep.subr.mxu0 0.0
    %4328 = vmatpush1.msra.mxu0 0.0
    %4329 = vmatprep.subr.mxu0 0.0
    %4330 = vmatpush1.msra.mxu0 0.0
    %4331 = vmatprep.subr.mxu0 0.0
    %4332 = vmatpush1.msra.mxu0 0.0
    %4333 = vmatprep.subr.mxu0 0.0
    %4334 = vmatpush1.msra.mxu0 0.0
    %4335 = vmatprep.subr.mxu0 0.0
    %4336 = vmatpush1.msra.mxu0 0.0
    %4337 = vmatprep.subr.mxu0 0.0
    %4338 = vmatpush1.msra.mxu0 0.0
    %4339 = vmatprep.mubr.f32.mxu0 0.0
    %4340 = vmatmul.mubr.f32.gmra.mrb[0].mxu0 %v4273
    %v4341 = vpop.f32.mrb[0].mxu0
    %v4342 = vadd.f32 0.0, %v4341
    %v4343 = vpop.f32.mrb[0].mxu0
    %4344 = vdwg.mxu0
    %v4346 = vsel %vm3146, %v3321, 0
    %4348 = vmatprep.subr.mxu0 0.0
    %4349 = vmatpush1.msra.mxu0 %v1911
    %4350 = vmatprep.subr.mxu0 0.0
    %4351 = vmatpush1.msra.mxu0 0.0
    %4352 = vmatprep.subr.mxu0 0.0
    %4353 = vmatpush1.msra.mxu0 0.0
    %4354 = vmatprep.subr.mxu0 0.0
    %4355 = vmatpush1.msra.mxu0 0.0
    %4356 = vmatprep.subr.mxu0 0.0
    %4357 = vmatpush1.msra.mxu0 0.0
    %4358 = vmatprep.subr.mxu0 0.0
    %4359 = vmatpush1.msra.mxu0 0.0
    %4360 = vmatprep.subr.mxu0 0.0
    %4361 = vmatpush1.msra.mxu0 0.0
    %4362 = vmatprep.subr.mxu0 0.0
    %4363 = vmatpush1.msra.mxu0 0.0
    %4364 = vmatprep.subr.mxu0 0.0
    %4365 = vmatpush1.msra.mxu0 0.0
    %4366 = vmatprep.subr.mxu0 0.0
    %4367 = vmatpush1.msra.mxu0 0.0
    %4368 = vmatprep.subr.mxu0 0.0
    %4369 = vmatpush1.msra.mxu0 0.0
    %4370 = vmatprep.subr.mxu0 0.0
    %4371 = vmatpush1.msra.mxu0 0.0
    %4372 = vmatprep.subr.mxu0 0.0
    %4373 = vmatpush1.msra.mxu0 0.0
    %4374 = vmatprep.subr.mxu0 0.0
    %4375 = vmatpush1.msra.mxu0 0.0
    %4376 = vmatprep.subr.mxu0 0.0
    %4377 = vmatpush1.msra.mxu0 0.0
    %4378 = vmatprep.subr.mxu0 0.0
    %4379 = vmatpush1.msra.mxu0 0.0
    %4380 = vmatprep.subr.mxu0 0.0
    %4381 = vmatpush1.msra.mxu0 0.0
    %4382 = vmatprep.subr.mxu0 0.0
    %4383 = vmatpush1.msra.mxu0 0.0
    %4384 = vmatprep.subr.mxu0 0.0
    %4385 = vmatpush1.msra.mxu0 0.0
    %4386 = vmatprep.subr.mxu0 0.0
    %4387 = vmatpush1.msra.mxu0 0.0
    %4388 = vmatprep.subr.mxu0 0.0
    %4389 = vmatpush1.msra.mxu0 0.0
    %4390 = vmatprep.subr.mxu0 0.0
    %4391 = vmatpush1.msra.mxu0 0.0
    %4392 = vmatprep.subr.mxu0 0.0
    %4393 = vmatpush1.msra.mxu0 0.0
    %4394 = vmatprep.subr.mxu0 0.0
    %4395 = vmatpush1.msra.mxu0 0.0
    %4396 = vmatprep.subr.mxu0 0.0
    %4397 = vmatpush1.msra.mxu0 0.0
    %4398 = vmatprep.subr.mxu0 0.0
    %4399 = vmatpush1.msra.mxu0 0.0
    %4400 = vmatprep.subr.mxu0 0.0
    %4401 = vmatpush1.msra.mxu0 0.0
    %4402 = vmatprep.subr.mxu0 0.0
    %4403 = vmatpush1.msra.mxu0 0.0
    %4404 = vmatprep.subr.mxu0 0.0
    %4405 = vmatpush1.msra.mxu0 0.0
    %4406 = vmatprep.subr.mxu0 0.0
    %4407 = vmatpush1.msra.mxu0 0.0
    %4408 = vmatprep.subr.mxu0 0.0
    %4409 = vmatpush1.msra.mxu0 0.0
    %4410 = vmatprep.subr.mxu0 0.0
    %4411 = vmatpush1.msra.mxu0 0.0
    %4412 = vmatprep.mubr.f32.mxu0 0.0
    %4413 = vmatmul.mubr.f32.gmra.mrb[0].mxu0 %v4346
    %v4414 = vpop.f32.mrb[0].mxu0
    %v4415 = vadd.f32 0.0, %v4414
    %v4416 = vpop.f32.mrb[0].mxu0
    %4417 = vdwg.mxu0
    %v4419 = vsel %vm3146, %v3322, 0
    %4421 = vmatprep.subr.mxu0 0.0
    %4422 = vmatpush1.msra.mxu0 %v1912
    %4423 = vmatprep.subr.mxu0 0.0
    %4424 = vmatpush1.msra.mxu0 0.0
    %4425 = vmatprep.subr.mxu0 0.0
    %4426 = vmatpush1.msra.mxu0 0.0
    %4427 = vmatprep.subr.mxu0 0.0
    %4428 = vmatpush1.msra.mxu0 0.0
    %4429 = vmatprep.subr.mxu0 0.0
    %4430 = vmatpush1.msra.mxu0 0.0
    %4431 = vmatprep.subr.mxu0 0.0
    %4432 = vmatpush1.msra.mxu0 0.0
    %4433 = vmatprep.subr.mxu0 0.0
    %4434 = vmatpush1.msra.mxu0 0.0
    %4435 = vmatprep.subr.mxu0 0.0
    %4436 = vmatpush1.msra.mxu0 0.0
    %4437 = vmatprep.subr.mxu0 0.0
    %4438 = vmatpush1.msra.mxu0 0.0
    %4439 = vmatprep.subr.mxu0 0.0
    %4440 = vmatpush1.msra.mxu0 0.0
    %4441 = vmatprep.subr.mxu0 0.0
    %4442 = vmatpush1.msra.mxu0 0.0
    %4443 = vmatprep.subr.mxu0 0.0
    %4444 = vmatpush1.msra.mxu0 0.0
    %4445 = vmatprep.subr.mxu0 0.0
    %4446 = vmatpush1.msra.mxu0 0.0
    %4447 = vmatprep.subr.mxu0 0.0
    %4448 = vmatpush1.msra.mxu0 0.0
    %4449 = vmatprep.subr.mxu0 0.0
    %4450 = vmatpush1.msra.mxu0 0.0
    %4451 = vmatprep.subr.mxu0 0.0
    %4452 = vmatpush1.msra.mxu0 0.0
    %4453 = vmatprep.subr.mxu0 0.0
    %4454 = vmatpush1.msra.mxu0 0.0
    %4455 = vmatprep.subr.mxu0 0.0
    %4456 = vmatpush1.msra.mxu0 0.0
    %4457 = vmatprep.subr.mxu0 0.0
    %4458 = vmatpush1.msra.mxu0 0.0
    %4459 = vmatprep.subr.mxu0 0.0
    %4460 = vmatpush1.msra.mxu0 0.0
    %4461 = vmatprep.subr.mxu0 0.0
    %4462 = vmatpush1.msra.mxu0 0.0
    %4463 = vmatprep.subr.mxu0 0.0
    %4464 = vmatpush1.msra.mxu0 0.0
    %4465 = vmatprep.subr.mxu0 0.0
    %4466 = vmatpush1.msra.mxu0 0.0
    %4467 = vmatprep.subr.mxu0 0.0
    %4468 = vmatpush1.msra.mxu0 0.0
    %4469 = vmatprep.subr.mxu0 0.0
    %4470 = vmatpush1.msra.mxu0 0.0
    %4471 = vmatprep.subr.mxu0 0.0
    %4472 = vmatpush1.msra.mxu0 0.0
    %4473 = vmatprep.subr.mxu0 0.0
    %4474 = vmatpush1.msra.mxu0 0.0
    %4475 = vmatprep.subr.mxu0 0.0
    %4476 = vmatpush1.msra.mxu0 0.0
    %4477 = vmatprep.subr.mxu0 0.0
    %4478 = vmatpush1.msra.mxu0 0.0
    %4479 = vmatprep.subr.mxu0 0.0
    %4480 = vmatpush1.msra.mxu0 0.0
    %4481 = vmatprep.subr.mxu0 0.0
    %4482 = vmatpush1.msra.mxu0 0.0
    %4483 = vmatprep.subr.mxu0 0.0
    %4484 = vmatpush1.msra.mxu0 0.0
    %4485 = vmatprep.mubr.f32.mxu0 0.0
    %4486 = vmatmul.mubr.f32.gmra.mrb[0].mxu0 %v4419
    %v4487 = vpop.f32.mrb[0].mxu0
    %v4488 = vadd.f32 0.0, %v4487
    %v4489 = vpop.f32.mrb[0].mxu0
    %4490 = vdwg.mxu0
    %v4491 = vcombine.low %v3393, %v3539
    %v4492 = vcombine.high %v3393, %v3539
    %v4494 = vunpack.c.l.s4 1983009808
    %v4495 = vunpack.c.0.s8 %v4494
    %v4496 = vlaneseq
    %v4497 = vshrl.u32 %v4496, 7
    %v4498 = vsub.s32 %v4495, %v4497
    %v4499 = vrot.slane %v4491, %v4498
    %v4501 = vunpack.c.l.s4 1983009808
    %v4502 = vunpack.c.0.s8 %v4501
    %v4503 = vlaneseq
    %v4504 = vshrl.u32 %v4503, 7
    %v4505 = vsub.s32 %v4502, %v4504
    %v4506 = vrot.slane %v4492, %v4505
    %v4507 = vcombine.low %v3466, %v3612
    %v4508 = vcombine.high %v3466, %v3612
    %v4510 = vunpack.c.l.s4 1983009808
    %v4511 = vunpack.c.0.s8 %v4510
    %v4512 = vlaneseq
    %v4513 = vshrl.u32 %v4512, 7
    %v4514 = vsub.s32 %v4511, %v4513
    %v4515 = vrot.slane %v4507, %v4514
    %v4517 = vunpack.c.l.s4 1983009808
    %v4518 = vunpack.c.0.s8 %v4517
    %v4519 = vlaneseq
    %v4520 = vshrl.u32 %v4519, 7
    %v4521 = vsub.s32 %v4518, %v4520
    %v4522 = vrot.slane %v4508, %v4521
    %v4523 = vcombine.low %v3685, %v3831
    %v4524 = vcombine.high %v3685, %v3831
    %v4526 = vunpack.c.l.s4 1983009808
    %v4527 = vunpack.c.0.s8 %v4526
    %v4528 = vlaneseq
    %v4529 = vshrl.u32 %v4528, 7
    %v4530 = vsub.s32 %v4527, %v4529
    %v4531 = vrot.slane %v4523, %v4530
    %v4533 = vunpack.c.l.s4 1983009808
    %v4534 = vunpack.c.0.s8 %v4533
    %v4535 = vlaneseq
    %v4536 = vshrl.u32 %v4535, 7
    %v4537 = vsub.s32 %v4534, %v4536
    %v4538 = vrot.slane %v4524, %v4537
    %v4539 = vcombine.low %v3758, %v3904
    %v4540 = vcombine.high %v3758, %v3904
    %v4542 = vunpack.c.l.s4 1983009808
    %v4543 = vunpack.c.0.s8 %v4542
    %v4544 = vlaneseq
    %v4545 = vshrl.u32 %v4544, 7
    %v4546 = vsub.s32 %v4543, %v4545
    %v4547 = vrot.slane %v4539, %v4546
    %v4549 = vunpack.c.l.s4 1983009808
    %v4550 = vunpack.c.0.s8 %v4549
    %v4551 = vlaneseq
    %v4552 = vshrl.u32 %v4551, 7
    %v4553 = vsub.s32 %v4550, %v4552
    %v4554 = vrot.slane %v4540, %v4553
    %v4555 = vcombine.low %v4499, %v4515
    %v4556 = vcombine.high %v4499, %v4515
    %v4558 = vunpack.c.l.s4 1934713408
    %v4559 = vunpack.c.0.s8 %v4558
    %v4560 = vlaneseq
    %v4561 = vshrl.u32 %v4560, 7
    %v4562 = vsub.s32 %v4559, %v4561
    %v4563 = vrot.slane %v4555, %v4562
    %v4565 = vunpack.c.l.s4 1934713408
    %v4566 = vunpack.c.0.s8 %v4565
    %v4567 = vlaneseq
    %v4568 = vshrl.u32 %v4567, 7
    %v4569 = vsub.s32 %v4566, %v4568
    %v4570 = vrot.slane %v4556, %v4569
    %v4571 = vcombine.low %v4506, %v4522
    %v4572 = vcombine.high %v4506, %v4522
    %v4574 = vunpack.c.l.s4 1934713408
    %v4575 = vunpack.c.0.s8 %v4574
    %v4576 = vlaneseq
    %v4577 = vshrl.u32 %v4576, 7
    %v4578 = vsub.s32 %v4575, %v4577
    %v4579 = vrot.slane %v4571, %v4578
    %v4581 = vunpack.c.l.s4 1934713408
    %v4582 = vunpack.c.0.s8 %v4581
    %v4583 = vlaneseq
    %v4584 = vshrl.u32 %v4583, 7
    %v4585 = vsub.s32 %v4582, %v4584
    %v4586 = vrot.slane %v4572, %v4585
    %v4587 = vcombine.low %v4531, %v4547
    %v4588 = vcombine.high %v4531, %v4547
    %v4590 = vunpack.c.l.s4 1934713408
    %v4591 = vunpack.c.0.s8 %v4590
    %v4592 = vlaneseq
    %v4593 = vshrl.u32 %v4592, 7
    %v4594 = vsub.s32 %v4591, %v4593
    %v4595 = vrot.slane %v4587, %v4594
    %v4597 = vunpack.c.l.s4 1934713408
    %v4598 = vunpack.c.0.s8 %v4597
    %v4599 = vlaneseq
    %v4600 = vshrl.u32 %v4599, 7
    %v4601 = vsub.s32 %v4598, %v4600
    %v4602 = vrot.slane %v4588, %v4601
    %v4603 = vcombine.low %v4538, %v4554
    %v4604 = vcombine.high %v4538, %v4554
    %v4606 = vunpack.c.l.s4 1934713408
    %v4607 = vunpack.c.0.s8 %v4606
    %v4608 = vlaneseq
    %v4609 = vshrl.u32 %v4608, 7
    %v4610 = vsub.s32 %v4607, %v4609
    %v4611 = vrot.slane %v4603, %v4610
    %v4613 = vunpack.c.l.s4 1934713408
    %v4614 = vunpack.c.0.s8 %v4613
    %v4615 = vlaneseq
    %v4616 = vshrl.u32 %v4615, 7
    %v4617 = vsub.s32 %v4614, %v4616
    %v4618 = vrot.slane %v4604, %v4617
    %v4619 = vcombine.low %v4563, %v4595
    %v4620 = vcombine.high %v4563, %v4595
    %v4621 = vcombine.low %v4570, %v4602
    %v4622 = vcombine.high %v4570, %v4602
    %v4623 = vcombine.low %v4579, %v4611
    %v4624 = vcombine.high %v4579, %v4611
    %v4625 = vcombine.low %v4586, %v4618
    %v4626 = vcombine.high %v4586, %v4618
    %v4627 = vcombine.low %v3977, %v4123
    %v4628 = vcombine.high %v3977, %v4123
    %v4630 = vunpack.c.l.s4 1983009808
    %v4631 = vunpack.c.0.s8 %v4630
    %v4632 = vlaneseq
    %v4633 = vshrl.u32 %v4632, 7
    %v4634 = vsub.s32 %v4631, %v4633
    %v4635 = vrot.slane %v4627, %v4634
    %v4637 = vunpack.c.l.s4 1983009808
    %v4638 = vunpack.c.0.s8 %v4637
    %v4639 = vlaneseq
    %v4640 = vshrl.u32 %v4639, 7
    %v4641 = vsub.s32 %v4638, %v4640
    %v4642 = vrot.slane %v4628, %v4641
    %v4643 = vcombine.low %v4050, %v4196
    %v4644 = vcombine.high %v4050, %v4196
    %v4646 = vunpack.c.l.s4 1983009808
    %v4647 = vunpack.c.0.s8 %v4646
    %v4648 = vlaneseq
    %v4649 = vshrl.u32 %v4648, 7
    %v4650 = vsub.s32 %v4647, %v4649
    %v4651 = vrot.slane %v4643, %v4650
    %v4653 = vunpack.c.l.s4 1983009808
    %v4654 = vunpack.c.0.s8 %v4653
    %v4655 = vlaneseq
    %v4656 = vshrl.u32 %v4655, 7
    %v4657 = vsub.s32 %v4654, %v4656
    %v4658 = vrot.slane %v4644, %v4657
    %v4659 = vcombine.low %v4269, %v4415
    %v4660 = vcombine.high %v4269, %v4415
    %v4662 = vunpack.c.l.s4 1983009808
    %v4663 = vunpack.c.0.s8 %v4662
    %v4664 = vlaneseq
    %v4665 = vshrl.u32 %v4664, 7
    %v4666 = vsub.s32 %v4663, %v4665
    %v4667 = vrot.slane %v4659, %v4666
    %v4669 = vunpack.c.l.s4 1983009808
    %v4670 = vunpack.c.0.s8 %v4669
    %v4671 = vlaneseq
    %v4672 = vshrl.u32 %v4671, 7
    %v4673 = vsub.s32 %v4670, %v4672
    %v4674 = vrot.slane %v4660, %v4673
    %v4675 = vcombine.low %v4342, %v4488
    %v4676 = vcombine.high %v4342, %v4488
    %v4678 = vunpack.c.l.s4 1983009808
    %v4679 = vunpack.c.0.s8 %v4678
    %v4680 = vlaneseq
    %v4681 = vshrl.u32 %v4680, 7
    %v4682 = vsub.s32 %v4679, %v4681
    %v4683 = vrot.slane %v4675, %v4682
    %v4685 = vunpack.c.l.s4 1983009808
    %v4686 = vunpack.c.0.s8 %v4685
    %v4687 = vlaneseq
    %v4688 = vshrl.u32 %v4687, 7
    %v4689 = vsub.s32 %v4686, %v4688
    %v4690 = vrot.slane %v4676, %v4689
    %v4691 = vcombine.low %v4635, %v4651
    %v4692 = vcombine.high %v4635, %v4651
    %v4694 = vunpack.c.l.s4 1934713408
    %v4695 = vunpack.c.0.s8 %v4694
    %v4696 = vlaneseq
    %v4697 = vshrl.u32 %v4696, 7
    %v4698 = vsub.s32 %v4695, %v4697
    %v4699 = vrot.slane %v4691, %v4698
    %v4701 = vunpack.c.l.s4 1934713408
    %v4702 = vunpack.c.0.s8 %v4701
    %v4703 = vlaneseq
    %v4704 = vshrl.u32 %v4703, 7
    %v4705 = vsub.s32 %v4702, %v4704
    %v4706 = vrot.slane %v4692, %v4705
    %v4707 = vcombine.low %v4642, %v4658
    %v4708 = vcombine.high %v4642, %v4658
    %v4710 = vunpack.c.l.s4 1934713408
    %v4711 = vunpack.c.0.s8 %v4710
    %v4712 = vlaneseq
    %v4713 = vshrl.u32 %v4712, 7
    %v4714 = vsub.s32 %v4711, %v4713
    %v4715 = vrot.slane %v4707, %v4714
    %v4717 = vunpack.c.l.s4 1934713408
    %v4718 = vunpack.c.0.s8 %v4717
    %v4719 = vlaneseq
    %v4720 = vshrl.u32 %v4719, 7
    %v4721 = vsub.s32 %v4718, %v4720
    %v4722 = vrot.slane %v4708, %v4721
    %v4723 = vcombine.low %v4667, %v4683
    %v4724 = vcombine.high %v4667, %v4683
    %v4726 = vunpack.c.l.s4 1934713408
    %v4727 = vunpack.c.0.s8 %v4726
    %v4728 = vlaneseq
    %v4729 = vshrl.u32 %v4728, 7
    %v4730 = vsub.s32 %v4727, %v4729
    %v4731 = vrot.slane %v4723, %v4730
    %v4733 = vunpack.c.l.s4 1934713408
    %v4734 = vunpack.c.0.s8 %v4733
    %v4735 = vlaneseq
    %v4736 = vshrl.u32 %v4735, 7
    %v4737 = vsub.s32 %v4734, %v4736
    %v4738 = vrot.slane %v4724, %v4737
    %v4739 = vcombine.low %v4674, %v4690
    %v4740 = vcombine.high %v4674, %v4690
    %v4742 = vunpack.c.l.s4 1934713408
    %v4743 = vunpack.c.0.s8 %v4742
    %v4744 = vlaneseq
    %v4745 = vshrl.u32 %v4744, 7
    %v4746 = vsub.s32 %v4743, %v4745
    %v4747 = vrot.slane %v4739, %v4746
    %v4749 = vunpack.c.l.s4 1934713408
    %v4750 = vunpack.c.0.s8 %v4749
    %v4751 = vlaneseq
    %v4752 = vshrl.u32 %v4751, 7
    %v4753 = vsub.s32 %v4750, %v4752
    %v4754 = vrot.slane %v4740, %v4753
    %v4755 = vcombine.low %v4699, %v4731
    %v4756 = vcombine.high %v4699, %v4731
    %v4757 = vcombine.low %v4706, %v4738
    %v4758 = vcombine.high %v4706, %v4738
    %v4759 = vcombine.low %v4715, %v4747
    %v4760 = vcombine.high %v4715, %v4747
    %v4761 = vcombine.low %v4722, %v4754
    %v4762 = vcombine.high %v4722, %v4754
    %v4763 = vcombine.low %v4619, %v4621
    %v4764 = vcombine.high %v4619, %v4621
    %v4766 = vunpack.c.l.s4 1983009808
    %v4767 = vunpack.c.0.s8 %v4766
    %v4768 = vlaneseq
    %v4769 = vshrl.u32 %v4768, 7
    %v4770 = vsub.s32 %v4767, %v4769
    %v4771 = vrot.slane %v4763, %v4770
    %v4773 = vunpack.c.l.s4 1983009808
    %v4774 = vunpack.c.0.s8 %v4773
    %v4775 = vlaneseq
    %v4776 = vshrl.u32 %v4775, 7
    %v4777 = vsub.s32 %v4774, %v4776
    %v4778 = vrot.slane %v4764, %v4777
    %v4779 = vcombine.low %v4620, %v4622
    %v4780 = vcombine.high %v4620, %v4622
    %v4782 = vunpack.c.l.s4 1983009808
    %v4783 = vunpack.c.0.s8 %v4782
    %v4784 = vlaneseq
    %v4785 = vshrl.u32 %v4784, 7
    %v4786 = vsub.s32 %v4783, %v4785
    %v4787 = vrot.slane %v4779, %v4786
    %v4789 = vunpack.c.l.s4 1983009808
    %v4790 = vunpack.c.0.s8 %v4789
    %v4791 = vlaneseq
    %v4792 = vshrl.u32 %v4791, 7
    %v4793 = vsub.s32 %v4790, %v4792
    %v4794 = vrot.slane %v4780, %v4793
    %v4795 = vcombine.low %v4623, %v4625
    %v4796 = vcombine.high %v4623, %v4625
    %v4798 = vunpack.c.l.s4 1983009808
    %v4799 = vunpack.c.0.s8 %v4798
    %v4800 = vlaneseq
    %v4801 = vshrl.u32 %v4800, 7
    %v4802 = vsub.s32 %v4799, %v4801
    %v4803 = vrot.slane %v4795, %v4802
    %v4805 = vunpack.c.l.s4 1983009808
    %v4806 = vunpack.c.0.s8 %v4805
    %v4807 = vlaneseq
    %v4808 = vshrl.u32 %v4807, 7
    %v4809 = vsub.s32 %v4806, %v4808
    %v4810 = vrot.slane %v4796, %v4809
    %v4811 = vcombine.low %v4624, %v4626
    %v4812 = vcombine.high %v4624, %v4626
    %v4814 = vunpack.c.l.s4 1983009808
    %v4815 = vunpack.c.0.s8 %v4814
    %v4816 = vlaneseq
    %v4817 = vshrl.u32 %v4816, 7
    %v4818 = vsub.s32 %v4815, %v4817
    %v4819 = vrot.slane %v4811, %v4818
    %v4821 = vunpack.c.l.s4 1983009808
    %v4822 = vunpack.c.0.s8 %v4821
    %v4823 = vlaneseq
    %v4824 = vshrl.u32 %v4823, 7
    %v4825 = vsub.s32 %v4822, %v4824
    %v4826 = vrot.slane %v4812, %v4825
    %v4827 = vcombine.low %v4771, %v4787
    %v4828 = vcombine.high %v4771, %v4787
    %v4830 = vunpack.c.l.s4 1934713408
    %v4831 = vunpack.c.0.s8 %v4830
    %v4832 = vlaneseq
    %v4833 = vshrl.u32 %v4832, 7
    %v4834 = vsub.s32 %v4831, %v4833
    %v4835 = vrot.slane %v4827, %v4834
    %v4837 = vunpack.c.l.s4 1934713408
    %v4838 = vunpack.c.0.s8 %v4837
    %v4839 = vlaneseq
    %v4840 = vshrl.u32 %v4839, 7
    %v4841 = vsub.s32 %v4838, %v4840
    %v4842 = vrot.slane %v4828, %v4841
    %v4843 = vcombine.low %v4778, %v4794
    %v4844 = vcombine.high %v4778, %v4794
    %v4846 = vunpack.c.l.s4 1934713408
    %v4847 = vunpack.c.0.s8 %v4846
    %v4848 = vlaneseq
    %v4849 = vshrl.u32 %v4848, 7
    %v4850 = vsub.s32 %v4847, %v4849
    %v4851 = vrot.slane %v4843, %v4850
    %v4853 = vunpack.c.l.s4 1934713408
    %v4854 = vunpack.c.0.s8 %v4853
    %v4855 = vlaneseq
    %v4856 = vshrl.u32 %v4855, 7
    %v4857 = vsub.s32 %v4854, %v4856
    %v4858 = vrot.slane %v4844, %v4857
    %v4859 = vcombine.low %v4803, %v4819
    %v4860 = vcombine.high %v4803, %v4819
    %v4862 = vunpack.c.l.s4 1934713408
    %v4863 = vunpack.c.0.s8 %v4862
    %v4864 = vlaneseq
    %v4865 = vshrl.u32 %v4864, 7
    %v4866 = vsub.s32 %v4863, %v4865
    %v4867 = vrot.slane %v4859, %v4866
    %v4869 = vunpack.c.l.s4 1934713408
    %v4870 = vunpack.c.0.s8 %v4869
    %v4871 = vlaneseq
    %v4872 = vshrl.u32 %v4871, 7
    %v4873 = vsub.s32 %v4870, %v4872
    %v4874 = vrot.slane %v4860, %v4873
    %v4875 = vcombine.low %v4810, %v4826
    %v4876 = vcombine.high %v4810, %v4826
    %v4878 = vunpack.c.l.s4 1934713408
    %v4879 = vunpack.c.0.s8 %v4878
    %v4880 = vlaneseq
    %v4881 = vshrl.u32 %v4880, 7
    %v4882 = vsub.s32 %v4879, %v4881
    %v4883 = vrot.slane %v4875, %v4882
    %v4885 = vunpack.c.l.s4 1934713408
    %v4886 = vunpack.c.0.s8 %v4885
    %v4887 = vlaneseq
    %v4888 = vshrl.u32 %v4887, 7
    %v4889 = vsub.s32 %v4886, %v4888
    %v4890 = vrot.slane %v4876, %v4889
    %v4891 = vcombine.low %v4835, %v4867
    %v4892 = vcombine.high %v4835, %v4867
    %v4893 = vcombine.low %v4842, %v4874
    %v4894 = vcombine.high %v4842, %v4874
    %v4895 = vcombine.low %v4851, %v4883
    %v4896 = vcombine.high %v4851, %v4883
    %v4897 = vcombine.low %v4858, %v4890
    %v4898 = vcombine.high %v4858, %v4890
    %v4899 = vcombine.low %v4755, %v4757
    %v4900 = vcombine.high %v4755, %v4757
    %v4902 = vunpack.c.l.s4 1983009808
    %v4903 = vunpack.c.0.s8 %v4902
    %v4904 = vlaneseq
    %v4905 = vshrl.u32 %v4904, 7
    %v4906 = vsub.s32 %v4903, %v4905
    %v4907 = vrot.slane %v4899, %v4906
    %v4909 = vunpack.c.l.s4 1983009808
    %v4910 = vunpack.c.0.s8 %v4909
    %v4911 = vlaneseq
    %v4912 = vshrl.u32 %v4911, 7
    %v4913 = vsub.s32 %v4910, %v4912
    %v4914 = vrot.slane %v4900, %v4913
    %v4915 = vcombine.low %v4756, %v4758
    %v4916 = vcombine.high %v4756, %v4758
    %v4918 = vunpack.c.l.s4 1983009808
    %v4919 = vunpack.c.0.s8 %v4918
    %v4920 = vlaneseq
    %v4921 = vshrl.u32 %v4920, 7
    %v4922 = vsub.s32 %v4919, %v4921
    %v4923 = vrot.slane %v4915, %v4922
    %v4925 = vunpack.c.l.s4 1983009808
    %v4926 = vunpack.c.0.s8 %v4925
    %v4927 = vlaneseq
    %v4928 = vshrl.u32 %v4927, 7
    %v4929 = vsub.s32 %v4926, %v4928
    %v4930 = vrot.slane %v4916, %v4929
    %v4931 = vcombine.low %v4759, %v4761
    %v4932 = vcombine.high %v4759, %v4761
    %v4934 = vunpack.c.l.s4 1983009808
    %v4935 = vunpack.c.0.s8 %v4934
    %v4936 = vlaneseq
    %v4937 = vshrl.u32 %v4936, 7
    %v4938 = vsub.s32 %v4935, %v4937
    %v4939 = vrot.slane %v4931, %v4938
    %v4941 = vunpack.c.l.s4 1983009808
    %v4942 = vunpack.c.0.s8 %v4941
    %v4943 = vlaneseq
    %v4944 = vshrl.u32 %v4943, 7
    %v4945 = vsub.s32 %v4942, %v4944
    %v4946 = vrot.slane %v4932, %v4945
    %v4947 = vcombine.low %v4760, %v4762
    %v4948 = vcombine.high %v4760, %v4762
    %v4950 = vunpack.c.l.s4 1983009808
    %v4951 = vunpack.c.0.s8 %v4950
    %v4952 = vlaneseq
    %v4953 = vshrl.u32 %v4952, 7
    %v4954 = vsub.s32 %v4951, %v4953
    %v4955 = vrot.slane %v4947, %v4954
    %v4957 = vunpack.c.l.s4 1983009808
    %v4958 = vunpack.c.0.s8 %v4957
    %v4959 = vlaneseq
    %v4960 = vshrl.u32 %v4959, 7
    %v4961 = vsub.s32 %v4958, %v4960
    %v4962 = vrot.slane %v4948, %v4961
    %v4963 = vcombine.low %v4907, %v4923
    %v4964 = vcombine.high %v4907, %v4923
    %v4966 = vunpack.c.l.s4 1934713408
    %v4967 = vunpack.c.0.s8 %v4966
    %v4968 = vlaneseq
    %v4969 = vshrl.u32 %v4968, 7
    %v4970 = vsub.s32 %v4967, %v4969
    %v4971 = vrot.slane %v4963, %v4970
    %v4973 = vunpack.c.l.s4 1934713408
    %v4974 = vunpack.c.0.s8 %v4973
    %v4975 = vlaneseq
    %v4976 = vshrl.u32 %v4975, 7
    %v4977 = vsub.s32 %v4974, %v4976
    %v4978 = vrot.slane %v4964, %v4977
    %v4979 = vcombine.low %v4914, %v4930
    %v4980 = vcombine.high %v4914, %v4930
    %v4982 = vunpack.c.l.s4 1934713408
    %v4983 = vunpack.c.0.s8 %v4982
    %v4984 = vlaneseq
    %v4985 = vshrl.u32 %v4984, 7
    %v4986 = vsub.s32 %v4983, %v4985
    %v4987 = vrot.slane %v4979, %v4986
    %v4989 = vunpack.c.l.s4 1934713408
    %v4990 = vunpack.c.0.s8 %v4989
    %v4991 = vlaneseq
    %v4992 = vshrl.u32 %v4991, 7
    %v4993 = vsub.s32 %v4990, %v4992
    %v4994 = vrot.slane %v4980, %v4993
    %v4995 = vcombine.low %v4939, %v4955
    %v4996 = vcombine.high %v4939, %v4955
    %v4998 = vunpack.c.l.s4 1934713408
    %v4999 = vunpack.c.0.s8 %v4998
    %v5000 = vlaneseq
    %v5001 = vshrl.u32 %v5000, 7
    %v5002 = vsub.s32 %v4999, %v5001
    %v5003 = vrot.slane %v4995, %v5002
    %v5005 = vunpack.c.l.s4 1934713408
    %v5006 = vunpack.c.0.s8 %v5005
    %v5007 = vlaneseq
    %v5008 = vshrl.u32 %v5007, 7
    %v5009 = vsub.s32 %v5006, %v5008
    %v5010 = vrot.slane %v4996, %v5009
    %v5011 = vcombine.low %v4946, %v4962
    %v5012 = vcombine.high %v4946, %v4962
    %v5014 = vunpack.c.l.s4 1934713408
    %v5015 = vunpack.c.0.s8 %v5014
    %v5016 = vlaneseq
    %v5017 = vshrl.u32 %v5016, 7
    %v5018 = vsub.s32 %v5015, %v5017
    %v5019 = vrot.slane %v5011, %v5018
    %v5021 = vunpack.c.l.s4 1934713408
    %v5022 = vunpack.c.0.s8 %v5021
    %v5023 = vlaneseq
    %v5024 = vshrl.u32 %v5023, 7
    %v5025 = vsub.s32 %v5022, %v5024
    %v5026 = vrot.slane %v5012, %v5025
    %v5027 = vcombine.low %v4971, %v5003
    %v5028 = vcombine.high %v4971, %v5003
    %v5029 = vcombine.low %v4978, %v5010
    %v5030 = vcombine.high %v4978, %v5010
    %v5031 = vcombine.low %v4987, %v5019
    %v5032 = vcombine.high %v4987, %v5019
    %v5033 = vcombine.low %v4994, %v5026
    %v5034 = vcombine.high %v4994, %v5026
    %5037 = vrot.lane.b32.xlu0 %v4892, 4
    %v5038 = vpop.permute.xlu0 %5037
    %5039 = vrot.lane.b32.xlu0 %v5028, 4
    %v5040 = vpop.permute.xlu0 %5039
    %5045 = vrot.lane.b32.xlu0 %v4893, 8
    %v5046 = vpop.permute.xlu0 %5045
    %5047 = vrot.lane.b32.xlu0 %v5029, 8
    %v5048 = vpop.permute.xlu0 %5047
    %5053 = vrot.lane.b32.xlu0 %v4894, 12
    %v5054 = vpop.permute.xlu0 %5053
    %5055 = vrot.lane.b32.xlu0 %v5030, 12
    %v5056 = vpop.permute.xlu0 %5055
    %5061 = vrot.lane.b32.xlu0 %v4895, 16
    %v5062 = vpop.permute.xlu0 %5061
    %5063 = vrot.lane.b32.xlu0 %v5031, 16
    %v5064 = vpop.permute.xlu0 %5063
    %5069 = vrot.lane.b32.xlu0 %v4896, 20
    %v5070 = vpop.permute.xlu0 %5069
    %5071 = vrot.lane.b32.xlu0 %v5032, 20
    %v5072 = vpop.permute.xlu0 %5071
    %5077 = vrot.lane.b32.xlu0 %v4897, 24
    %v5078 = vpop.permute.xlu0 %5077
    %5079 = vrot.lane.b32.xlu0 %v5033, 24
    %v5080 = vpop.permute.xlu0 %5079
    %5085 = vrot.lane.b32.xlu0 %v4898, 28
    %v5086 = vpop.permute.xlu0 %5085
    %5087 = vrot.lane.b32.xlu0 %v5034, 28
    %v5088 = vpop.permute.xlu0 %5087
    %v5091 = vsel %vm1913, %v4891, %v5038
    %v5092 = vsel %vm1913, %v5027, %v5040
    %v5093 = vsel %vm3146, %v5091, %v5046
    %v5094 = vsel %vm3146, %v5092, %v5048
    %vm5095 = vcmask 97280
    %v5096 = vsel %vm5095, %v5093, %v5054
    %v5097 = vsel %vm5095, %v5094, %v5056
    %vm5098 = vcmask 130048
    %v5099 = vsel %vm5098, %v5096, %v5062
    %v5100 = vsel %vm5098, %v5097, %v5064
    %vm5101 = vcmask 162816
    %v5102 = vsel %vm5101, %v5099, %v5070
    %v5103 = vsel %vm5101, %v5100, %v5072
    %vm5104 = vcmask 195584
    %v5105 = vsel %vm5104, %v5102, %v5078
    %v5106 = vsel %vm5104, %v5103, %v5080
    %vm5107 = vcmask 228352
    %v5108 = vsel %vm5107, %v5105, %v5086
    %v5109 = vsel %vm5107, %v5106, %v5088
    %v5110 = vld [vmem:[%s3] sm:$0x3]
    %v5111 = vadd.f32 %v46, %v5108
    %v5112 = vadd.f32 %v47, %v5109
    %v5113 = vsel %vm59, %v5111, 0.0
    %5114 = vadd.xlane.f32.xlu0 %v5113
    %v5115 = vpop.xlane.xlu0 %5114
    %v5116 = vsel %vm59, %v5112, 0.0
    %5117 = vadd.xlane.f32.xlu0 %v5116
    %v5118 = vpop.xlane.xlu0 %5117
    %v5119 = vrcp.pop 32.0
    %v5120 = vmul.f32 %v5115, %v5119
    %v5121 = vmul.f32 %v5118, %v5119
    %v5122 = vsub.f32 %v5111, %v5120
    %v5123 = vsub.f32 %v5112, %v5121
    %v5124 = vmul.f32 %v5122, %v5122
    %v5125 = vmul.f32 %v5123, %v5123
    %v5126 = vsel %vm59, %v5124, 0.0
    %5127 = vadd.xlane.f32.xlu0 %v5126
    %v5128 = vpop.xlane.xlu0 %5127
    %v5129 = vsel %vm59, %v5125, 0.0
    %5130 = vadd.xlane.f32.xlu0 %v5129
    %v5131 = vpop.xlane.xlu0 %5130
    %v5132 = vmul.f32 %v5128, %v5119
    %v5133 = vmul.f32 %v5131, %v5119
    %v5134 = vadd.f32 %v5132, 1e-05
    %v5135 = vadd.f32 %v5133, 1e-05
    %v5136 = vrsqrt.pop %v5134
    %v5137 = vrsqrt.pop %v5135
    %v5138 = vmul.f32 %v5122, %v5136
    %v5139 = vmul.f32 %v5123, %v5137
    %v5140 = vlaneseq
    %v5141 = vshrl.u32 %v5140, 7
    %v5142 = vsub.s32 0, %v5141
    %v5143 = vrot.slane %v5110, %v5142
    %v5144 = vmul.f32 %v5138, %v5143
    %v5145 = vmul.f32 %v5139, %v5143
    %v5146 = vlaneseq
    %v5147 = vshrl.u32 %v5146, 7
    %v5148 = vsub.s32 1, %v5147
    %v5149 = vrot.slane %v5110, %v5148
    %v5150 = vadd.f32 %v5144, %v5149
    %v5151 = vadd.f32 %v5145, %v5149
    %5152 = vst.msk [vmem:[#allocation7] sm:$0xff] %vm59, %v5150
    %5153 = vst.msk [vmem:[#allocation7 + $0x8] sm:$0xff] %vm59, %v5151
    // Predicated region
    $region26: #{tpu_custom_call.1} parent=1 // pred_check
      _
    $region27: #{tpu_custom_call.1} parent=1 // pred_check_branch
      %5155 = sbr.rel (0) target = $region29
    $region28: #{tpu_custom_call.1} parent=1 // pred_region
      %s5157 = ssub.s32 256, 256
      %5158 = vsyncadd [#allocation4], %s5157
      %s5159 = sshll.u32 [#allocation7], 4
      %s5160 = int_to_ptr.vmem [resolvable:$true] %s5159
      %5165 = dma.vmem_to_hbm [thread:$0]  %s5160, 256, %s4, [#allocation4], 128, 128, 8
    $region29: #{tpu_custom_call.1} parent=1 // pred_fallthru
      _
    // Predicated region
    $region30: #{tpu_custom_call.1} parent=1 // pred_check
      _
    $region31: #{tpu_custom_call.1} parent=1 // pred_check_branch
      %5167 = sbr.rel (0) target = $region33
    $region32: #{tpu_custom_call.1} parent=1 // pred_region
      %5168 = dma.done [#allocation4], 256
    $region33: #{tpu_custom_call.1} parent=1 // pred_fallthru
      _
    %5169 = vsyncpa [#allocation3], 1
    %5170 = vsyncpa [#allocation6], 1
    %5171 = vsyncpa [#allocation4], 1

</llo_original>
